<compile_context>
chip_gen: v7x
topology: tpu7x:2x2x1
jax: 0.10.0
libtpu: 0.0.40
codegen_flags: <defaults>
</compile_context>

<pallas_src>
import math

import jax
import jax.numpy as jnp
import numpy as np
from jax.experimental import pallas as pl
from jax.experimental.pallas import tpu as pltpu


def _pe_kernel(div_ref, phase_ref, o_ref):
    """Compute one (tile_len, d_model) tile of the sinusoidal PE table.

    angle[r, c] = (row0 + r) * div_ref[0, c] + phase_ref[0, c]
    A single sin() then yields sin on even columns and cos on odd columns.
    """
    i = pl.program_id(0)
    tile_len = o_ref.shape[0]

    # (tile_len, 1) absolute positions for this tile; broadcast in the multiply.
    pos = jax.lax.broadcasted_iota(jnp.int32, (tile_len, 1), 0).astype(jnp.float32)
    pos = pos + (i * tile_len).astype(jnp.float32)

    angle = pos * div_ref[...] + phase_ref[...]
    o_ref[...] = jnp.sin(angle).astype(o_ref.dtype)


def positional_encoding(length: int, d_model: int = 512, *,
                        dtype=jnp.float32, tile_len: int | None = None,
                        max_tile_bytes: int = 4 * 1024 * 1024):
    """Pallas equivalent of PositionalEncoding(d_model).forward(length).

    Returns an array of shape (1, length, d_model) (float32 by default; pass
    dtype=jnp.bfloat16 if the consumer accepts bf16 to halve HBM write bytes).
    """
    itemsize = jnp.dtype(dtype).itemsize
    if tile_len is None:
        # Big tiles amortize the ~600-cycle per-step overhead; cap bytes so
        # double-buffered output fits comfortably even in v7x's 64 MiB VMEM.
        tile_len = max(8, max_tile_bytes // (d_model * itemsize))
        tile_len = min(tile_len, 1024)
    if tile_len >= length:
        tile_len = length                      # single full-length block
    else:
        tile_len = max(8, (tile_len // 8) * 8)  # keep sublane-aligned blocks

    grid = (pl.cdiv(length, tile_len),)

    # Column-only constants, precomputed host-side (no per-element exp in-kernel).
    cols = np.arange(d_model)
    div_full = np.exp((cols - (cols % 2)).astype(np.float32)
                      * np.float32(-(math.log(10000.0) / d_model)))
    phase = np.where(cols % 2 == 0, np.float32(0.0),
                     np.float32(math.pi / 2.0)).astype(np.float32)
    div_full = jnp.asarray(div_full.reshape(1, d_model))
    phase = jnp.asarray(phase.reshape(1, d_model))

    pe = pl.pallas_call(
        _pe_kernel,
        out_shape=jax.ShapeDtypeStruct((length, d_model), dtype),
        grid=grid,
        in_specs=[
            pl.BlockSpec((1, d_model), lambda i: (0, 0)),  # div_term row
            pl.BlockSpec((1, d_model), lambda i: (0, 0)),  # phase row
        ],
        out_specs=pl.BlockSpec((tile_len, d_model), lambda i: (i, 0)),
        compiler_params=pltpu.CompilerParams(
            dimension_semantics=("parallel",)),
    )(div_full, phase)
    return pe[None]  # (1, length, d_model)


def _reference_pe(length: int, d_model: int) -> np.ndarray:
    """NumPy port of the PyTorch __init__ buffer, sliced to `length`."""
    pe = np.zeros((length, d_model), dtype=np.float32)
    position = np.arange(0, length, dtype=np.float32)[:, None]
    div_term = np.exp(
        np.arange(0, d_model, 2, dtype=np.float32)
        * -(math.log(10000.0) / d_model)
    )
    pe[:, 0::2] = np.sin(position * div_term)
    pe[:, 1::2] = np.cos(position * div_term)
    return pe[None]


if __name__ == "__main__":
    # forward() takes only an integer `length`; there is no tensor input,
    # so the PRNG key is unused (kept for determinism-convention symmetry).
    _ = jax.random.PRNGKey(0)

    # Lane-dense config: module's default hidden size (multiple of 128).
    d_model = 512
    length = 64

    out = positional_encoding(length, d_model=d_model)
    out = jax.block_until_ready(out)

    ref = _reference_pe(length, d_model)
    assert out.shape == (1, length, d_model)
    np.testing.assert_allclose(np.asarray(out), ref, rtol=1e-4, atol=1e-4)

    # Multi-tile + ragged last block path (grid via pl.cdiv, Pallas clips it).
    out2 = positional_encoding(200, d_model=256, tile_len=64)
    out2 = jax.block_until_ready(out2)
    np.testing.assert_allclose(np.asarray(out2), _reference_pe(200, 256),
                               rtol=1e-4, atol=1e-4)

    print("KERNEL_OK")
</pallas_src>

<mosaic_0001>
module attributes {stable_mosaic.version = 11 : i64} {
  func.func @_pe_kernel(%arg0: i32, %arg1: memref<1x512xf32, #tpu.memory_space<vmem>>, %arg2: memref<1x512xf32, #tpu.memory_space<vmem>>, %arg3: memref<64x512xf32, #tpu.memory_space<vmem>>) attributes {dimension_semantics = [#tpu.dimension_semantics<parallel>], iteration_bounds = array<i64: 1>, scalar_prefetch = 0 : i64, scratch_operands = 0 : i64, tpu.core_type = #tpu.core_type<tc>, window_params = [{pipeline_mode = #tpu.pipeline_mode<synchronous>, transform_indices = @transform_0, window_bounds = array<i64: 1, 512>}, {pipeline_mode = #tpu.pipeline_mode<synchronous>, transform_indices = @transform_1, window_bounds = array<i64: 1, 512>}, {transform_indices = @transform_2, window_bounds = array<i64: 64, 512>}]} {
    %0 = tpu.iota {dimensions = array<i32: 0>} : vector<64x1xi32>
    %1 = arith.sitofp %0 : vector<64x1xi32> to vector<64x1xf32>
    %c64_i32 = arith.constant 64 : i32
    %2 = arith.muli %arg0, %c64_i32 : i32
    %3 = arith.sitofp %2 : i32 to f32
    %4 = vector.broadcast %3 : f32 to vector<64x1xf32>
    %5 = arith.addf %1, %4 : vector<64x1xf32>
    %c0 = arith.constant 0 : index
    %c0_0 = arith.constant 0 : index
    %6 = vector.load %arg1[%c0, %c0_0] : memref<1x512xf32, #tpu.memory_space<vmem>>, vector<1x512xf32>
    %7 = vector.broadcast %5 : vector<64x1xf32> to vector<64x512xf32>
    %8 = vector.broadcast %6 : vector<1x512xf32> to vector<64x512xf32>
    %9 = arith.mulf %7, %8 : vector<64x512xf32>
    %c0_1 = arith.constant 0 : index
    %c0_2 = arith.constant 0 : index
    %10 = vector.load %arg2[%c0_1, %c0_2] : memref<1x512xf32, #tpu.memory_space<vmem>>, vector<1x512xf32>
    %11 = vector.broadcast %10 : vector<1x512xf32> to vector<64x512xf32>
    %12 = arith.addf %9, %11 : vector<64x512xf32>
    %13 = math.sin %12 : vector<64x512xf32>
    %c0_3 = arith.constant 0 : index
    %c0_4 = arith.constant 0 : index
    %14 = vector.load %arg3[%c0_3, %c0_4] : memref<64x512xf32, #tpu.memory_space<vmem>>, vector<64x512xf32>
    tpu.vector_store %arg3[%c0_3, %c0_4], %13 {strides = array<i32>} : memref<64x512xf32, #tpu.memory_space<vmem>>, vector<64x512xf32>,
    return
  }
  func.func @transform_0(%arg0: i32) -> (i32, i32) {
    %c0_i32 = arith.constant 0 : i32
    %c0_i32_0 = arith.constant 0 : i32
    %c0_i32_1 = arith.constant 0 : i32
    return %c0_i32, %c0_i32_0 : i32, i32
  }
  func.func @transform_1(%arg0: i32) -> (i32, i32) {
    %c0_i32 = arith.constant 0 : i32
    %c0_i32_0 = arith.constant 0 : i32
    %c0_i32_1 = arith.constant 0 : i32
    return %c0_i32, %c0_i32_0 : i32, i32
  }
  func.func @transform_2(%arg0: i32) -> (i32, i32) {
    %c0_i32 = arith.constant 0 : i32
    %c0_i32_0 = arith.constant 0 : i32
    return %arg0, %c0_i32 : i32, i32
  }
}

</mosaic_0001>

<llo_original>
// kernel: tpu_custom_call.1
$region0: #{tpu_custom_call.1}
  #allocation0 [shape = 'u32[]', space=smem, size = 0x4, offset = 0x4, fixed_abs, tag = 'smem constant byte address 0x4 - core index']
  #allocation1 [shape = 'u32[144,128]{1,0:T(1,128)}', space=vmem, size = 0x12000, scoped, tag = 'internal scratch']
  %s0 = inlined_call_operand.hbm [shape: f32[1,512], index: 0, kind: input, shape index: {}]
  %s1 = inlined_call_operand.hbm [shape: f32[1,512], index: 1, kind: input, shape index: {}]
  %s2 = inlined_call_operand.hbm [shape: f32[64,512], index: 2, kind: output, shape index: {}]
  %s3 = sld [smem:[#allocation0]]
  $region26: #{tpu_custom_call.1} parent=0
    _
  %s5 = ssub.s32 1, %s3
  %s6 = scalar_select 0, %s5, %s3
  $region1: #{tpu_custom_call.1} parent=0
    #allocation2 [shape = 'u8[2048]{0}', space=vmem, size = 0x800, scoped, tag = 'input window, operand 0, single buffered']
    #allocation3 [shape = 's32[1]{0}', space=sflag, size = 0x4, scoped, tag = 'scoped memory for tpu_custom_call.1']
    #allocation4 [shape = 's32[1]{0}', space=sflag, size = 0x4, scoped, tag = 'scoped memory for tpu_custom_call.1']
    #allocation5 [shape = 'u8[2048]{0}', space=vmem, size = 0x800, scoped, tag = 'input window, operand 1, single buffered']
    #allocation6 [shape = 's32[1]{0}', space=sflag, size = 0x4, scoped, tag = 'scoped memory for tpu_custom_call.1']
    #allocation7 [shape = 'u8[131072]{0}', space=vmem, size = 0x20000, scoped, tag = 'output window, operand 0, single buffered']
    %7 = vsyncpa [#allocation3], 0
    %8 = vsyncpa [#allocation6], 0
    %9 = vsyncpa [#allocation4], 0
    // Predicated region
    $region2: #{tpu_custom_call.1} parent=1 // pred_check
      _
    $region3: #{tpu_custom_call.1} parent=1 // pred_check_branch
      %11 = sbr.rel (0) target = $region5
    $region4: #{tpu_custom_call.1} parent=1 // pred_region
      %s13 = ssub.s32 64, 64
      %14 = vsyncadd [#allocation3], %s13
      %s16 = sshll.u32 [#allocation2], 4
      %s17 = int_to_ptr.vmem [resolvable:$true] %s16
      %19 = dma.hbm_to_vmem [thread:$0]  %s0, 64, %s17, [#allocation3]
    $region5: #{tpu_custom_call.1} parent=1 // pred_fallthru
      _
    // Predicated region
    $region6: #{tpu_custom_call.1} parent=1 // pred_check
      _
    $region7: #{tpu_custom_call.1} parent=1 // pred_check_branch
      %21 = sbr.rel (0) target = $region9
    $region8: #{tpu_custom_call.1} parent=1 // pred_region
      %s23 = ssub.s32 64, 64
      %24 = vsyncadd [#allocation6], %s23
      %s26 = sshll.u32 [#allocation5], 4
      %s27 = int_to_ptr.vmem [resolvable:$true] %s26
      %29 = dma.hbm_to_vmem [thread:$0]  %s1, 64, %s27, [#allocation6]
    $region9: #{tpu_custom_call.1} parent=1 // pred_fallthru
      _
    // Predicated region
    $region10: #{tpu_custom_call.1} parent=1 // pred_check
      _
    $region11: #{tpu_custom_call.1} parent=1 // pred_check_branch
      %31 = sbr.rel (0) target = $region13
    $region12: #{tpu_custom_call.1} parent=1 // pred_region
      %32 = dma.done [#allocation3], 64
    $region13: #{tpu_custom_call.1} parent=1 // pred_fallthru
      _
    // Predicated region
    $region14: #{tpu_custom_call.1} parent=1 // pred_check
      _
    $region15: #{tpu_custom_call.1} parent=1 // pred_check_branch
      %34 = sbr.rel (0) target = $region17
    $region16: #{tpu_custom_call.1} parent=1 // pred_region
      %35 = dma.done [#allocation6], 64
    $region17: #{tpu_custom_call.1} parent=1 // pred_fallthru
      _
    %v36 = vlaneseq
    %v37 = vshrl.u32 %v36, 7
    %v38 = vadd.s32 %v37, 8
    %v39 = vadd.s32 %v37, 16
    %v40 = vadd.s32 %v37, 24
    %v41 = vadd.s32 %v37, 32
    %v42 = vadd.s32 %v37, 40
    %v43 = vadd.s32 %v37, 48
    %v44 = vadd.s32 %v37, 56
    %v45 = vcvt.s32.f32 %v37
    %v46 = vcvt.s32.f32 %v38
    %v47 = vcvt.s32.f32 %v39
    %v48 = vcvt.s32.f32 %v40
    %v49 = vcvt.s32.f32 %v41
    %v50 = vcvt.s32.f32 %v42
    %v51 = vcvt.s32.f32 %v43
    %v52 = vcvt.s32.f32 %v44
    %s53 = smul.u32 0, 64
    %s54 = scvt.s32.f32 %s53
    %v55 = vstv %s54
    %v56 = vadd.f32 %v45, %v55
    %v57 = vadd.f32 %v46, %v55
    %v58 = vadd.f32 %v47, %v55
    %v59 = vadd.f32 %v48, %v55
    %v60 = vadd.f32 %v49, %v55
    %v61 = vadd.f32 %v50, %v55
    %v62 = vadd.f32 %v51, %v55
    %v63 = vadd.f32 %v52, %v55
    %v64 = vld [vmem:[#allocation2] sm:$0xf]
    %v66 = vlaneseq
    %v67 = vshrl.u32 %v66, 7
    %v68 = vsub.s32 0, %v67
    %v69 = vrot.slane %v64, %v68
    %v70 = vlaneseq
    %v71 = vshrl.u32 %v70, 7
    %v72 = vsub.s32 1, %v71
    %v73 = vrot.slane %v64, %v72
    %v74 = vlaneseq
    %v75 = vshrl.u32 %v74, 7
    %v76 = vsub.s32 2, %v75
    %v77 = vrot.slane %v64, %v76
    %v78 = vlaneseq
    %v79 = vshrl.u32 %v78, 7
    %v80 = vsub.s32 3, %v79
    %v81 = vrot.slane %v64, %v80
    %v86 = vmul.f32 %v56, %v69
    %v87 = vmul.f32 %v56, %v73
    %v88 = vmul.f32 %v56, %v77
    %v89 = vmul.f32 %v56, %v81
    %v90 = vmul.f32 %v57, %v69
    %v91 = vmul.f32 %v57, %v73
    %v92 = vmul.f32 %v57, %v77
    %v93 = vmul.f32 %v57, %v81
    %v94 = vmul.f32 %v58, %v69
    %v95 = vmul.f32 %v58, %v73
    %v96 = vmul.f32 %v58, %v77
    %v97 = vmul.f32 %v58, %v81
    %v98 = vmul.f32 %v59, %v69
    %v99 = vmul.f32 %v59, %v73
    %v100 = vmul.f32 %v59, %v77
    %v101 = vmul.f32 %v59, %v81
    %v102 = vmul.f32 %v60, %v69
    %v103 = vmul.f32 %v60, %v73
    %v104 = vmul.f32 %v60, %v77
    %v105 = vmul.f32 %v60, %v81
    %v106 = vmul.f32 %v61, %v69
    %v107 = vmul.f32 %v61, %v73
    %v108 = vmul.f32 %v61, %v77
    %v109 = vmul.f32 %v61, %v81
    %v110 = vmul.f32 %v62, %v69
    %v111 = vmul.f32 %v62, %v73
    %v112 = vmul.f32 %v62, %v77
    %v113 = vmul.f32 %v62, %v81
    %v114 = vmul.f32 %v63, %v69
    %v115 = vmul.f32 %v63, %v73
    %v116 = vmul.f32 %v63, %v77
    %v117 = vmul.f32 %v63, %v81
    %v118 = vld [vmem:[#allocation5] sm:$0xf]
    %v120 = vlaneseq
    %v121 = vshrl.u32 %v120, 7
    %v122 = vsub.s32 0, %v121
    %v123 = vrot.slane %v118, %v122
    %v124 = vlaneseq
    %v125 = vshrl.u32 %v124, 7
    %v126 = vsub.s32 1, %v125
    %v127 = vrot.slane %v118, %v126
    %v128 = vlaneseq
    %v129 = vshrl.u32 %v128, 7
    %v130 = vsub.s32 2, %v129
    %v131 = vrot.slane %v118, %v130
    %v132 = vlaneseq
    %v133 = vshrl.u32 %v132, 7
    %v134 = vsub.s32 3, %v133
    %v135 = vrot.slane %v118, %v134
    %v140 = vadd.f32 %v86, %v123
    %v141 = vadd.f32 %v87, %v127
    %v142 = vadd.f32 %v88, %v131
    %v143 = vadd.f32 %v89, %v135
    %v144 = vadd.f32 %v90, %v123
    %v145 = vadd.f32 %v91, %v127
    %v146 = vadd.f32 %v92, %v131
    %v147 = vadd.f32 %v93, %v135
    %v148 = vadd.f32 %v94, %v123
    %v149 = vadd.f32 %v95, %v127
    %v150 = vadd.f32 %v96, %v131
    %v151 = vadd.f32 %v97, %v135
    %v152 = vadd.f32 %v98, %v123
    %v153 = vadd.f32 %v99, %v127
    %v154 = vadd.f32 %v100, %v131
    %v155 = vadd.f32 %v101, %v135
    %v156 = vadd.f32 %v102, %v123
    %v157 = vadd.f32 %v103, %v127
    %v158 = vadd.f32 %v104, %v131
    %v159 = vadd.f32 %v105, %v135
    %v160 = vadd.f32 %v106, %v123
    %v161 = vadd.f32 %v107, %v127
    %v162 = vadd.f32 %v108, %v131
    %v163 = vadd.f32 %v109, %v135
    %v164 = vadd.f32 %v110, %v123
    %v165 = vadd.f32 %v111, %v127
    %v166 = vadd.f32 %v112, %v131
    %v167 = vadd.f32 %v113, %v135
    %v168 = vadd.f32 %v114, %v123
    %v169 = vadd.f32 %v115, %v127
    %v170 = vadd.f32 %v116, %v131
    %v171 = vadd.f32 %v117, %v135
    %v172 = vand.u32 2147483647, %v140
    %vm173 = vcmp.le.f32.partialorder %v172, 0.7853982
    %vm174 = vcmp.lt.s32.totalorder %v140, 0
    %v175 = vand.u32 %v140, 2139095040
    %v176 = vshrl.u32 %v175, 23
    %v177 = vsub.s32 %v176, 127
    %v178 = vand.u32 2147483647, %v140
    %v179 = vand.u32 %v178, 8388607
    %v180 = vor.u32 %v179, 8388608
    %v181 = vsub.s32 0, %v180
    %v182 = vadd.s32 %v177, 1
    %vm183 = vcmp.gt.s32.totalorder %v182, 0
    %v184 = vsel %vm183, %v182, 0
    %v185 = vshrl.u32 %v184, 5
    %v186 = vand.u32 %v184, 31
    %v187 = vsub.s32 32, %v186
    %v188 = vshrl.u32 683565275, %v187
    %v189 = vshll.u32 683565275, %v186
    %v190 = vshrl.u32 2475754826, %v187
    %v191 = vor.u32 %v189, %v190
    %v192 = vshll.u32 2475754826, %v186
    %v193 = vshrl.u32 2131351028, %v187
    %v194 = vor.u32 %v192, %v193
    %v195 = vshll.u32 2131351028, %v186
    %v196 = vshrl.u32 2102212464, %v187
    %v197 = vor.u32 %v195, %v196
    %v198 = vshll.u32 2102212464, %v186
    %v199 = vshrl.u32 920167782, %v187
    %v200 = vor.u32 %v198, %v199
    %v201 = vshll.u32 920167782, %v186
    %v202 = vshrl.u32 1326507024, %v187
    %v203 = vor.u32 %v201, %v202
    %vm204 = vcmp.lt.s32.totalorder %v185, 1
    %vm205 = vcmp.lt.s32.totalorder %v185, 2
    %vm206 = vcmp.lt.s32.totalorder %v185, 3
    %vm207 = vcmp.lt.s32.totalorder %v185, 4
    %v208 = vsel %vm204, %v188, %v191
    %v209 = vsel %vm207, %v197, 2102212464
    %v210 = vsel %vm206, %v194, %v209
    %v211 = vsel %vm205, %v208, %v210
    %v212 = vsel %vm204, %v191, %v194
    %v213 = vsel %vm207, %v200, 920167782
    %v214 = vsel %vm206, %v197, %v213
    %v215 = vsel %vm205, %v212, %v214
    %v216 = vsel %vm204, %v194, %v197
    %v217 = vsel %vm207, %v203, 1326507024
    %v218 = vsel %vm206, %v200, %v217
    %v219 = vsel %vm205, %v216, %v218
    %v220 = vshll.u32 %v180, 8
    %v221 = vmul.u32.u64.compose %v220, %v219
    %v222 = vextract.low.u32 %v221
    %v223 = vextract.high.u32 %v221
    %v224 = vmul.u32.u64.compose %v220, %v215
    %v225 = vextract.low.u32 %v224
    %v226 = vextract.high.u32 %v224
    %v227 = vmul.u32 %v220, %v211
    %v228 = vadd.s32 %v223, %v225
    %vm229 = vc.u32 %v223, %v225
    %v230 = vadd.s32 %v226, 1
    %v231 = vsel %vm229, %v230, %v226
    %v232 = vadd.s32 %v227, %v231
    %v233 = vadd.s32 %v232, 536870912
    %v234 = vshrl.u32 %v233, 30
    %v235 = vshll.u32 %v234, 30
    %v236 = vsub.s32 %v232, %v235
    %vm237 = vcmp.lt.s32.totalorder %v236, 0
    %v238 = vsub.s32 0, %v236
    %v239 = vsel %vm237, %v238, %v236
    %v240 = vclz %v239
    %v241 = vsub.s32 %v240, 2
    %vm242 = vcmp.gt.s32.totalorder 0, %v241
    %v243 = vsel %vm242, 0, %v241
    %v244 = vsub.s32 32, %v243
    %v245 = vshll.u32 %v236, %v243
    %v246 = vshrl.u32 %v228, %v244
    %v247 = vor.u32 %v245, %v246
    %v248 = vsub.s32 4294967266, %v243
    %v249 = vadd.s32 %v248, 127
    %v250 = vshll.u32 %v249, 23
    %v251 = vor.u32 4788187, %v250
    %v252 = vand.u32 2147483647, %v251
    %v254 = vcvt.s32.f32 %v247
    %v255 = vmul.f32 %v254, %v252
    %v256 = vxor.u32 %v255, 2147483648
    %v257 = vsel %vm174, %v256, %v255
    %v258 = vsub.s32 4, %v234
    %v259 = vsel %vm174, %v258, %v234
    %v260 = vsel %vm173, %v140, %v257
    %v261 = vsel %vm173, 0, %v259
    %v262 = vcosq.f32.pop %v260
    %v263 = vsinq.f32.pop %v260
    %vm264 = vweird.f32 %v140
    %v265 = vadd.s32 %v261, 3
    %v266 = vand.u32 %v265, 3
    %vm267 = vcmp.lt.s32.totalorder %v266, 2
    %vm268 = vcmp.eq.s32.totalorder %v266, 0
    %v269 = vxor.u32 %v263, 2147483648
    %v270 = vsel %vm268, %v262, %v269
    %vm271 = vcmp.eq.s32.totalorder %v266, 2
    %v272 = vxor.u32 %v262, 2147483648
    %v273 = vsel %vm271, %v272, %v263
    %v274 = vsel %vm267, %v270, %v273
    %v275 = vsel %vm264, nan, %v274
    %v276 = vand.u32 2147483647, %v141
    %vm277 = vcmp.le.f32.partialorder %v276, 0.7853982
    %vm278 = vcmp.lt.s32.totalorder %v141, 0
    %v279 = vand.u32 %v141, 2139095040
    %v280 = vshrl.u32 %v279, 23
    %v281 = vsub.s32 %v280, 127
    %v282 = vand.u32 2147483647, %v141
    %v283 = vand.u32 %v282, 8388607
    %v284 = vor.u32 %v283, 8388608
    %v285 = vsub.s32 0, %v284
    %v286 = vadd.s32 %v281, 1
    %vm287 = vcmp.gt.s32.totalorder %v286, 0
    %v288 = vsel %vm287, %v286, 0
    %v289 = vshrl.u32 %v288, 5
    %v290 = vand.u32 %v288, 31
    %v291 = vsub.s32 32, %v290
    %v292 = vshrl.u32 683565275, %v291
    %v293 = vshll.u32 683565275, %v290
    %v294 = vshrl.u32 2475754826, %v291
    %v295 = vor.u32 %v293, %v294
    %v296 = vshll.u32 2475754826, %v290
    %v297 = vshrl.u32 2131351028, %v291
    %v298 = vor.u32 %v296, %v297
    %v299 = vshll.u32 2131351028, %v290
    %v300 = vshrl.u32 2102212464, %v291
    %v301 = vor.u32 %v299, %v300
    %v302 = vshll.u32 2102212464, %v290
    %v303 = vshrl.u32 920167782, %v291
    %v304 = vor.u32 %v302, %v303
    %v305 = vshll.u32 920167782, %v290
    %v306 = vshrl.u32 1326507024, %v291
    %v307 = vor.u32 %v305, %v306
    %vm308 = vcmp.lt.s32.totalorder %v289, 1
    %vm309 = vcmp.lt.s32.totalorder %v289, 2
    %vm310 = vcmp.lt.s32.totalorder %v289, 3
    %vm311 = vcmp.lt.s32.totalorder %v289, 4
    %v312 = vsel %vm308, %v292, %v295
    %v313 = vsel %vm311, %v301, 2102212464
    %v314 = vsel %vm310, %v298, %v313
    %v315 = vsel %vm309, %v312, %v314
    %v316 = vsel %vm308, %v295, %v298
    %v317 = vsel %vm311, %v304, 920167782
    %v318 = vsel %vm310, %v301, %v317
    %v319 = vsel %vm309, %v316, %v318
    %v320 = vsel %vm308, %v298, %v301
    %v321 = vsel %vm311, %v307, 1326507024
    %v322 = vsel %vm310, %v304, %v321
    %v323 = vsel %vm309, %v320, %v322
    %v324 = vshll.u32 %v284, 8
    %v325 = vmul.u32.u64.compose %v324, %v323
    %v326 = vextract.low.u32 %v325
    %v327 = vextract.high.u32 %v325
    %v328 = vmul.u32.u64.compose %v324, %v319
    %v329 = vextract.low.u32 %v328
    %v330 = vextract.high.u32 %v328
    %v331 = vmul.u32 %v324, %v315
    %v332 = vadd.s32 %v327, %v329
    %vm333 = vc.u32 %v327, %v329
    %v334 = vadd.s32 %v330, 1
    %v335 = vsel %vm333, %v334, %v330
    %v336 = vadd.s32 %v331, %v335
    %v337 = vadd.s32 %v336, 536870912
    %v338 = vshrl.u32 %v337, 30
    %v339 = vshll.u32 %v338, 30
    %v340 = vsub.s32 %v336, %v339
    %vm341 = vcmp.lt.s32.totalorder %v340, 0
    %v342 = vsub.s32 0, %v340
    %v343 = vsel %vm341, %v342, %v340
    %v344 = vclz %v343
    %v345 = vsub.s32 %v344, 2
    %vm346 = vcmp.gt.s32.totalorder 0, %v345
    %v347 = vsel %vm346, 0, %v345
    %v348 = vsub.s32 32, %v347
    %v349 = vshll.u32 %v340, %v347
    %v350 = vshrl.u32 %v332, %v348
    %v351 = vor.u32 %v349, %v350
    %v352 = vsub.s32 4294967266, %v347
    %v353 = vadd.s32 %v352, 127
    %v354 = vshll.u32 %v353, 23
    %v355 = vor.u32 4788187, %v354
    %v356 = vand.u32 2147483647, %v355
    %v358 = vcvt.s32.f32 %v351
    %v359 = vmul.f32 %v358, %v356
    %v360 = vxor.u32 %v359, 2147483648
    %v361 = vsel %vm278, %v360, %v359
    %v362 = vsub.s32 4, %v338
    %v363 = vsel %vm278, %v362, %v338
    %v364 = vsel %vm277, %v141, %v361
    %v365 = vsel %vm277, 0, %v363
    %v366 = vcosq.f32.pop %v364
    %v367 = vsinq.f32.pop %v364
    %vm368 = vweird.f32 %v141
    %v369 = vadd.s32 %v365, 3
    %v370 = vand.u32 %v369, 3
    %vm371 = vcmp.lt.s32.totalorder %v370, 2
    %vm372 = vcmp.eq.s32.totalorder %v370, 0
    %v373 = vxor.u32 %v367, 2147483648
    %v374 = vsel %vm372, %v366, %v373
    %vm375 = vcmp.eq.s32.totalorder %v370, 2
    %v376 = vxor.u32 %v366, 2147483648
    %v377 = vsel %vm375, %v376, %v367
    %v378 = vsel %vm371, %v374, %v377
    %v379 = vsel %vm368, nan, %v378
    %v380 = vand.u32 2147483647, %v142
    %vm381 = vcmp.le.f32.partialorder %v380, 0.7853982
    %vm382 = vcmp.lt.s32.totalorder %v142, 0
    %v383 = vand.u32 %v142, 2139095040
    %v384 = vshrl.u32 %v383, 23
    %v385 = vsub.s32 %v384, 127
    %v386 = vand.u32 2147483647, %v142
    %v387 = vand.u32 %v386, 8388607
    %v388 = vor.u32 %v387, 8388608
    %v389 = vsub.s32 0, %v388
    %v390 = vadd.s32 %v385, 1
    %vm391 = vcmp.gt.s32.totalorder %v390, 0
    %v392 = vsel %vm391, %v390, 0
    %v393 = vshrl.u32 %v392, 5
    %v394 = vand.u32 %v392, 31
    %v395 = vsub.s32 32, %v394
    %v396 = vshrl.u32 683565275, %v395
    %v397 = vshll.u32 683565275, %v394
    %v398 = vshrl.u32 2475754826, %v395
    %v399 = vor.u32 %v397, %v398
    %v400 = vshll.u32 2475754826, %v394
    %v401 = vshrl.u32 2131351028, %v395
    %v402 = vor.u32 %v400, %v401
    %v403 = vshll.u32 2131351028, %v394
    %v404 = vshrl.u32 2102212464, %v395
    %v405 = vor.u32 %v403, %v404
    %v406 = vshll.u32 2102212464, %v394
    %v407 = vshrl.u32 920167782, %v395
    %v408 = vor.u32 %v406, %v407
    %v409 = vshll.u32 920167782, %v394
    %v410 = vshrl.u32 1326507024, %v395
    %v411 = vor.u32 %v409, %v410
    %vm412 = vcmp.lt.s32.totalorder %v393, 1
    %vm413 = vcmp.lt.s32.totalorder %v393, 2
    %vm414 = vcmp.lt.s32.totalorder %v393, 3
    %vm415 = vcmp.lt.s32.totalorder %v393, 4
    %v416 = vsel %vm412, %v396, %v399
    %v417 = vsel %vm415, %v405, 2102212464
    %v418 = vsel %vm414, %v402, %v417
    %v419 = vsel %vm413, %v416, %v418
    %v420 = vsel %vm412, %v399, %v402
    %v421 = vsel %vm415, %v408, 920167782
    %v422 = vsel %vm414, %v405, %v421
    %v423 = vsel %vm413, %v420, %v422
    %v424 = vsel %vm412, %v402, %v405
    %v425 = vsel %vm415, %v411, 1326507024
    %v426 = vsel %vm414, %v408, %v425
    %v427 = vsel %vm413, %v424, %v426
    %v428 = vshll.u32 %v388, 8
    %v429 = vmul.u32.u64.compose %v428, %v427
    %v430 = vextract.low.u32 %v429
    %v431 = vextract.high.u32 %v429
    %v432 = vmul.u32.u64.compose %v428, %v423
    %v433 = vextract.low.u32 %v432
    %v434 = vextract.high.u32 %v432
    %v435 = vmul.u32 %v428, %v419
    %v436 = vadd.s32 %v431, %v433
    %vm437 = vc.u32 %v431, %v433
    %v438 = vadd.s32 %v434, 1
    %v439 = vsel %vm437, %v438, %v434
    %v440 = vadd.s32 %v435, %v439
    %v441 = vadd.s32 %v440, 536870912
    %v442 = vshrl.u32 %v441, 30
    %v443 = vshll.u32 %v442, 30
    %v444 = vsub.s32 %v440, %v443
    %vm445 = vcmp.lt.s32.totalorder %v444, 0
    %v446 = vsub.s32 0, %v444
    %v447 = vsel %vm445, %v446, %v444
    %v448 = vclz %v447
    %v449 = vsub.s32 %v448, 2
    %vm450 = vcmp.gt.s32.totalorder 0, %v449
    %v451 = vsel %vm450, 0, %v449
    %v452 = vsub.s32 32, %v451
    %v453 = vshll.u32 %v444, %v451
    %v454 = vshrl.u32 %v436, %v452
    %v455 = vor.u32 %v453, %v454
    %v456 = vsub.s32 4294967266, %v451
    %v457 = vadd.s32 %v456, 127
    %v458 = vshll.u32 %v457, 23
    %v459 = vor.u32 4788187, %v458
    %v460 = vand.u32 2147483647, %v459
    %v462 = vcvt.s32.f32 %v455
    %v463 = vmul.f32 %v462, %v460
    %v464 = vxor.u32 %v463, 2147483648
    %v465 = vsel %vm382, %v464, %v463
    %v466 = vsub.s32 4, %v442
    %v467 = vsel %vm382, %v466, %v442
    %v468 = vsel %vm381, %v142, %v465
    %v469 = vsel %vm381, 0, %v467
    %v470 = vcosq.f32.pop %v468
    %v471 = vsinq.f32.pop %v468
    %vm472 = vweird.f32 %v142
    %v473 = vadd.s32 %v469, 3
    %v474 = vand.u32 %v473, 3
    %vm475 = vcmp.lt.s32.totalorder %v474, 2
    %vm476 = vcmp.eq.s32.totalorder %v474, 0
    %v477 = vxor.u32 %v471, 2147483648
    %v478 = vsel %vm476, %v470, %v477
    %vm479 = vcmp.eq.s32.totalorder %v474, 2
    %v480 = vxor.u32 %v470, 2147483648
    %v481 = vsel %vm479, %v480, %v471
    %v482 = vsel %vm475, %v478, %v481
    %v483 = vsel %vm472, nan, %v482
    %v484 = vand.u32 2147483647, %v143
    %vm485 = vcmp.le.f32.partialorder %v484, 0.7853982
    %vm486 = vcmp.lt.s32.totalorder %v143, 0
    %v487 = vand.u32 %v143, 2139095040
    %v488 = vshrl.u32 %v487, 23
    %v489 = vsub.s32 %v488, 127
    %v490 = vand.u32 2147483647, %v143
    %v491 = vand.u32 %v490, 8388607
    %v492 = vor.u32 %v491, 8388608
    %v493 = vsub.s32 0, %v492
    %v494 = vadd.s32 %v489, 1
    %vm495 = vcmp.gt.s32.totalorder %v494, 0
    %v496 = vsel %vm495, %v494, 0
    %v497 = vshrl.u32 %v496, 5
    %v498 = vand.u32 %v496, 31
    %v499 = vsub.s32 32, %v498
    %v500 = vshrl.u32 683565275, %v499
    %v501 = vshll.u32 683565275, %v498
    %v502 = vshrl.u32 2475754826, %v499
    %v503 = vor.u32 %v501, %v502
    %v504 = vshll.u32 2475754826, %v498
    %v505 = vshrl.u32 2131351028, %v499
    %v506 = vor.u32 %v504, %v505
    %v507 = vshll.u32 2131351028, %v498
    %v508 = vshrl.u32 2102212464, %v499
    %v509 = vor.u32 %v507, %v508
    %v510 = vshll.u32 2102212464, %v498
    %v511 = vshrl.u32 920167782, %v499
    %v512 = vor.u32 %v510, %v511
    %v513 = vshll.u32 920167782, %v498
    %v514 = vshrl.u32 1326507024, %v499
    %v515 = vor.u32 %v513, %v514
    %vm516 = vcmp.lt.s32.totalorder %v497, 1
    %vm517 = vcmp.lt.s32.totalorder %v497, 2
    %vm518 = vcmp.lt.s32.totalorder %v497, 3
    %vm519 = vcmp.lt.s32.totalorder %v497, 4
    %v520 = vsel %vm516, %v500, %v503
    %v521 = vsel %vm519, %v509, 2102212464
    %v522 = vsel %vm518, %v506, %v521
    %v523 = vsel %vm517, %v520, %v522
    %v524 = vsel %vm516, %v503, %v506
    %v525 = vsel %vm519, %v512, 920167782
    %v526 = vsel %vm518, %v509, %v525
    %v527 = vsel %vm517, %v524, %v526
    %v528 = vsel %vm516, %v506, %v509
    %v529 = vsel %vm519, %v515, 1326507024
    %v530 = vsel %vm518, %v512, %v529
    %v531 = vsel %vm517, %v528, %v530
    %v532 = vshll.u32 %v492, 8
    %v533 = vmul.u32.u64.compose %v532, %v531
    %v534 = vextract.low.u32 %v533
    %v535 = vextract.high.u32 %v533
    %v536 = vmul.u32.u64.compose %v532, %v527
    %v537 = vextract.low.u32 %v536
    %v538 = vextract.high.u32 %v536
    %v539 = vmul.u32 %v532, %v523
    %v540 = vadd.s32 %v535, %v537
    %vm541 = vc.u32 %v535, %v537
    %v542 = vadd.s32 %v538, 1
    %v543 = vsel %vm541, %v542, %v538
    %v544 = vadd.s32 %v539, %v543
    %v545 = vadd.s32 %v544, 536870912
    %v546 = vshrl.u32 %v545, 30
    %v547 = vshll.u32 %v546, 30
    %v548 = vsub.s32 %v544, %v547
    %vm549 = vcmp.lt.s32.totalorder %v548, 0
    %v550 = vsub.s32 0, %v548
    %v551 = vsel %vm549, %v550, %v548
    %v552 = vclz %v551
    %v553 = vsub.s32 %v552, 2
    %vm554 = vcmp.gt.s32.totalorder 0, %v553
    %v555 = vsel %vm554, 0, %v553
    %v556 = vsub.s32 32, %v555
    %v557 = vshll.u32 %v548, %v555
    %v558 = vshrl.u32 %v540, %v556
    %v559 = vor.u32 %v557, %v558
    %v560 = vsub.s32 4294967266, %v555
    %v561 = vadd.s32 %v560, 127
    %v562 = vshll.u32 %v561, 23
    %v563 = vor.u32 4788187, %v562
    %v564 = vand.u32 2147483647, %v563
    %v566 = vcvt.s32.f32 %v559
    %v567 = vmul.f32 %v566, %v564
    %v568 = vxor.u32 %v567, 2147483648
    %v569 = vsel %vm486, %v568, %v567
    %v570 = vsub.s32 4, %v546
    %v571 = vsel %vm486, %v570, %v546
    %v572 = vsel %vm485, %v143, %v569
    %v573 = vsel %vm485, 0, %v571
    %v574 = vcosq.f32.pop %v572
    %v575 = vsinq.f32.pop %v572
    %vm576 = vweird.f32 %v143
    %v577 = vadd.s32 %v573, 3
    %v578 = vand.u32 %v577, 3
    %vm579 = vcmp.lt.s32.totalorder %v578, 2
    %vm580 = vcmp.eq.s32.totalorder %v578, 0
    %v581 = vxor.u32 %v575, 2147483648
    %v582 = vsel %vm580, %v574, %v581
    %vm583 = vcmp.eq.s32.totalorder %v578, 2
    %v584 = vxor.u32 %v574, 2147483648
    %v585 = vsel %vm583, %v584, %v575
    %v586 = vsel %vm579, %v582, %v585
    %v587 = vsel %vm576, nan, %v586
    %v588 = vand.u32 2147483647, %v144
    %vm589 = vcmp.le.f32.partialorder %v588, 0.7853982
    %vm590 = vcmp.lt.s32.totalorder %v144, 0
    %v591 = vand.u32 %v144, 2139095040
    %v592 = vshrl.u32 %v591, 23
    %v593 = vsub.s32 %v592, 127
    %v594 = vand.u32 2147483647, %v144
    %v595 = vand.u32 %v594, 8388607
    %v596 = vor.u32 %v595, 8388608
    %v597 = vsub.s32 0, %v596
    %v598 = vadd.s32 %v593, 1
    %vm599 = vcmp.gt.s32.totalorder %v598, 0
    %v600 = vsel %vm599, %v598, 0
    %v601 = vshrl.u32 %v600, 5
    %v602 = vand.u32 %v600, 31
    %v603 = vsub.s32 32, %v602
    %v604 = vshrl.u32 683565275, %v603
    %v605 = vshll.u32 683565275, %v602
    %v606 = vshrl.u32 2475754826, %v603
    %v607 = vor.u32 %v605, %v606
    %v608 = vshll.u32 2475754826, %v602
    %v609 = vshrl.u32 2131351028, %v603
    %v610 = vor.u32 %v608, %v609
    %v611 = vshll.u32 2131351028, %v602
    %v612 = vshrl.u32 2102212464, %v603
    %v613 = vor.u32 %v611, %v612
    %v614 = vshll.u32 2102212464, %v602
    %v615 = vshrl.u32 920167782, %v603
    %v616 = vor.u32 %v614, %v615
    %v617 = vshll.u32 920167782, %v602
    %v618 = vshrl.u32 1326507024, %v603
    %v619 = vor.u32 %v617, %v618
    %vm620 = vcmp.lt.s32.totalorder %v601, 1
    %vm621 = vcmp.lt.s32.totalorder %v601, 2
    %vm622 = vcmp.lt.s32.totalorder %v601, 3
    %vm623 = vcmp.lt.s32.totalorder %v601, 4
    %v624 = vsel %vm620, %v604, %v607
    %v625 = vsel %vm623, %v613, 2102212464
    %v626 = vsel %vm622, %v610, %v625
    %v627 = vsel %vm621, %v624, %v626
    %v628 = vsel %vm620, %v607, %v610
    %v629 = vsel %vm623, %v616, 920167782
    %v630 = vsel %vm622, %v613, %v629
    %v631 = vsel %vm621, %v628, %v630
    %v632 = vsel %vm620, %v610, %v613
    %v633 = vsel %vm623, %v619, 1326507024
    %v634 = vsel %vm622, %v616, %v633
    %v635 = vsel %vm621, %v632, %v634
    %v636 = vshll.u32 %v596, 8
    %v637 = vmul.u32.u64.compose %v636, %v635
    %v638 = vextract.low.u32 %v637
    %v639 = vextract.high.u32 %v637
    %v640 = vmul.u32.u64.compose %v636, %v631
    %v641 = vextract.low.u32 %v640
    %v642 = vextract.high.u32 %v640
    %v643 = vmul.u32 %v636, %v627
    %v644 = vadd.s32 %v639, %v641
    %vm645 = vc.u32 %v639, %v641
    %v646 = vadd.s32 %v642, 1
    %v647 = vsel %vm645, %v646, %v642
    %v648 = vadd.s32 %v643, %v647
    %v649 = vadd.s32 %v648, 536870912
    %v650 = vshrl.u32 %v649, 30
    %v651 = vshll.u32 %v650, 30
    %v652 = vsub.s32 %v648, %v651
    %vm653 = vcmp.lt.s32.totalorder %v652, 0
    %v654 = vsub.s32 0, %v652
    %v655 = vsel %vm653, %v654, %v652
    %v656 = vclz %v655
    %v657 = vsub.s32 %v656, 2
    %vm658 = vcmp.gt.s32.totalorder 0, %v657
    %v659 = vsel %vm658, 0, %v657
    %v660 = vsub.s32 32, %v659
    %v661 = vshll.u32 %v652, %v659
    %v662 = vshrl.u32 %v644, %v660
    %v663 = vor.u32 %v661, %v662
    %v664 = vsub.s32 4294967266, %v659
    %v665 = vadd.s32 %v664, 127
    %v666 = vshll.u32 %v665, 23
    %v667 = vor.u32 4788187, %v666
    %v668 = vand.u32 2147483647, %v667
    %v670 = vcvt.s32.f32 %v663
    %v671 = vmul.f32 %v670, %v668
    %v672 = vxor.u32 %v671, 2147483648
    %v673 = vsel %vm590, %v672, %v671
    %v674 = vsub.s32 4, %v650
    %v675 = vsel %vm590, %v674, %v650
    %v676 = vsel %vm589, %v144, %v673
    %v677 = vsel %vm589, 0, %v675
    %v678 = vcosq.f32.pop %v676
    %v679 = vsinq.f32.pop %v676
    %vm680 = vweird.f32 %v144
    %v681 = vadd.s32 %v677, 3
    %v682 = vand.u32 %v681, 3
    %vm683 = vcmp.lt.s32.totalorder %v682, 2
    %vm684 = vcmp.eq.s32.totalorder %v682, 0
    %v685 = vxor.u32 %v679, 2147483648
    %v686 = vsel %vm684, %v678, %v685
    %vm687 = vcmp.eq.s32.totalorder %v682, 2
    %v688 = vxor.u32 %v678, 2147483648
    %v689 = vsel %vm687, %v688, %v679
    %v690 = vsel %vm683, %v686, %v689
    %v691 = vsel %vm680, nan, %v690
    %v692 = vand.u32 2147483647, %v145
    %vm693 = vcmp.le.f32.partialorder %v692, 0.7853982
    %vm694 = vcmp.lt.s32.totalorder %v145, 0
    %v695 = vand.u32 %v145, 2139095040
    %v696 = vshrl.u32 %v695, 23
    %v697 = vsub.s32 %v696, 127
    %v698 = vand.u32 2147483647, %v145
    %v699 = vand.u32 %v698, 8388607
    %v700 = vor.u32 %v699, 8388608
    %v701 = vsub.s32 0, %v700
    %v702 = vadd.s32 %v697, 1
    %vm703 = vcmp.gt.s32.totalorder %v702, 0
    %v704 = vsel %vm703, %v702, 0
    %v705 = vshrl.u32 %v704, 5
    %v706 = vand.u32 %v704, 31
    %v707 = vsub.s32 32, %v706
    %v708 = vshrl.u32 683565275, %v707
    %v709 = vshll.u32 683565275, %v706
    %v710 = vshrl.u32 2475754826, %v707
    %v711 = vor.u32 %v709, %v710
    %v712 = vshll.u32 2475754826, %v706
    %v713 = vshrl.u32 2131351028, %v707
    %v714 = vor.u32 %v712, %v713
    %v715 = vshll.u32 2131351028, %v706
    %v716 = vshrl.u32 2102212464, %v707
    %v717 = vor.u32 %v715, %v716
    %v718 = vshll.u32 2102212464, %v706
    %v719 = vshrl.u32 920167782, %v707
    %v720 = vor.u32 %v718, %v719
    %v721 = vshll.u32 920167782, %v706
    %v722 = vshrl.u32 1326507024, %v707
    %v723 = vor.u32 %v721, %v722
    %vm724 = vcmp.lt.s32.totalorder %v705, 1
    %vm725 = vcmp.lt.s32.totalorder %v705, 2
    %vm726 = vcmp.lt.s32.totalorder %v705, 3
    %vm727 = vcmp.lt.s32.totalorder %v705, 4
    %v728 = vsel %vm724, %v708, %v711
    %v729 = vsel %vm727, %v717, 2102212464
    %v730 = vsel %vm726, %v714, %v729
    %v731 = vsel %vm725, %v728, %v730
    %v732 = vsel %vm724, %v711, %v714
    %v733 = vsel %vm727, %v720, 920167782
    %v734 = vsel %vm726, %v717, %v733
    %v735 = vsel %vm725, %v732, %v734
    %v736 = vsel %vm724, %v714, %v717
    %v737 = vsel %vm727, %v723, 1326507024
    %v738 = vsel %vm726, %v720, %v737
    %v739 = vsel %vm725, %v736, %v738
    %v740 = vshll.u32 %v700, 8
    %v741 = vmul.u32.u64.compose %v740, %v739
    %v742 = vextract.low.u32 %v741
    %v743 = vextract.high.u32 %v741
    %v744 = vmul.u32.u64.compose %v740, %v735
    %v745 = vextract.low.u32 %v744
    %v746 = vextract.high.u32 %v744
    %v747 = vmul.u32 %v740, %v731
    %v748 = vadd.s32 %v743, %v745
    %vm749 = vc.u32 %v743, %v745
    %v750 = vadd.s32 %v746, 1
    %v751 = vsel %vm749, %v750, %v746
    %v752 = vadd.s32 %v747, %v751
    %v753 = vadd.s32 %v752, 536870912
    %v754 = vshrl.u32 %v753, 30
    %v755 = vshll.u32 %v754, 30
    %v756 = vsub.s32 %v752, %v755
    %vm757 = vcmp.lt.s32.totalorder %v756, 0
    %v758 = vsub.s32 0, %v756
    %v759 = vsel %vm757, %v758, %v756
    %v760 = vclz %v759
    %v761 = vsub.s32 %v760, 2
    %vm762 = vcmp.gt.s32.totalorder 0, %v761
    %v763 = vsel %vm762, 0, %v761
    %v764 = vsub.s32 32, %v763
    %v765 = vshll.u32 %v756, %v763
    %v766 = vshrl.u32 %v748, %v764
    %v767 = vor.u32 %v765, %v766
    %v768 = vsub.s32 4294967266, %v763
    %v769 = vadd.s32 %v768, 127
    %v770 = vshll.u32 %v769, 23
    %v771 = vor.u32 4788187, %v770
    %v772 = vand.u32 2147483647, %v771
    %v774 = vcvt.s32.f32 %v767
    %v775 = vmul.f32 %v774, %v772
    %v776 = vxor.u32 %v775, 2147483648
    %v777 = vsel %vm694, %v776, %v775
    %v778 = vsub.s32 4, %v754
    %v779 = vsel %vm694, %v778, %v754
    %v780 = vsel %vm693, %v145, %v777
    %v781 = vsel %vm693, 0, %v779
    %v782 = vcosq.f32.pop %v780
    %v783 = vsinq.f32.pop %v780
    %vm784 = vweird.f32 %v145
    %v785 = vadd.s32 %v781, 3
    %v786 = vand.u32 %v785, 3
    %vm787 = vcmp.lt.s32.totalorder %v786, 2
    %vm788 = vcmp.eq.s32.totalorder %v786, 0
    %v789 = vxor.u32 %v783, 2147483648
    %v790 = vsel %vm788, %v782, %v789
    %vm791 = vcmp.eq.s32.totalorder %v786, 2
    %v792 = vxor.u32 %v782, 2147483648
    %v793 = vsel %vm791, %v792, %v783
    %v794 = vsel %vm787, %v790, %v793
    %v795 = vsel %vm784, nan, %v794
    %v796 = vand.u32 2147483647, %v146
    %vm797 = vcmp.le.f32.partialorder %v796, 0.7853982
    %vm798 = vcmp.lt.s32.totalorder %v146, 0
    %v799 = vand.u32 %v146, 2139095040
    %v800 = vshrl.u32 %v799, 23
    %v801 = vsub.s32 %v800, 127
    %v802 = vand.u32 2147483647, %v146
    %v803 = vand.u32 %v802, 8388607
    %v804 = vor.u32 %v803, 8388608
    %v805 = vsub.s32 0, %v804
    %v806 = vadd.s32 %v801, 1
    %vm807 = vcmp.gt.s32.totalorder %v806, 0
    %v808 = vsel %vm807, %v806, 0
    %v809 = vshrl.u32 %v808, 5
    %v810 = vand.u32 %v808, 31
    %v811 = vsub.s32 32, %v810
    %v812 = vshrl.u32 683565275, %v811
    %v813 = vshll.u32 683565275, %v810
    %v814 = vshrl.u32 2475754826, %v811
    %v815 = vor.u32 %v813, %v814
    %v816 = vshll.u32 2475754826, %v810
    %v817 = vshrl.u32 2131351028, %v811
    %v818 = vor.u32 %v816, %v817
    %v819 = vshll.u32 2131351028, %v810
    %v820 = vshrl.u32 2102212464, %v811
    %v821 = vor.u32 %v819, %v820
    %v822 = vshll.u32 2102212464, %v810
    %v823 = vshrl.u32 920167782, %v811
    %v824 = vor.u32 %v822, %v823
    %v825 = vshll.u32 920167782, %v810
    %v826 = vshrl.u32 1326507024, %v811
    %v827 = vor.u32 %v825, %v826
    %vm828 = vcmp.lt.s32.totalorder %v809, 1
    %vm829 = vcmp.lt.s32.totalorder %v809, 2
    %vm830 = vcmp.lt.s32.totalorder %v809, 3
    %vm831 = vcmp.lt.s32.totalorder %v809, 4
    %v832 = vsel %vm828, %v812, %v815
    %v833 = vsel %vm831, %v821, 2102212464
    %v834 = vsel %vm830, %v818, %v833
    %v835 = vsel %vm829, %v832, %v834
    %v836 = vsel %vm828, %v815, %v818
    %v837 = vsel %vm831, %v824, 920167782
    %v838 = vsel %vm830, %v821, %v837
    %v839 = vsel %vm829, %v836, %v838
    %v840 = vsel %vm828, %v818, %v821
    %v841 = vsel %vm831, %v827, 1326507024
    %v842 = vsel %vm830, %v824, %v841
    %v843 = vsel %vm829, %v840, %v842
    %v844 = vshll.u32 %v804, 8
    %v845 = vmul.u32.u64.compose %v844, %v843
    %v846 = vextract.low.u32 %v845
    %v847 = vextract.high.u32 %v845
    %v848 = vmul.u32.u64.compose %v844, %v839
    %v849 = vextract.low.u32 %v848
    %v850 = vextract.high.u32 %v848
    %v851 = vmul.u32 %v844, %v835
    %v852 = vadd.s32 %v847, %v849
    %vm853 = vc.u32 %v847, %v849
    %v854 = vadd.s32 %v850, 1
    %v855 = vsel %vm853, %v854, %v850
    %v856 = vadd.s32 %v851, %v855
    %v857 = vadd.s32 %v856, 536870912
    %v858 = vshrl.u32 %v857, 30
    %v859 = vshll.u32 %v858, 30
    %v860 = vsub.s32 %v856, %v859
    %vm861 = vcmp.lt.s32.totalorder %v860, 0
    %v862 = vsub.s32 0, %v860
    %v863 = vsel %vm861, %v862, %v860
    %v864 = vclz %v863
    %v865 = vsub.s32 %v864, 2
    %vm866 = vcmp.gt.s32.totalorder 0, %v865
    %v867 = vsel %vm866, 0, %v865
    %v868 = vsub.s32 32, %v867
    %v869 = vshll.u32 %v860, %v867
    %v870 = vshrl.u32 %v852, %v868
    %v871 = vor.u32 %v869, %v870
    %v872 = vsub.s32 4294967266, %v867
    %v873 = vadd.s32 %v872, 127
    %v874 = vshll.u32 %v873, 23
    %v875 = vor.u32 4788187, %v874
    %v876 = vand.u32 2147483647, %v875
    %v878 = vcvt.s32.f32 %v871
    %v879 = vmul.f32 %v878, %v876
    %v880 = vxor.u32 %v879, 2147483648
    %v881 = vsel %vm798, %v880, %v879
    %v882 = vsub.s32 4, %v858
    %v883 = vsel %vm798, %v882, %v858
    %v884 = vsel %vm797, %v146, %v881
    %v885 = vsel %vm797, 0, %v883
    %v886 = vcosq.f32.pop %v884
    %v887 = vsinq.f32.pop %v884
    %vm888 = vweird.f32 %v146
    %v889 = vadd.s32 %v885, 3
    %v890 = vand.u32 %v889, 3
    %vm891 = vcmp.lt.s32.totalorder %v890, 2
    %vm892 = vcmp.eq.s32.totalorder %v890, 0
    %v893 = vxor.u32 %v887, 2147483648
    %v894 = vsel %vm892, %v886, %v893
    %vm895 = vcmp.eq.s32.totalorder %v890, 2
    %v896 = vxor.u32 %v886, 2147483648
    %v897 = vsel %vm895, %v896, %v887
    %v898 = vsel %vm891, %v894, %v897
    %v899 = vsel %vm888, nan, %v898
    %v900 = vand.u32 2147483647, %v147
    %vm901 = vcmp.le.f32.partialorder %v900, 0.7853982
    %vm902 = vcmp.lt.s32.totalorder %v147, 0
    %v903 = vand.u32 %v147, 2139095040
    %v904 = vshrl.u32 %v903, 23
    %v905 = vsub.s32 %v904, 127
    %v906 = vand.u32 2147483647, %v147
    %v907 = vand.u32 %v906, 8388607
    %v908 = vor.u32 %v907, 8388608
    %v909 = vsub.s32 0, %v908
    %v910 = vadd.s32 %v905, 1
    %vm911 = vcmp.gt.s32.totalorder %v910, 0
    %v912 = vsel %vm911, %v910, 0
    %v913 = vshrl.u32 %v912, 5
    %v914 = vand.u32 %v912, 31
    %v915 = vsub.s32 32, %v914
    %v916 = vshrl.u32 683565275, %v915
    %v917 = vshll.u32 683565275, %v914
    %v918 = vshrl.u32 2475754826, %v915
    %v919 = vor.u32 %v917, %v918
    %v920 = vshll.u32 2475754826, %v914
    %v921 = vshrl.u32 2131351028, %v915
    %v922 = vor.u32 %v920, %v921
    %v923 = vshll.u32 2131351028, %v914
    %v924 = vshrl.u32 2102212464, %v915
    %v925 = vor.u32 %v923, %v924
    %v926 = vshll.u32 2102212464, %v914
    %v927 = vshrl.u32 920167782, %v915
    %v928 = vor.u32 %v926, %v927
    %v929 = vshll.u32 920167782, %v914
    %v930 = vshrl.u32 1326507024, %v915
    %v931 = vor.u32 %v929, %v930
    %vm932 = vcmp.lt.s32.totalorder %v913, 1
    %vm933 = vcmp.lt.s32.totalorder %v913, 2
    %vm934 = vcmp.lt.s32.totalorder %v913, 3
    %vm935 = vcmp.lt.s32.totalorder %v913, 4
    %v936 = vsel %vm932, %v916, %v919
    %v937 = vsel %vm935, %v925, 2102212464
    %v938 = vsel %vm934, %v922, %v937
    %v939 = vsel %vm933, %v936, %v938
    %v940 = vsel %vm932, %v919, %v922
    %v941 = vsel %vm935, %v928, 920167782
    %v942 = vsel %vm934, %v925, %v941
    %v943 = vsel %vm933, %v940, %v942
    %v944 = vsel %vm932, %v922, %v925
    %v945 = vsel %vm935, %v931, 1326507024
    %v946 = vsel %vm934, %v928, %v945
    %v947 = vsel %vm933, %v944, %v946
    %v948 = vshll.u32 %v908, 8
    %v949 = vmul.u32.u64.compose %v948, %v947
    %v950 = vextract.low.u32 %v949
    %v951 = vextract.high.u32 %v949
    %v952 = vmul.u32.u64.compose %v948, %v943
    %v953 = vextract.low.u32 %v952
    %v954 = vextract.high.u32 %v952
    %v955 = vmul.u32 %v948, %v939
    %v956 = vadd.s32 %v951, %v953
    %vm957 = vc.u32 %v951, %v953
    %v958 = vadd.s32 %v954, 1
    %v959 = vsel %vm957, %v958, %v954
    %v960 = vadd.s32 %v955, %v959
    %v961 = vadd.s32 %v960, 536870912
    %v962 = vshrl.u32 %v961, 30
    %v963 = vshll.u32 %v962, 30
    %v964 = vsub.s32 %v960, %v963
    %vm965 = vcmp.lt.s32.totalorder %v964, 0
    %v966 = vsub.s32 0, %v964
    %v967 = vsel %vm965, %v966, %v964
    %v968 = vclz %v967
    %v969 = vsub.s32 %v968, 2
    %vm970 = vcmp.gt.s32.totalorder 0, %v969
    %v971 = vsel %vm970, 0, %v969
    %v972 = vsub.s32 32, %v971
    %v973 = vshll.u32 %v964, %v971
    %v974 = vshrl.u32 %v956, %v972
    %v975 = vor.u32 %v973, %v974
    %v976 = vsub.s32 4294967266, %v971
    %v977 = vadd.s32 %v976, 127
    %v978 = vshll.u32 %v977, 23
    %v979 = vor.u32 4788187, %v978
    %v980 = vand.u32 2147483647, %v979
    %v982 = vcvt.s32.f32 %v975
    %v983 = vmul.f32 %v982, %v980
    %v984 = vxor.u32 %v983, 2147483648
    %v985 = vsel %vm902, %v984, %v983
    %v986 = vsub.s32 4, %v962
    %v987 = vsel %vm902, %v986, %v962
    %v988 = vsel %vm901, %v147, %v985
    %v989 = vsel %vm901, 0, %v987
    %v990 = vcosq.f32.pop %v988
    %v991 = vsinq.f32.pop %v988
    %vm992 = vweird.f32 %v147
    %v993 = vadd.s32 %v989, 3
    %v994 = vand.u32 %v993, 3
    %vm995 = vcmp.lt.s32.totalorder %v994, 2
    %vm996 = vcmp.eq.s32.totalorder %v994, 0
    %v997 = vxor.u32 %v991, 2147483648
    %v998 = vsel %vm996, %v990, %v997
    %vm999 = vcmp.eq.s32.totalorder %v994, 2
    %v1000 = vxor.u32 %v990, 2147483648
    %v1001 = vsel %vm999, %v1000, %v991
    %v1002 = vsel %vm995, %v998, %v1001
    %v1003 = vsel %vm992, nan, %v1002
    %v1004 = vand.u32 2147483647, %v148
    %vm1005 = vcmp.le.f32.partialorder %v1004, 0.7853982
    %vm1006 = vcmp.lt.s32.totalorder %v148, 0
    %v1007 = vand.u32 %v148, 2139095040
    %v1008 = vshrl.u32 %v1007, 23
    %v1009 = vsub.s32 %v1008, 127
    %v1010 = vand.u32 2147483647, %v148
    %v1011 = vand.u32 %v1010, 8388607
    %v1012 = vor.u32 %v1011, 8388608
    %v1013 = vsub.s32 0, %v1012
    %v1014 = vadd.s32 %v1009, 1
    %vm1015 = vcmp.gt.s32.totalorder %v1014, 0
    %v1016 = vsel %vm1015, %v1014, 0
    %v1017 = vshrl.u32 %v1016, 5
    %v1018 = vand.u32 %v1016, 31
    %v1019 = vsub.s32 32, %v1018
    %v1020 = vshrl.u32 683565275, %v1019
    %v1021 = vshll.u32 683565275, %v1018
    %v1022 = vshrl.u32 2475754826, %v1019
    %v1023 = vor.u32 %v1021, %v1022
    %v1024 = vshll.u32 2475754826, %v1018
    %v1025 = vshrl.u32 2131351028, %v1019
    %v1026 = vor.u32 %v1024, %v1025
    %v1027 = vshll.u32 2131351028, %v1018
    %v1028 = vshrl.u32 2102212464, %v1019
    %v1029 = vor.u32 %v1027, %v1028
    %v1030 = vshll.u32 2102212464, %v1018
    %v1031 = vshrl.u32 920167782, %v1019
    %v1032 = vor.u32 %v1030, %v1031
    %v1033 = vshll.u32 920167782, %v1018
    %v1034 = vshrl.u32 1326507024, %v1019
    %v1035 = vor.u32 %v1033, %v1034
    %vm1036 = vcmp.lt.s32.totalorder %v1017, 1
    %vm1037 = vcmp.lt.s32.totalorder %v1017, 2
    %vm1038 = vcmp.lt.s32.totalorder %v1017, 3
    %vm1039 = vcmp.lt.s32.totalorder %v1017, 4
    %v1040 = vsel %vm1036, %v1020, %v1023
    %v1041 = vsel %vm1039, %v1029, 2102212464
    %v1042 = vsel %vm1038, %v1026, %v1041
    %v1043 = vsel %vm1037, %v1040, %v1042
    %v1044 = vsel %vm1036, %v1023, %v1026
    %v1045 = vsel %vm1039, %v1032, 920167782
    %v1046 = vsel %vm1038, %v1029, %v1045
    %v1047 = vsel %vm1037, %v1044, %v1046
    %v1048 = vsel %vm1036, %v1026, %v1029
    %v1049 = vsel %vm1039, %v1035, 1326507024
    %v1050 = vsel %vm1038, %v1032, %v1049
    %v1051 = vsel %vm1037, %v1048, %v1050
    %v1052 = vshll.u32 %v1012, 8
    %v1053 = vmul.u32.u64.compose %v1052, %v1051
    %v1054 = vextract.low.u32 %v1053
    %v1055 = vextract.high.u32 %v1053
    %v1056 = vmul.u32.u64.compose %v1052, %v1047
    %v1057 = vextract.low.u32 %v1056
    %v1058 = vextract.high.u32 %v1056
    %v1059 = vmul.u32 %v1052, %v1043
    %v1060 = vadd.s32 %v1055, %v1057
    %vm1061 = vc.u32 %v1055, %v1057
    %v1062 = vadd.s32 %v1058, 1
    %v1063 = vsel %vm1061, %v1062, %v1058
    %v1064 = vadd.s32 %v1059, %v1063
    %v1065 = vadd.s32 %v1064, 536870912
    %v1066 = vshrl.u32 %v1065, 30
    %v1067 = vshll.u32 %v1066, 30
    %v1068 = vsub.s32 %v1064, %v1067
    %vm1069 = vcmp.lt.s32.totalorder %v1068, 0
    %v1070 = vsub.s32 0, %v1068
    %v1071 = vsel %vm1069, %v1070, %v1068
    %v1072 = vclz %v1071
    %v1073 = vsub.s32 %v1072, 2
    %vm1074 = vcmp.gt.s32.totalorder 0, %v1073
    %v1075 = vsel %vm1074, 0, %v1073
    %v1076 = vsub.s32 32, %v1075
    %v1077 = vshll.u32 %v1068, %v1075
    %v1078 = vshrl.u32 %v1060, %v1076
    %v1079 = vor.u32 %v1077, %v1078
    %v1080 = vsub.s32 4294967266, %v1075
    %v1081 = vadd.s32 %v1080, 127
    %v1082 = vshll.u32 %v1081, 23
    %v1083 = vor.u32 4788187, %v1082
    %v1084 = vand.u32 2147483647, %v1083
    %v1086 = vcvt.s32.f32 %v1079
    %v1087 = vmul.f32 %v1086, %v1084
    %v1088 = vxor.u32 %v1087, 2147483648
    %v1089 = vsel %vm1006, %v1088, %v1087
    %v1090 = vsub.s32 4, %v1066
    %v1091 = vsel %vm1006, %v1090, %v1066
    %v1092 = vsel %vm1005, %v148, %v1089
    %v1093 = vsel %vm1005, 0, %v1091
    %v1094 = vcosq.f32.pop %v1092
    %v1095 = vsinq.f32.pop %v1092
    %vm1096 = vweird.f32 %v148
    %v1097 = vadd.s32 %v1093, 3
    %v1098 = vand.u32 %v1097, 3
    %vm1099 = vcmp.lt.s32.totalorder %v1098, 2
    %vm1100 = vcmp.eq.s32.totalorder %v1098, 0
    %v1101 = vxor.u32 %v1095, 2147483648
    %v1102 = vsel %vm1100, %v1094, %v1101
    %vm1103 = vcmp.eq.s32.totalorder %v1098, 2
    %v1104 = vxor.u32 %v1094, 2147483648
    %v1105 = vsel %vm1103, %v1104, %v1095
    %v1106 = vsel %vm1099, %v1102, %v1105
    %v1107 = vsel %vm1096, nan, %v1106
    %v1108 = vand.u32 2147483647, %v149
    %vm1109 = vcmp.le.f32.partialorder %v1108, 0.7853982
    %vm1110 = vcmp.lt.s32.totalorder %v149, 0
    %v1111 = vand.u32 %v149, 2139095040
    %v1112 = vshrl.u32 %v1111, 23
    %v1113 = vsub.s32 %v1112, 127
    %v1114 = vand.u32 2147483647, %v149
    %v1115 = vand.u32 %v1114, 8388607
    %v1116 = vor.u32 %v1115, 8388608
    %v1117 = vsub.s32 0, %v1116
    %v1118 = vadd.s32 %v1113, 1
    %vm1119 = vcmp.gt.s32.totalorder %v1118, 0
    %v1120 = vsel %vm1119, %v1118, 0
    %v1121 = vshrl.u32 %v1120, 5
    %v1122 = vand.u32 %v1120, 31
    %v1123 = vsub.s32 32, %v1122
    %v1124 = vshrl.u32 683565275, %v1123
    %v1125 = vshll.u32 683565275, %v1122
    %v1126 = vshrl.u32 2475754826, %v1123
    %v1127 = vor.u32 %v1125, %v1126
    %v1128 = vshll.u32 2475754826, %v1122
    %v1129 = vshrl.u32 2131351028, %v1123
    %v1130 = vor.u32 %v1128, %v1129
    %v1131 = vshll.u32 2131351028, %v1122
    %v1132 = vshrl.u32 2102212464, %v1123
    %v1133 = vor.u32 %v1131, %v1132
    %v1134 = vshll.u32 2102212464, %v1122
    %v1135 = vshrl.u32 920167782, %v1123
    %v1136 = vor.u32 %v1134, %v1135
    %v1137 = vshll.u32 920167782, %v1122
    %v1138 = vshrl.u32 1326507024, %v1123
    %v1139 = vor.u32 %v1137, %v1138
    %vm1140 = vcmp.lt.s32.totalorder %v1121, 1
    %vm1141 = vcmp.lt.s32.totalorder %v1121, 2
    %vm1142 = vcmp.lt.s32.totalorder %v1121, 3
    %vm1143 = vcmp.lt.s32.totalorder %v1121, 4
    %v1144 = vsel %vm1140, %v1124, %v1127
    %v1145 = vsel %vm1143, %v1133, 2102212464
    %v1146 = vsel %vm1142, %v1130, %v1145
    %v1147 = vsel %vm1141, %v1144, %v1146
    %v1148 = vsel %vm1140, %v1127, %v1130
    %v1149 = vsel %vm1143, %v1136, 920167782
    %v1150 = vsel %vm1142, %v1133, %v1149
    %v1151 = vsel %vm1141, %v1148, %v1150
    %v1152 = vsel %vm1140, %v1130, %v1133
    %v1153 = vsel %vm1143, %v1139, 1326507024
    %v1154 = vsel %vm1142, %v1136, %v1153
    %v1155 = vsel %vm1141, %v1152, %v1154
    %v1156 = vshll.u32 %v1116, 8
    %v1157 = vmul.u32.u64.compose %v1156, %v1155
    %v1158 = vextract.low.u32 %v1157
    %v1159 = vextract.high.u32 %v1157
    %v1160 = vmul.u32.u64.compose %v1156, %v1151
    %v1161 = vextract.low.u32 %v1160
    %v1162 = vextract.high.u32 %v1160
    %v1163 = vmul.u32 %v1156, %v1147
    %v1164 = vadd.s32 %v1159, %v1161
    %vm1165 = vc.u32 %v1159, %v1161
    %v1166 = vadd.s32 %v1162, 1
    %v1167 = vsel %vm1165, %v1166, %v1162
    %v1168 = vadd.s32 %v1163, %v1167
    %v1169 = vadd.s32 %v1168, 536870912
    %v1170 = vshrl.u32 %v1169, 30
    %v1171 = vshll.u32 %v1170, 30
    %v1172 = vsub.s32 %v1168, %v1171
    %vm1173 = vcmp.lt.s32.totalorder %v1172, 0
    %v1174 = vsub.s32 0, %v1172
    %v1175 = vsel %vm1173, %v1174, %v1172
    %v1176 = vclz %v1175
    %v1177 = vsub.s32 %v1176, 2
    %vm1178 = vcmp.gt.s32.totalorder 0, %v1177
    %v1179 = vsel %vm1178, 0, %v1177
    %v1180 = vsub.s32 32, %v1179
    %v1181 = vshll.u32 %v1172, %v1179
    %v1182 = vshrl.u32 %v1164, %v1180
    %v1183 = vor.u32 %v1181, %v1182
    %v1184 = vsub.s32 4294967266, %v1179
    %v1185 = vadd.s32 %v1184, 127
    %v1186 = vshll.u32 %v1185, 23
    %v1187 = vor.u32 4788187, %v1186
    %v1188 = vand.u32 2147483647, %v1187
    %v1190 = vcvt.s32.f32 %v1183
    %v1191 = vmul.f32 %v1190, %v1188
    %v1192 = vxor.u32 %v1191, 2147483648
    %v1193 = vsel %vm1110, %v1192, %v1191
    %v1194 = vsub.s32 4, %v1170
    %v1195 = vsel %vm1110, %v1194, %v1170
    %v1196 = vsel %vm1109, %v149, %v1193
    %v1197 = vsel %vm1109, 0, %v1195
    %v1198 = vcosq.f32.pop %v1196
    %v1199 = vsinq.f32.pop %v1196
    %vm1200 = vweird.f32 %v149
    %v1201 = vadd.s32 %v1197, 3
    %v1202 = vand.u32 %v1201, 3
    %vm1203 = vcmp.lt.s32.totalorder %v1202, 2
    %vm1204 = vcmp.eq.s32.totalorder %v1202, 0
    %v1205 = vxor.u32 %v1199, 2147483648
    %v1206 = vsel %vm1204, %v1198, %v1205
    %vm1207 = vcmp.eq.s32.totalorder %v1202, 2
    %v1208 = vxor.u32 %v1198, 2147483648
    %v1209 = vsel %vm1207, %v1208, %v1199
    %v1210 = vsel %vm1203, %v1206, %v1209
    %v1211 = vsel %vm1200, nan, %v1210
    %v1212 = vand.u32 2147483647, %v150
    %vm1213 = vcmp.le.f32.partialorder %v1212, 0.7853982
    %vm1214 = vcmp.lt.s32.totalorder %v150, 0
    %v1215 = vand.u32 %v150, 2139095040
    %v1216 = vshrl.u32 %v1215, 23
    %v1217 = vsub.s32 %v1216, 127
    %v1218 = vand.u32 2147483647, %v150
    %v1219 = vand.u32 %v1218, 8388607
    %v1220 = vor.u32 %v1219, 8388608
    %v1221 = vsub.s32 0, %v1220
    %v1222 = vadd.s32 %v1217, 1
    %vm1223 = vcmp.gt.s32.totalorder %v1222, 0
    %v1224 = vsel %vm1223, %v1222, 0
    %v1225 = vshrl.u32 %v1224, 5
    %v1226 = vand.u32 %v1224, 31
    %v1227 = vsub.s32 32, %v1226
    %v1228 = vshrl.u32 683565275, %v1227
    %v1229 = vshll.u32 683565275, %v1226
    %v1230 = vshrl.u32 2475754826, %v1227
    %v1231 = vor.u32 %v1229, %v1230
    %v1232 = vshll.u32 2475754826, %v1226
    %v1233 = vshrl.u32 2131351028, %v1227
    %v1234 = vor.u32 %v1232, %v1233
    %v1235 = vshll.u32 2131351028, %v1226
    %v1236 = vshrl.u32 2102212464, %v1227
    %v1237 = vor.u32 %v1235, %v1236
    %v1238 = vshll.u32 2102212464, %v1226
    %v1239 = vshrl.u32 920167782, %v1227
    %v1240 = vor.u32 %v1238, %v1239
    %v1241 = vshll.u32 920167782, %v1226
    %v1242 = vshrl.u32 1326507024, %v1227
    %v1243 = vor.u32 %v1241, %v1242
    %vm1244 = vcmp.lt.s32.totalorder %v1225, 1
    %vm1245 = vcmp.lt.s32.totalorder %v1225, 2
    %vm1246 = vcmp.lt.s32.totalorder %v1225, 3
    %vm1247 = vcmp.lt.s32.totalorder %v1225, 4
    %v1248 = vsel %vm1244, %v1228, %v1231
    %v1249 = vsel %vm1247, %v1237, 2102212464
    %v1250 = vsel %vm1246, %v1234, %v1249
    %v1251 = vsel %vm1245, %v1248, %v1250
    %v1252 = vsel %vm1244, %v1231, %v1234
    %v1253 = vsel %vm1247, %v1240, 920167782
    %v1254 = vsel %vm1246, %v1237, %v1253
    %v1255 = vsel %vm1245, %v1252, %v1254
    %v1256 = vsel %vm1244, %v1234, %v1237
    %v1257 = vsel %vm1247, %v1243, 1326507024
    %v1258 = vsel %vm1246, %v1240, %v1257
    %v1259 = vsel %vm1245, %v1256, %v1258
    %v1260 = vshll.u32 %v1220, 8
    %v1261 = vmul.u32.u64.compose %v1260, %v1259
    %v1262 = vextract.low.u32 %v1261
    %v1263 = vextract.high.u32 %v1261
    %v1264 = vmul.u32.u64.compose %v1260, %v1255
    %v1265 = vextract.low.u32 %v1264
    %v1266 = vextract.high.u32 %v1264
    %v1267 = vmul.u32 %v1260, %v1251
    %v1268 = vadd.s32 %v1263, %v1265
    %vm1269 = vc.u32 %v1263, %v1265
    %v1270 = vadd.s32 %v1266, 1
    %v1271 = vsel %vm1269, %v1270, %v1266
    %v1272 = vadd.s32 %v1267, %v1271
    %v1273 = vadd.s32 %v1272, 536870912
    %v1274 = vshrl.u32 %v1273, 30
    %v1275 = vshll.u32 %v1274, 30
    %v1276 = vsub.s32 %v1272, %v1275
    %vm1277 = vcmp.lt.s32.totalorder %v1276, 0
    %v1278 = vsub.s32 0, %v1276
    %v1279 = vsel %vm1277, %v1278, %v1276
    %v1280 = vclz %v1279
    %v1281 = vsub.s32 %v1280, 2
    %vm1282 = vcmp.gt.s32.totalorder 0, %v1281
    %v1283 = vsel %vm1282, 0, %v1281
    %v1284 = vsub.s32 32, %v1283
    %v1285 = vshll.u32 %v1276, %v1283
    %v1286 = vshrl.u32 %v1268, %v1284
    %v1287 = vor.u32 %v1285, %v1286
    %v1288 = vsub.s32 4294967266, %v1283
    %v1289 = vadd.s32 %v1288, 127
    %v1290 = vshll.u32 %v1289, 23
    %v1291 = vor.u32 4788187, %v1290
    %v1292 = vand.u32 2147483647, %v1291
    %v1294 = vcvt.s32.f32 %v1287
    %v1295 = vmul.f32 %v1294, %v1292
    %v1296 = vxor.u32 %v1295, 2147483648
    %v1297 = vsel %vm1214, %v1296, %v1295
    %v1298 = vsub.s32 4, %v1274
    %v1299 = vsel %vm1214, %v1298, %v1274
    %v1300 = vsel %vm1213, %v150, %v1297
    %v1301 = vsel %vm1213, 0, %v1299
    %v1302 = vcosq.f32.pop %v1300
    %v1303 = vsinq.f32.pop %v1300
    %vm1304 = vweird.f32 %v150
    %v1305 = vadd.s32 %v1301, 3
    %v1306 = vand.u32 %v1305, 3
    %vm1307 = vcmp.lt.s32.totalorder %v1306, 2
    %vm1308 = vcmp.eq.s32.totalorder %v1306, 0
    %v1309 = vxor.u32 %v1303, 2147483648
    %v1310 = vsel %vm1308, %v1302, %v1309
    %vm1311 = vcmp.eq.s32.totalorder %v1306, 2
    %v1312 = vxor.u32 %v1302, 2147483648
    %v1313 = vsel %vm1311, %v1312, %v1303
    %v1314 = vsel %vm1307, %v1310, %v1313
    %v1315 = vsel %vm1304, nan, %v1314
    %v1316 = vand.u32 2147483647, %v151
    %vm1317 = vcmp.le.f32.partialorder %v1316, 0.7853982
    %vm1318 = vcmp.lt.s32.totalorder %v151, 0
    %v1319 = vand.u32 %v151, 2139095040
    %v1320 = vshrl.u32 %v1319, 23
    %v1321 = vsub.s32 %v1320, 127
    %v1322 = vand.u32 2147483647, %v151
    %v1323 = vand.u32 %v1322, 8388607
    %v1324 = vor.u32 %v1323, 8388608
    %v1325 = vsub.s32 0, %v1324
    %v1326 = vadd.s32 %v1321, 1
    %vm1327 = vcmp.gt.s32.totalorder %v1326, 0
    %v1328 = vsel %vm1327, %v1326, 0
    %v1329 = vshrl.u32 %v1328, 5
    %v1330 = vand.u32 %v1328, 31
    %v1331 = vsub.s32 32, %v1330
    %v1332 = vshrl.u32 683565275, %v1331
    %v1333 = vshll.u32 683565275, %v1330
    %v1334 = vshrl.u32 2475754826, %v1331
    %v1335 = vor.u32 %v1333, %v1334
    %v1336 = vshll.u32 2475754826, %v1330
    %v1337 = vshrl.u32 2131351028, %v1331
    %v1338 = vor.u32 %v1336, %v1337
    %v1339 = vshll.u32 2131351028, %v1330
    %v1340 = vshrl.u32 2102212464, %v1331
    %v1341 = vor.u32 %v1339, %v1340
    %v1342 = vshll.u32 2102212464, %v1330
    %v1343 = vshrl.u32 920167782, %v1331
    %v1344 = vor.u32 %v1342, %v1343
    %v1345 = vshll.u32 920167782, %v1330
    %v1346 = vshrl.u32 1326507024, %v1331
    %v1347 = vor.u32 %v1345, %v1346
    %vm1348 = vcmp.lt.s32.totalorder %v1329, 1
    %vm1349 = vcmp.lt.s32.totalorder %v1329, 2
    %vm1350 = vcmp.lt.s32.totalorder %v1329, 3
    %vm1351 = vcmp.lt.s32.totalorder %v1329, 4
    %v1352 = vsel %vm1348, %v1332, %v1335
    %v1353 = vsel %vm1351, %v1341, 2102212464
    %v1354 = vsel %vm1350, %v1338, %v1353
    %v1355 = vsel %vm1349, %v1352, %v1354
    %v1356 = vsel %vm1348, %v1335, %v1338
    %v1357 = vsel %vm1351, %v1344, 920167782
    %v1358 = vsel %vm1350, %v1341, %v1357
    %v1359 = vsel %vm1349, %v1356, %v1358
    %v1360 = vsel %vm1348, %v1338, %v1341
    %v1361 = vsel %vm1351, %v1347, 1326507024
    %v1362 = vsel %vm1350, %v1344, %v1361
    %v1363 = vsel %vm1349, %v1360, %v1362
    %v1364 = vshll.u32 %v1324, 8
    %v1365 = vmul.u32.u64.compose %v1364, %v1363
    %v1366 = vextract.low.u32 %v1365
    %v1367 = vextract.high.u32 %v1365
    %v1368 = vmul.u32.u64.compose %v1364, %v1359
    %v1369 = vextract.low.u32 %v1368
    %v1370 = vextract.high.u32 %v1368
    %v1371 = vmul.u32 %v1364, %v1355
    %v1372 = vadd.s32 %v1367, %v1369
    %vm1373 = vc.u32 %v1367, %v1369
    %v1374 = vadd.s32 %v1370, 1
    %v1375 = vsel %vm1373, %v1374, %v1370
    %v1376 = vadd.s32 %v1371, %v1375
    %v1377 = vadd.s32 %v1376, 536870912
    %v1378 = vshrl.u32 %v1377, 30
    %v1379 = vshll.u32 %v1378, 30
    %v1380 = vsub.s32 %v1376, %v1379
    %vm1381 = vcmp.lt.s32.totalorder %v1380, 0
    %v1382 = vsub.s32 0, %v1380
    %v1383 = vsel %vm1381, %v1382, %v1380
    %v1384 = vclz %v1383
    %v1385 = vsub.s32 %v1384, 2
    %vm1386 = vcmp.gt.s32.totalorder 0, %v1385
    %v1387 = vsel %vm1386, 0, %v1385
    %v1388 = vsub.s32 32, %v1387
    %v1389 = vshll.u32 %v1380, %v1387
    %v1390 = vshrl.u32 %v1372, %v1388
    %v1391 = vor.u32 %v1389, %v1390
    %v1392 = vsub.s32 4294967266, %v1387
    %v1393 = vadd.s32 %v1392, 127
    %v1394 = vshll.u32 %v1393, 23
    %v1395 = vor.u32 4788187, %v1394
    %v1396 = vand.u32 2147483647, %v1395
    %v1398 = vcvt.s32.f32 %v1391
    %v1399 = vmul.f32 %v1398, %v1396
    %v1400 = vxor.u32 %v1399, 2147483648
    %v1401 = vsel %vm1318, %v1400, %v1399
    %v1402 = vsub.s32 4, %v1378
    %v1403 = vsel %vm1318, %v1402, %v1378
    %v1404 = vsel %vm1317, %v151, %v1401
    %v1405 = vsel %vm1317, 0, %v1403
    %v1406 = vcosq.f32.pop %v1404
    %v1407 = vsinq.f32.pop %v1404
    %vm1408 = vweird.f32 %v151
    %v1409 = vadd.s32 %v1405, 3
    %v1410 = vand.u32 %v1409, 3
    %vm1411 = vcmp.lt.s32.totalorder %v1410, 2
    %vm1412 = vcmp.eq.s32.totalorder %v1410, 0
    %v1413 = vxor.u32 %v1407, 2147483648
    %v1414 = vsel %vm1412, %v1406, %v1413
    %vm1415 = vcmp.eq.s32.totalorder %v1410, 2
    %v1416 = vxor.u32 %v1406, 2147483648
    %v1417 = vsel %vm1415, %v1416, %v1407
    %v1418 = vsel %vm1411, %v1414, %v1417
    %v1419 = vsel %vm1408, nan, %v1418
    %v1420 = vand.u32 2147483647, %v152
    %vm1421 = vcmp.le.f32.partialorder %v1420, 0.7853982
    %vm1422 = vcmp.lt.s32.totalorder %v152, 0
    %v1423 = vand.u32 %v152, 2139095040
    %v1424 = vshrl.u32 %v1423, 23
    %v1425 = vsub.s32 %v1424, 127
    %v1426 = vand.u32 2147483647, %v152
    %v1427 = vand.u32 %v1426, 8388607
    %v1428 = vor.u32 %v1427, 8388608
    %v1429 = vsub.s32 0, %v1428
    %v1430 = vadd.s32 %v1425, 1
    %vm1431 = vcmp.gt.s32.totalorder %v1430, 0
    %v1432 = vsel %vm1431, %v1430, 0
    %v1433 = vshrl.u32 %v1432, 5
    %v1434 = vand.u32 %v1432, 31
    %v1435 = vsub.s32 32, %v1434
    %v1436 = vshrl.u32 683565275, %v1435
    %v1437 = vshll.u32 683565275, %v1434
    %v1438 = vshrl.u32 2475754826, %v1435
    %v1439 = vor.u32 %v1437, %v1438
    %v1440 = vshll.u32 2475754826, %v1434
    %v1441 = vshrl.u32 2131351028, %v1435
    %v1442 = vor.u32 %v1440, %v1441
    %v1443 = vshll.u32 2131351028, %v1434
    %v1444 = vshrl.u32 2102212464, %v1435
    %v1445 = vor.u32 %v1443, %v1444
    %v1446 = vshll.u32 2102212464, %v1434
    %v1447 = vshrl.u32 920167782, %v1435
    %v1448 = vor.u32 %v1446, %v1447
    %v1449 = vshll.u32 920167782, %v1434
    %v1450 = vshrl.u32 1326507024, %v1435
    %v1451 = vor.u32 %v1449, %v1450
    %vm1452 = vcmp.lt.s32.totalorder %v1433, 1
    %vm1453 = vcmp.lt.s32.totalorder %v1433, 2
    %vm1454 = vcmp.lt.s32.totalorder %v1433, 3
    %vm1455 = vcmp.lt.s32.totalorder %v1433, 4
    %v1456 = vsel %vm1452, %v1436, %v1439
    %v1457 = vsel %vm1455, %v1445, 2102212464
    %v1458 = vsel %vm1454, %v1442, %v1457
    %v1459 = vsel %vm1453, %v1456, %v1458
    %v1460 = vsel %vm1452, %v1439, %v1442
    %v1461 = vsel %vm1455, %v1448, 920167782
    %v1462 = vsel %vm1454, %v1445, %v1461
    %v1463 = vsel %vm1453, %v1460, %v1462
    %v1464 = vsel %vm1452, %v1442, %v1445
    %v1465 = vsel %vm1455, %v1451, 1326507024
    %v1466 = vsel %vm1454, %v1448, %v1465
    %v1467 = vsel %vm1453, %v1464, %v1466
    %v1468 = vshll.u32 %v1428, 8
    %v1469 = vmul.u32.u64.compose %v1468, %v1467
    %v1470 = vextract.low.u32 %v1469
    %v1471 = vextract.high.u32 %v1469
    %v1472 = vmul.u32.u64.compose %v1468, %v1463
    %v1473 = vextract.low.u32 %v1472
    %v1474 = vextract.high.u32 %v1472
    %v1475 = vmul.u32 %v1468, %v1459
    %v1476 = vadd.s32 %v1471, %v1473
    %vm1477 = vc.u32 %v1471, %v1473
    %v1478 = vadd.s32 %v1474, 1
    %v1479 = vsel %vm1477, %v1478, %v1474
    %v1480 = vadd.s32 %v1475, %v1479
    %v1481 = vadd.s32 %v1480, 536870912
    %v1482 = vshrl.u32 %v1481, 30
    %v1483 = vshll.u32 %v1482, 30
    %v1484 = vsub.s32 %v1480, %v1483
    %vm1485 = vcmp.lt.s32.totalorder %v1484, 0
    %v1486 = vsub.s32 0, %v1484
    %v1487 = vsel %vm1485, %v1486, %v1484
    %v1488 = vclz %v1487
    %v1489 = vsub.s32 %v1488, 2
    %vm1490 = vcmp.gt.s32.totalorder 0, %v1489
    %v1491 = vsel %vm1490, 0, %v1489
    %v1492 = vsub.s32 32, %v1491
    %v1493 = vshll.u32 %v1484, %v1491
    %v1494 = vshrl.u32 %v1476, %v1492
    %v1495 = vor.u32 %v1493, %v1494
    %v1496 = vsub.s32 4294967266, %v1491
    %v1497 = vadd.s32 %v1496, 127
    %v1498 = vshll.u32 %v1497, 23
    %v1499 = vor.u32 4788187, %v1498
    %v1500 = vand.u32 2147483647, %v1499
    %v1502 = vcvt.s32.f32 %v1495
    %v1503 = vmul.f32 %v1502, %v1500
    %v1504 = vxor.u32 %v1503, 2147483648
    %v1505 = vsel %vm1422, %v1504, %v1503
    %v1506 = vsub.s32 4, %v1482
    %v1507 = vsel %vm1422, %v1506, %v1482
    %v1508 = vsel %vm1421, %v152, %v1505
    %v1509 = vsel %vm1421, 0, %v1507
    %v1510 = vcosq.f32.pop %v1508
    %v1511 = vsinq.f32.pop %v1508
    %vm1512 = vweird.f32 %v152
    %v1513 = vadd.s32 %v1509, 3
    %v1514 = vand.u32 %v1513, 3
    %vm1515 = vcmp.lt.s32.totalorder %v1514, 2
    %vm1516 = vcmp.eq.s32.totalorder %v1514, 0
    %v1517 = vxor.u32 %v1511, 2147483648
    %v1518 = vsel %vm1516, %v1510, %v1517
    %vm1519 = vcmp.eq.s32.totalorder %v1514, 2
    %v1520 = vxor.u32 %v1510, 2147483648
    %v1521 = vsel %vm1519, %v1520, %v1511
    %v1522 = vsel %vm1515, %v1518, %v1521
    %v1523 = vsel %vm1512, nan, %v1522
    %v1524 = vand.u32 2147483647, %v153
    %vm1525 = vcmp.le.f32.partialorder %v1524, 0.7853982
    %vm1526 = vcmp.lt.s32.totalorder %v153, 0
    %v1527 = vand.u32 %v153, 2139095040
    %v1528 = vshrl.u32 %v1527, 23
    %v1529 = vsub.s32 %v1528, 127
    %v1530 = vand.u32 2147483647, %v153
    %v1531 = vand.u32 %v1530, 8388607
    %v1532 = vor.u32 %v1531, 8388608
    %v1533 = vsub.s32 0, %v1532
    %v1534 = vadd.s32 %v1529, 1
    %vm1535 = vcmp.gt.s32.totalorder %v1534, 0
    %v1536 = vsel %vm1535, %v1534, 0
    %v1537 = vshrl.u32 %v1536, 5
    %v1538 = vand.u32 %v1536, 31
    %v1539 = vsub.s32 32, %v1538
    %v1540 = vshrl.u32 683565275, %v1539
    %v1541 = vshll.u32 683565275, %v1538
    %v1542 = vshrl.u32 2475754826, %v1539
    %v1543 = vor.u32 %v1541, %v1542
    %v1544 = vshll.u32 2475754826, %v1538
    %v1545 = vshrl.u32 2131351028, %v1539
    %v1546 = vor.u32 %v1544, %v1545
    %v1547 = vshll.u32 2131351028, %v1538
    %v1548 = vshrl.u32 2102212464, %v1539
    %v1549 = vor.u32 %v1547, %v1548
    %v1550 = vshll.u32 2102212464, %v1538
    %v1551 = vshrl.u32 920167782, %v1539
    %v1552 = vor.u32 %v1550, %v1551
    %v1553 = vshll.u32 920167782, %v1538
    %v1554 = vshrl.u32 1326507024, %v1539
    %v1555 = vor.u32 %v1553, %v1554
    %vm1556 = vcmp.lt.s32.totalorder %v1537, 1
    %vm1557 = vcmp.lt.s32.totalorder %v1537, 2
    %vm1558 = vcmp.lt.s32.totalorder %v1537, 3
    %vm1559 = vcmp.lt.s32.totalorder %v1537, 4
    %v1560 = vsel %vm1556, %v1540, %v1543
    %v1561 = vsel %vm1559, %v1549, 2102212464
    %v1562 = vsel %vm1558, %v1546, %v1561
    %v1563 = vsel %vm1557, %v1560, %v1562
    %v1564 = vsel %vm1556, %v1543, %v1546
    %v1565 = vsel %vm1559, %v1552, 920167782
    %v1566 = vsel %vm1558, %v1549, %v1565
    %v1567 = vsel %vm1557, %v1564, %v1566
    %v1568 = vsel %vm1556, %v1546, %v1549
    %v1569 = vsel %vm1559, %v1555, 1326507024
    %v1570 = vsel %vm1558, %v1552, %v1569
    %v1571 = vsel %vm1557, %v1568, %v1570
    %v1572 = vshll.u32 %v1532, 8
    %v1573 = vmul.u32.u64.compose %v1572, %v1571
    %v1574 = vextract.low.u32 %v1573
    %v1575 = vextract.high.u32 %v1573
    %v1576 = vmul.u32.u64.compose %v1572, %v1567
    %v1577 = vextract.low.u32 %v1576
    %v1578 = vextract.high.u32 %v1576
    %v1579 = vmul.u32 %v1572, %v1563
    %v1580 = vadd.s32 %v1575, %v1577
    %vm1581 = vc.u32 %v1575, %v1577
    %v1582 = vadd.s32 %v1578, 1
    %v1583 = vsel %vm1581, %v1582, %v1578
    %v1584 = vadd.s32 %v1579, %v1583
    %v1585 = vadd.s32 %v1584, 536870912
    %v1586 = vshrl.u32 %v1585, 30
    %v1587 = vshll.u32 %v1586, 30
    %v1588 = vsub.s32 %v1584, %v1587
    %vm1589 = vcmp.lt.s32.totalorder %v1588, 0
    %v1590 = vsub.s32 0, %v1588
    %v1591 = vsel %vm1589, %v1590, %v1588
    %v1592 = vclz %v1591
    %v1593 = vsub.s32 %v1592, 2
    %vm1594 = vcmp.gt.s32.totalorder 0, %v1593
    %v1595 = vsel %vm1594, 0, %v1593
    %v1596 = vsub.s32 32, %v1595
    %v1597 = vshll.u32 %v1588, %v1595
    %v1598 = vshrl.u32 %v1580, %v1596
    %v1599 = vor.u32 %v1597, %v1598
    %v1600 = vsub.s32 4294967266, %v1595
    %v1601 = vadd.s32 %v1600, 127
    %v1602 = vshll.u32 %v1601, 23
    %v1603 = vor.u32 4788187, %v1602
    %v1604 = vand.u32 2147483647, %v1603
    %v1606 = vcvt.s32.f32 %v1599
    %v1607 = vmul.f32 %v1606, %v1604
    %v1608 = vxor.u32 %v1607, 2147483648
    %v1609 = vsel %vm1526, %v1608, %v1607
    %v1610 = vsub.s32 4, %v1586
    %v1611 = vsel %vm1526, %v1610, %v1586
    %v1612 = vsel %vm1525, %v153, %v1609
    %v1613 = vsel %vm1525, 0, %v1611
    %v1614 = vcosq.f32.pop %v1612
    %v1615 = vsinq.f32.pop %v1612
    %vm1616 = vweird.f32 %v153
    %v1617 = vadd.s32 %v1613, 3
    %v1618 = vand.u32 %v1617, 3
    %vm1619 = vcmp.lt.s32.totalorder %v1618, 2
    %vm1620 = vcmp.eq.s32.totalorder %v1618, 0
    %v1621 = vxor.u32 %v1615, 2147483648
    %v1622 = vsel %vm1620, %v1614, %v1621
    %vm1623 = vcmp.eq.s32.totalorder %v1618, 2
    %v1624 = vxor.u32 %v1614, 2147483648
    %v1625 = vsel %vm1623, %v1624, %v1615
    %v1626 = vsel %vm1619, %v1622, %v1625
    %v1627 = vsel %vm1616, nan, %v1626
    %v1628 = vand.u32 2147483647, %v154
    %vm1629 = vcmp.le.f32.partialorder %v1628, 0.7853982
    %vm1630 = vcmp.lt.s32.totalorder %v154, 0
    %v1631 = vand.u32 %v154, 2139095040
    %v1632 = vshrl.u32 %v1631, 23
    %v1633 = vsub.s32 %v1632, 127
    %v1634 = vand.u32 2147483647, %v154
    %v1635 = vand.u32 %v1634, 8388607
    %v1636 = vor.u32 %v1635, 8388608
    %v1637 = vsub.s32 0, %v1636
    %v1638 = vadd.s32 %v1633, 1
    %vm1639 = vcmp.gt.s32.totalorder %v1638, 0
    %v1640 = vsel %vm1639, %v1638, 0
    %v1641 = vshrl.u32 %v1640, 5
    %v1642 = vand.u32 %v1640, 31
    %v1643 = vsub.s32 32, %v1642
    %v1644 = vshrl.u32 683565275, %v1643
    %v1645 = vshll.u32 683565275, %v1642
    %v1646 = vshrl.u32 2475754826, %v1643
    %v1647 = vor.u32 %v1645, %v1646
    %v1648 = vshll.u32 2475754826, %v1642
    %v1649 = vshrl.u32 2131351028, %v1643
    %v1650 = vor.u32 %v1648, %v1649
    %v1651 = vshll.u32 2131351028, %v1642
    %v1652 = vshrl.u32 2102212464, %v1643
    %v1653 = vor.u32 %v1651, %v1652
    %v1654 = vshll.u32 2102212464, %v1642
    %v1655 = vshrl.u32 920167782, %v1643
    %v1656 = vor.u32 %v1654, %v1655
    %v1657 = vshll.u32 920167782, %v1642
    %v1658 = vshrl.u32 1326507024, %v1643
    %v1659 = vor.u32 %v1657, %v1658
    %vm1660 = vcmp.lt.s32.totalorder %v1641, 1
    %vm1661 = vcmp.lt.s32.totalorder %v1641, 2
    %vm1662 = vcmp.lt.s32.totalorder %v1641, 3
    %vm1663 = vcmp.lt.s32.totalorder %v1641, 4
    %v1664 = vsel %vm1660, %v1644, %v1647
    %v1665 = vsel %vm1663, %v1653, 2102212464
    %v1666 = vsel %vm1662, %v1650, %v1665
    %v1667 = vsel %vm1661, %v1664, %v1666
    %v1668 = vsel %vm1660, %v1647, %v1650
    %v1669 = vsel %vm1663, %v1656, 920167782
    %v1670 = vsel %vm1662, %v1653, %v1669
    %v1671 = vsel %vm1661, %v1668, %v1670
    %v1672 = vsel %vm1660, %v1650, %v1653
    %v1673 = vsel %vm1663, %v1659, 1326507024
    %v1674 = vsel %vm1662, %v1656, %v1673
    %v1675 = vsel %vm1661, %v1672, %v1674
    %v1676 = vshll.u32 %v1636, 8
    %v1677 = vmul.u32.u64.compose %v1676, %v1675
    %v1678 = vextract.low.u32 %v1677
    %v1679 = vextract.high.u32 %v1677
    %v1680 = vmul.u32.u64.compose %v1676, %v1671
    %v1681 = vextract.low.u32 %v1680
    %v1682 = vextract.high.u32 %v1680
    %v1683 = vmul.u32 %v1676, %v1667
    %v1684 = vadd.s32 %v1679, %v1681
    %vm1685 = vc.u32 %v1679, %v1681
    %v1686 = vadd.s32 %v1682, 1
    %v1687 = vsel %vm1685, %v1686, %v1682
    %v1688 = vadd.s32 %v1683, %v1687
    %v1689 = vadd.s32 %v1688, 536870912
    %v1690 = vshrl.u32 %v1689, 30
    %v1691 = vshll.u32 %v1690, 30
    %v1692 = vsub.s32 %v1688, %v1691
    %vm1693 = vcmp.lt.s32.totalorder %v1692, 0
    %v1694 = vsub.s32 0, %v1692
    %v1695 = vsel %vm1693, %v1694, %v1692
    %v1696 = vclz %v1695
    %v1697 = vsub.s32 %v1696, 2
    %vm1698 = vcmp.gt.s32.totalorder 0, %v1697
    %v1699 = vsel %vm1698, 0, %v1697
    %v1700 = vsub.s32 32, %v1699
    %v1701 = vshll.u32 %v1692, %v1699
    %v1702 = vshrl.u32 %v1684, %v1700
    %v1703 = vor.u32 %v1701, %v1702
    %v1704 = vsub.s32 4294967266, %v1699
    %v1705 = vadd.s32 %v1704, 127
    %v1706 = vshll.u32 %v1705, 23
    %v1707 = vor.u32 4788187, %v1706
    %v1708 = vand.u32 2147483647, %v1707
    %v1710 = vcvt.s32.f32 %v1703
    %v1711 = vmul.f32 %v1710, %v1708
    %v1712 = vxor.u32 %v1711, 2147483648
    %v1713 = vsel %vm1630, %v1712, %v1711
    %v1714 = vsub.s32 4, %v1690
    %v1715 = vsel %vm1630, %v1714, %v1690
    %v1716 = vsel %vm1629, %v154, %v1713
    %v1717 = vsel %vm1629, 0, %v1715
    %v1718 = vcosq.f32.pop %v1716
    %v1719 = vsinq.f32.pop %v1716
    %vm1720 = vweird.f32 %v154
    %v1721 = vadd.s32 %v1717, 3
    %v1722 = vand.u32 %v1721, 3
    %vm1723 = vcmp.lt.s32.totalorder %v1722, 2
    %vm1724 = vcmp.eq.s32.totalorder %v1722, 0
    %v1725 = vxor.u32 %v1719, 2147483648
    %v1726 = vsel %vm1724, %v1718, %v1725
    %vm1727 = vcmp.eq.s32.totalorder %v1722, 2
    %v1728 = vxor.u32 %v1718, 2147483648
    %v1729 = vsel %vm1727, %v1728, %v1719
    %v1730 = vsel %vm1723, %v1726, %v1729
    %v1731 = vsel %vm1720, nan, %v1730
    %v1732 = vand.u32 2147483647, %v155
    %vm1733 = vcmp.le.f32.partialorder %v1732, 0.7853982
    %vm1734 = vcmp.lt.s32.totalorder %v155, 0
    %v1735 = vand.u32 %v155, 2139095040
    %v1736 = vshrl.u32 %v1735, 23
    %v1737 = vsub.s32 %v1736, 127
    %v1738 = vand.u32 2147483647, %v155
    %v1739 = vand.u32 %v1738, 8388607
    %v1740 = vor.u32 %v1739, 8388608
    %v1741 = vsub.s32 0, %v1740
    %v1742 = vadd.s32 %v1737, 1
    %vm1743 = vcmp.gt.s32.totalorder %v1742, 0
    %v1744 = vsel %vm1743, %v1742, 0
    %v1745 = vshrl.u32 %v1744, 5
    %v1746 = vand.u32 %v1744, 31
    %v1747 = vsub.s32 32, %v1746
    %v1748 = vshrl.u32 683565275, %v1747
    %v1749 = vshll.u32 683565275, %v1746
    %v1750 = vshrl.u32 2475754826, %v1747
    %v1751 = vor.u32 %v1749, %v1750
    %v1752 = vshll.u32 2475754826, %v1746
    %v1753 = vshrl.u32 2131351028, %v1747
    %v1754 = vor.u32 %v1752, %v1753
    %v1755 = vshll.u32 2131351028, %v1746
    %v1756 = vshrl.u32 2102212464, %v1747
    %v1757 = vor.u32 %v1755, %v1756
    %v1758 = vshll.u32 2102212464, %v1746
    %v1759 = vshrl.u32 920167782, %v1747
    %v1760 = vor.u32 %v1758, %v1759
    %v1761 = vshll.u32 920167782, %v1746
    %v1762 = vshrl.u32 1326507024, %v1747
    %v1763 = vor.u32 %v1761, %v1762
    %vm1764 = vcmp.lt.s32.totalorder %v1745, 1
    %vm1765 = vcmp.lt.s32.totalorder %v1745, 2
    %vm1766 = vcmp.lt.s32.totalorder %v1745, 3
    %vm1767 = vcmp.lt.s32.totalorder %v1745, 4
    %v1768 = vsel %vm1764, %v1748, %v1751
    %v1769 = vsel %vm1767, %v1757, 2102212464
    %v1770 = vsel %vm1766, %v1754, %v1769
    %v1771 = vsel %vm1765, %v1768, %v1770
    %v1772 = vsel %vm1764, %v1751, %v1754
    %v1773 = vsel %vm1767, %v1760, 920167782
    %v1774 = vsel %vm1766, %v1757, %v1773
    %v1775 = vsel %vm1765, %v1772, %v1774
    %v1776 = vsel %vm1764, %v1754, %v1757
    %v1777 = vsel %vm1767, %v1763, 1326507024
    %v1778 = vsel %vm1766, %v1760, %v1777
    %v1779 = vsel %vm1765, %v1776, %v1778
    %v1780 = vshll.u32 %v1740, 8
    %v1781 = vmul.u32.u64.compose %v1780, %v1779
    %v1782 = vextract.low.u32 %v1781
    %v1783 = vextract.high.u32 %v1781
    %v1784 = vmul.u32.u64.compose %v1780, %v1775
    %v1785 = vextract.low.u32 %v1784
    %v1786 = vextract.high.u32 %v1784
    %v1787 = vmul.u32 %v1780, %v1771
    %v1788 = vadd.s32 %v1783, %v1785
    %vm1789 = vc.u32 %v1783, %v1785
    %v1790 = vadd.s32 %v1786, 1
    %v1791 = vsel %vm1789, %v1790, %v1786
    %v1792 = vadd.s32 %v1787, %v1791
    %v1793 = vadd.s32 %v1792, 536870912
    %v1794 = vshrl.u32 %v1793, 30
    %v1795 = vshll.u32 %v1794, 30
    %v1796 = vsub.s32 %v1792, %v1795
    %vm1797 = vcmp.lt.s32.totalorder %v1796, 0
    %v1798 = vsub.s32 0, %v1796
    %v1799 = vsel %vm1797, %v1798, %v1796
    %v1800 = vclz %v1799
    %v1801 = vsub.s32 %v1800, 2
    %vm1802 = vcmp.gt.s32.totalorder 0, %v1801
    %v1803 = vsel %vm1802, 0, %v1801
    %v1804 = vsub.s32 32, %v1803
    %v1805 = vshll.u32 %v1796, %v1803
    %v1806 = vshrl.u32 %v1788, %v1804
    %v1807 = vor.u32 %v1805, %v1806
    %v1808 = vsub.s32 4294967266, %v1803
    %v1809 = vadd.s32 %v1808, 127
    %v1810 = vshll.u32 %v1809, 23
    %v1811 = vor.u32 4788187, %v1810
    %v1812 = vand.u32 2147483647, %v1811
    %v1814 = vcvt.s32.f32 %v1807
    %v1815 = vmul.f32 %v1814, %v1812
    %v1816 = vxor.u32 %v1815, 2147483648
    %v1817 = vsel %vm1734, %v1816, %v1815
    %v1818 = vsub.s32 4, %v1794
    %v1819 = vsel %vm1734, %v1818, %v1794
    %v1820 = vsel %vm1733, %v155, %v1817
    %v1821 = vsel %vm1733, 0, %v1819
    %v1822 = vcosq.f32.pop %v1820
    %v1823 = vsinq.f32.pop %v1820
    %vm1824 = vweird.f32 %v155
    %v1825 = vadd.s32 %v1821, 3
    %v1826 = vand.u32 %v1825, 3
    %vm1827 = vcmp.lt.s32.totalorder %v1826, 2
    %vm1828 = vcmp.eq.s32.totalorder %v1826, 0
    %v1829 = vxor.u32 %v1823, 2147483648
    %v1830 = vsel %vm1828, %v1822, %v1829
    %vm1831 = vcmp.eq.s32.totalorder %v1826, 2
    %v1832 = vxor.u32 %v1822, 2147483648
    %v1833 = vsel %vm1831, %v1832, %v1823
    %v1834 = vsel %vm1827, %v1830, %v1833
    %v1835 = vsel %vm1824, nan, %v1834
    %v1836 = vand.u32 2147483647, %v156
    %vm1837 = vcmp.le.f32.partialorder %v1836, 0.7853982
    %vm1838 = vcmp.lt.s32.totalorder %v156, 0
    %v1839 = vand.u32 %v156, 2139095040
    %v1840 = vshrl.u32 %v1839, 23
    %v1841 = vsub.s32 %v1840, 127
    %v1842 = vand.u32 2147483647, %v156
    %v1843 = vand.u32 %v1842, 8388607
    %v1844 = vor.u32 %v1843, 8388608
    %v1845 = vsub.s32 0, %v1844
    %v1846 = vadd.s32 %v1841, 1
    %vm1847 = vcmp.gt.s32.totalorder %v1846, 0
    %v1848 = vsel %vm1847, %v1846, 0
    %v1849 = vshrl.u32 %v1848, 5
    %v1850 = vand.u32 %v1848, 31
    %v1851 = vsub.s32 32, %v1850
    %v1852 = vshrl.u32 683565275, %v1851
    %v1853 = vshll.u32 683565275, %v1850
    %v1854 = vshrl.u32 2475754826, %v1851
    %v1855 = vor.u32 %v1853, %v1854
    %v1856 = vshll.u32 2475754826, %v1850
    %v1857 = vshrl.u32 2131351028, %v1851
    %v1858 = vor.u32 %v1856, %v1857
    %v1859 = vshll.u32 2131351028, %v1850
    %v1860 = vshrl.u32 2102212464, %v1851
    %v1861 = vor.u32 %v1859, %v1860
    %v1862 = vshll.u32 2102212464, %v1850
    %v1863 = vshrl.u32 920167782, %v1851
    %v1864 = vor.u32 %v1862, %v1863
    %v1865 = vshll.u32 920167782, %v1850
    %v1866 = vshrl.u32 1326507024, %v1851
    %v1867 = vor.u32 %v1865, %v1866
    %vm1868 = vcmp.lt.s32.totalorder %v1849, 1
    %vm1869 = vcmp.lt.s32.totalorder %v1849, 2
    %vm1870 = vcmp.lt.s32.totalorder %v1849, 3
    %vm1871 = vcmp.lt.s32.totalorder %v1849, 4
    %v1872 = vsel %vm1868, %v1852, %v1855
    %v1873 = vsel %vm1871, %v1861, 2102212464
    %v1874 = vsel %vm1870, %v1858, %v1873
    %v1875 = vsel %vm1869, %v1872, %v1874
    %v1876 = vsel %vm1868, %v1855, %v1858
    %v1877 = vsel %vm1871, %v1864, 920167782
    %v1878 = vsel %vm1870, %v1861, %v1877
    %v1879 = vsel %vm1869, %v1876, %v1878
    %v1880 = vsel %vm1868, %v1858, %v1861
    %v1881 = vsel %vm1871, %v1867, 1326507024
    %v1882 = vsel %vm1870, %v1864, %v1881
    %v1883 = vsel %vm1869, %v1880, %v1882
    %v1884 = vshll.u32 %v1844, 8
    %v1885 = vmul.u32.u64.compose %v1884, %v1883
    %v1886 = vextract.low.u32 %v1885
    %v1887 = vextract.high.u32 %v1885
    %v1888 = vmul.u32.u64.compose %v1884, %v1879
    %v1889 = vextract.low.u32 %v1888
    %v1890 = vextract.high.u32 %v1888
    %v1891 = vmul.u32 %v1884, %v1875
    %v1892 = vadd.s32 %v1887, %v1889
    %vm1893 = vc.u32 %v1887, %v1889
    %v1894 = vadd.s32 %v1890, 1
    %v1895 = vsel %vm1893, %v1894, %v1890
    %v1896 = vadd.s32 %v1891, %v1895
    %v1897 = vadd.s32 %v1896, 536870912
    %v1898 = vshrl.u32 %v1897, 30
    %v1899 = vshll.u32 %v1898, 30
    %v1900 = vsub.s32 %v1896, %v1899
    %vm1901 = vcmp.lt.s32.totalorder %v1900, 0
    %v1902 = vsub.s32 0, %v1900
    %v1903 = vsel %vm1901, %v1902, %v1900
    %v1904 = vclz %v1903
    %v1905 = vsub.s32 %v1904, 2
    %vm1906 = vcmp.gt.s32.totalorder 0, %v1905
    %v1907 = vsel %vm1906, 0, %v1905
    %v1908 = vsub.s32 32, %v1907
    %v1909 = vshll.u32 %v1900, %v1907
    %v1910 = vshrl.u32 %v1892, %v1908
    %v1911 = vor.u32 %v1909, %v1910
    %v1912 = vsub.s32 4294967266, %v1907
    %v1913 = vadd.s32 %v1912, 127
    %v1914 = vshll.u32 %v1913, 23
    %v1915 = vor.u32 4788187, %v1914
    %v1916 = vand.u32 2147483647, %v1915
    %v1918 = vcvt.s32.f32 %v1911
    %v1919 = vmul.f32 %v1918, %v1916
    %v1920 = vxor.u32 %v1919, 2147483648
    %v1921 = vsel %vm1838, %v1920, %v1919
    %v1922 = vsub.s32 4, %v1898
    %v1923 = vsel %vm1838, %v1922, %v1898
    %v1924 = vsel %vm1837, %v156, %v1921
    %v1925 = vsel %vm1837, 0, %v1923
    %v1926 = vcosq.f32.pop %v1924
    %v1927 = vsinq.f32.pop %v1924
    %vm1928 = vweird.f32 %v156
    %v1929 = vadd.s32 %v1925, 3
    %v1930 = vand.u32 %v1929, 3
    %vm1931 = vcmp.lt.s32.totalorder %v1930, 2
    %vm1932 = vcmp.eq.s32.totalorder %v1930, 0
    %v1933 = vxor.u32 %v1927, 2147483648
    %v1934 = vsel %vm1932, %v1926, %v1933
    %vm1935 = vcmp.eq.s32.totalorder %v1930, 2
    %v1936 = vxor.u32 %v1926, 2147483648
    %v1937 = vsel %vm1935, %v1936, %v1927
    %v1938 = vsel %vm1931, %v1934, %v1937
    %v1939 = vsel %vm1928, nan, %v1938
    %v1940 = vand.u32 2147483647, %v157
    %vm1941 = vcmp.le.f32.partialorder %v1940, 0.7853982
    %vm1942 = vcmp.lt.s32.totalorder %v157, 0
    %v1943 = vand.u32 %v157, 2139095040
    %v1944 = vshrl.u32 %v1943, 23
    %v1945 = vsub.s32 %v1944, 127
    %v1946 = vand.u32 2147483647, %v157
    %v1947 = vand.u32 %v1946, 8388607
    %v1948 = vor.u32 %v1947, 8388608
    %v1949 = vsub.s32 0, %v1948
    %v1950 = vadd.s32 %v1945, 1
    %vm1951 = vcmp.gt.s32.totalorder %v1950, 0
    %v1952 = vsel %vm1951, %v1950, 0
    %v1953 = vshrl.u32 %v1952, 5
    %v1954 = vand.u32 %v1952, 31
    %v1955 = vsub.s32 32, %v1954
    %v1956 = vshrl.u32 683565275, %v1955
    %v1957 = vshll.u32 683565275, %v1954
    %v1958 = vshrl.u32 2475754826, %v1955
    %v1959 = vor.u32 %v1957, %v1958
    %v1960 = vshll.u32 2475754826, %v1954
    %v1961 = vshrl.u32 2131351028, %v1955
    %v1962 = vor.u32 %v1960, %v1961
    %v1963 = vshll.u32 2131351028, %v1954
    %v1964 = vshrl.u32 2102212464, %v1955
    %v1965 = vor.u32 %v1963, %v1964
    %v1966 = vshll.u32 2102212464, %v1954
    %v1967 = vshrl.u32 920167782, %v1955
    %v1968 = vor.u32 %v1966, %v1967
    %v1969 = vshll.u32 920167782, %v1954
    %v1970 = vshrl.u32 1326507024, %v1955
    %v1971 = vor.u32 %v1969, %v1970
    %vm1972 = vcmp.lt.s32.totalorder %v1953, 1
    %vm1973 = vcmp.lt.s32.totalorder %v1953, 2
    %vm1974 = vcmp.lt.s32.totalorder %v1953, 3
    %vm1975 = vcmp.lt.s32.totalorder %v1953, 4
    %v1976 = vsel %vm1972, %v1956, %v1959
    %v1977 = vsel %vm1975, %v1965, 2102212464
    %v1978 = vsel %vm1974, %v1962, %v1977
    %v1979 = vsel %vm1973, %v1976, %v1978
    %v1980 = vsel %vm1972, %v1959, %v1962
    %v1981 = vsel %vm1975, %v1968, 920167782
    %v1982 = vsel %vm1974, %v1965, %v1981
    %v1983 = vsel %vm1973, %v1980, %v1982
    %v1984 = vsel %vm1972, %v1962, %v1965
    %v1985 = vsel %vm1975, %v1971, 1326507024
    %v1986 = vsel %vm1974, %v1968, %v1985
    %v1987 = vsel %vm1973, %v1984, %v1986
    %v1988 = vshll.u32 %v1948, 8
    %v1989 = vmul.u32.u64.compose %v1988, %v1987
    %v1990 = vextract.low.u32 %v1989
    %v1991 = vextract.high.u32 %v1989
    %v1992 = vmul.u32.u64.compose %v1988, %v1983
    %v1993 = vextract.low.u32 %v1992
    %v1994 = vextract.high.u32 %v1992
    %v1995 = vmul.u32 %v1988, %v1979
    %v1996 = vadd.s32 %v1991, %v1993
    %vm1997 = vc.u32 %v1991, %v1993
    %v1998 = vadd.s32 %v1994, 1
    %v1999 = vsel %vm1997, %v1998, %v1994
    %v2000 = vadd.s32 %v1995, %v1999
    %v2001 = vadd.s32 %v2000, 536870912
    %v2002 = vshrl.u32 %v2001, 30
    %v2003 = vshll.u32 %v2002, 30
    %v2004 = vsub.s32 %v2000, %v2003
    %vm2005 = vcmp.lt.s32.totalorder %v2004, 0
    %v2006 = vsub.s32 0, %v2004
    %v2007 = vsel %vm2005, %v2006, %v2004
    %v2008 = vclz %v2007
    %v2009 = vsub.s32 %v2008, 2
    %vm2010 = vcmp.gt.s32.totalorder 0, %v2009
    %v2011 = vsel %vm2010, 0, %v2009
    %v2012 = vsub.s32 32, %v2011
    %v2013 = vshll.u32 %v2004, %v2011
    %v2014 = vshrl.u32 %v1996, %v2012
    %v2015 = vor.u32 %v2013, %v2014
    %v2016 = vsub.s32 4294967266, %v2011
    %v2017 = vadd.s32 %v2016, 127
    %v2018 = vshll.u32 %v2017, 23
    %v2019 = vor.u32 4788187, %v2018
    %v2020 = vand.u32 2147483647, %v2019
    %v2022 = vcvt.s32.f32 %v2015
    %v2023 = vmul.f32 %v2022, %v2020
    %v2024 = vxor.u32 %v2023, 2147483648
    %v2025 = vsel %vm1942, %v2024, %v2023
    %v2026 = vsub.s32 4, %v2002
    %v2027 = vsel %vm1942, %v2026, %v2002
    %v2028 = vsel %vm1941, %v157, %v2025
    %v2029 = vsel %vm1941, 0, %v2027
    %v2030 = vcosq.f32.pop %v2028
    %v2031 = vsinq.f32.pop %v2028
    %vm2032 = vweird.f32 %v157
    %v2033 = vadd.s32 %v2029, 3
    %v2034 = vand.u32 %v2033, 3
    %vm2035 = vcmp.lt.s32.totalorder %v2034, 2
    %vm2036 = vcmp.eq.s32.totalorder %v2034, 0
    %v2037 = vxor.u32 %v2031, 2147483648
    %v2038 = vsel %vm2036, %v2030, %v2037
    %vm2039 = vcmp.eq.s32.totalorder %v2034, 2
    %v2040 = vxor.u32 %v2030, 2147483648
    %v2041 = vsel %vm2039, %v2040, %v2031
    %v2042 = vsel %vm2035, %v2038, %v2041
    %v2043 = vsel %vm2032, nan, %v2042
    %v2044 = vand.u32 2147483647, %v158
    %vm2045 = vcmp.le.f32.partialorder %v2044, 0.7853982
    %vm2046 = vcmp.lt.s32.totalorder %v158, 0
    %v2047 = vand.u32 %v158, 2139095040
    %v2048 = vshrl.u32 %v2047, 23
    %v2049 = vsub.s32 %v2048, 127
    %v2050 = vand.u32 2147483647, %v158
    %v2051 = vand.u32 %v2050, 8388607
    %v2052 = vor.u32 %v2051, 8388608
    %v2053 = vsub.s32 0, %v2052
    %v2054 = vadd.s32 %v2049, 1
    %vm2055 = vcmp.gt.s32.totalorder %v2054, 0
    %v2056 = vsel %vm2055, %v2054, 0
    %v2057 = vshrl.u32 %v2056, 5
    %v2058 = vand.u32 %v2056, 31
    %v2059 = vsub.s32 32, %v2058
    %v2060 = vshrl.u32 683565275, %v2059
    %v2061 = vshll.u32 683565275, %v2058
    %v2062 = vshrl.u32 2475754826, %v2059
    %v2063 = vor.u32 %v2061, %v2062
    %v2064 = vshll.u32 2475754826, %v2058
    %v2065 = vshrl.u32 2131351028, %v2059
    %v2066 = vor.u32 %v2064, %v2065
    %v2067 = vshll.u32 2131351028, %v2058
    %v2068 = vshrl.u32 2102212464, %v2059
    %v2069 = vor.u32 %v2067, %v2068
    %v2070 = vshll.u32 2102212464, %v2058
    %v2071 = vshrl.u32 920167782, %v2059
    %v2072 = vor.u32 %v2070, %v2071
    %v2073 = vshll.u32 920167782, %v2058
    %v2074 = vshrl.u32 1326507024, %v2059
    %v2075 = vor.u32 %v2073, %v2074
    %vm2076 = vcmp.lt.s32.totalorder %v2057, 1
    %vm2077 = vcmp.lt.s32.totalorder %v2057, 2
    %vm2078 = vcmp.lt.s32.totalorder %v2057, 3
    %vm2079 = vcmp.lt.s32.totalorder %v2057, 4
    %v2080 = vsel %vm2076, %v2060, %v2063
    %v2081 = vsel %vm2079, %v2069, 2102212464
    %v2082 = vsel %vm2078, %v2066, %v2081
    %v2083 = vsel %vm2077, %v2080, %v2082
    %v2084 = vsel %vm2076, %v2063, %v2066
    %v2085 = vsel %vm2079, %v2072, 920167782
    %v2086 = vsel %vm2078, %v2069, %v2085
    %v2087 = vsel %vm2077, %v2084, %v2086
    %v2088 = vsel %vm2076, %v2066, %v2069
    %v2089 = vsel %vm2079, %v2075, 1326507024
    %v2090 = vsel %vm2078, %v2072, %v2089
    %v2091 = vsel %vm2077, %v2088, %v2090
    %v2092 = vshll.u32 %v2052, 8
    %v2093 = vmul.u32.u64.compose %v2092, %v2091
    %v2094 = vextract.low.u32 %v2093
    %v2095 = vextract.high.u32 %v2093
    %v2096 = vmul.u32.u64.compose %v2092, %v2087
    %v2097 = vextract.low.u32 %v2096
    %v2098 = vextract.high.u32 %v2096
    %v2099 = vmul.u32 %v2092, %v2083
    %v2100 = vadd.s32 %v2095, %v2097
    %vm2101 = vc.u32 %v2095, %v2097
    %v2102 = vadd.s32 %v2098, 1
    %v2103 = vsel %vm2101, %v2102, %v2098
    %v2104 = vadd.s32 %v2099, %v2103
    %v2105 = vadd.s32 %v2104, 536870912
    %v2106 = vshrl.u32 %v2105, 30
    %v2107 = vshll.u32 %v2106, 30
    %v2108 = vsub.s32 %v2104, %v2107
    %vm2109 = vcmp.lt.s32.totalorder %v2108, 0
    %v2110 = vsub.s32 0, %v2108
    %v2111 = vsel %vm2109, %v2110, %v2108
    %v2112 = vclz %v2111
    %v2113 = vsub.s32 %v2112, 2
    %vm2114 = vcmp.gt.s32.totalorder 0, %v2113
    %v2115 = vsel %vm2114, 0, %v2113
    %v2116 = vsub.s32 32, %v2115
    %v2117 = vshll.u32 %v2108, %v2115
    %v2118 = vshrl.u32 %v2100, %v2116
    %v2119 = vor.u32 %v2117, %v2118
    %v2120 = vsub.s32 4294967266, %v2115
    %v2121 = vadd.s32 %v2120, 127
    %v2122 = vshll.u32 %v2121, 23
    %v2123 = vor.u32 4788187, %v2122
    %v2124 = vand.u32 2147483647, %v2123
    %v2126 = vcvt.s32.f32 %v2119
    %v2127 = vmul.f32 %v2126, %v2124
    %v2128 = vxor.u32 %v2127, 2147483648
    %v2129 = vsel %vm2046, %v2128, %v2127
    %v2130 = vsub.s32 4, %v2106
    %v2131 = vsel %vm2046, %v2130, %v2106
    %v2132 = vsel %vm2045, %v158, %v2129
    %v2133 = vsel %vm2045, 0, %v2131
    %v2134 = vcosq.f32.pop %v2132
    %v2135 = vsinq.f32.pop %v2132
    %vm2136 = vweird.f32 %v158
    %v2137 = vadd.s32 %v2133, 3
    %v2138 = vand.u32 %v2137, 3
    %vm2139 = vcmp.lt.s32.totalorder %v2138, 2
    %vm2140 = vcmp.eq.s32.totalorder %v2138, 0
    %v2141 = vxor.u32 %v2135, 2147483648
    %v2142 = vsel %vm2140, %v2134, %v2141
    %vm2143 = vcmp.eq.s32.totalorder %v2138, 2
    %v2144 = vxor.u32 %v2134, 2147483648
    %v2145 = vsel %vm2143, %v2144, %v2135
    %v2146 = vsel %vm2139, %v2142, %v2145
    %v2147 = vsel %vm2136, nan, %v2146
    %v2148 = vand.u32 2147483647, %v159
    %vm2149 = vcmp.le.f32.partialorder %v2148, 0.7853982
    %vm2150 = vcmp.lt.s32.totalorder %v159, 0
    %v2151 = vand.u32 %v159, 2139095040
    %v2152 = vshrl.u32 %v2151, 23
    %v2153 = vsub.s32 %v2152, 127
    %v2154 = vand.u32 2147483647, %v159
    %v2155 = vand.u32 %v2154, 8388607
    %v2156 = vor.u32 %v2155, 8388608
    %v2157 = vsub.s32 0, %v2156
    %v2158 = vadd.s32 %v2153, 1
    %vm2159 = vcmp.gt.s32.totalorder %v2158, 0
    %v2160 = vsel %vm2159, %v2158, 0
    %v2161 = vshrl.u32 %v2160, 5
    %v2162 = vand.u32 %v2160, 31
    %v2163 = vsub.s32 32, %v2162
    %v2164 = vshrl.u32 683565275, %v2163
    %v2165 = vshll.u32 683565275, %v2162
    %v2166 = vshrl.u32 2475754826, %v2163
    %v2167 = vor.u32 %v2165, %v2166
    %v2168 = vshll.u32 2475754826, %v2162
    %v2169 = vshrl.u32 2131351028, %v2163
    %v2170 = vor.u32 %v2168, %v2169
    %v2171 = vshll.u32 2131351028, %v2162
    %v2172 = vshrl.u32 2102212464, %v2163
    %v2173 = vor.u32 %v2171, %v2172
    %v2174 = vshll.u32 2102212464, %v2162
    %v2175 = vshrl.u32 920167782, %v2163
    %v2176 = vor.u32 %v2174, %v2175
    %v2177 = vshll.u32 920167782, %v2162
    %v2178 = vshrl.u32 1326507024, %v2163
    %v2179 = vor.u32 %v2177, %v2178
    %vm2180 = vcmp.lt.s32.totalorder %v2161, 1
    %vm2181 = vcmp.lt.s32.totalorder %v2161, 2
    %vm2182 = vcmp.lt.s32.totalorder %v2161, 3
    %vm2183 = vcmp.lt.s32.totalorder %v2161, 4
    %v2184 = vsel %vm2180, %v2164, %v2167
    %v2185 = vsel %vm2183, %v2173, 2102212464
    %v2186 = vsel %vm2182, %v2170, %v2185
    %v2187 = vsel %vm2181, %v2184, %v2186
    %v2188 = vsel %vm2180, %v2167, %v2170
    %v2189 = vsel %vm2183, %v2176, 920167782
    %v2190 = vsel %vm2182, %v2173, %v2189
    %v2191 = vsel %vm2181, %v2188, %v2190
    %v2192 = vsel %vm2180, %v2170, %v2173
    %v2193 = vsel %vm2183, %v2179, 1326507024
    %v2194 = vsel %vm2182, %v2176, %v2193
    %v2195 = vsel %vm2181, %v2192, %v2194
    %v2196 = vshll.u32 %v2156, 8
    %v2197 = vmul.u32.u64.compose %v2196, %v2195
    %v2198 = vextract.low.u32 %v2197
    %v2199 = vextract.high.u32 %v2197
    %v2200 = vmul.u32.u64.compose %v2196, %v2191
    %v2201 = vextract.low.u32 %v2200
    %v2202 = vextract.high.u32 %v2200
    %v2203 = vmul.u32 %v2196, %v2187
    %v2204 = vadd.s32 %v2199, %v2201
    %vm2205 = vc.u32 %v2199, %v2201
    %v2206 = vadd.s32 %v2202, 1
    %v2207 = vsel %vm2205, %v2206, %v2202
    %v2208 = vadd.s32 %v2203, %v2207
    %v2209 = vadd.s32 %v2208, 536870912
    %v2210 = vshrl.u32 %v2209, 30
    %v2211 = vshll.u32 %v2210, 30
    %v2212 = vsub.s32 %v2208, %v2211
    %vm2213 = vcmp.lt.s32.totalorder %v2212, 0
    %v2214 = vsub.s32 0, %v2212
    %v2215 = vsel %vm2213, %v2214, %v2212
    %v2216 = vclz %v2215
    %v2217 = vsub.s32 %v2216, 2
    %vm2218 = vcmp.gt.s32.totalorder 0, %v2217
    %v2219 = vsel %vm2218, 0, %v2217
    %v2220 = vsub.s32 32, %v2219
    %v2221 = vshll.u32 %v2212, %v2219
    %v2222 = vshrl.u32 %v2204, %v2220
    %v2223 = vor.u32 %v2221, %v2222
    %v2224 = vsub.s32 4294967266, %v2219
    %v2225 = vadd.s32 %v2224, 127
    %v2226 = vshll.u32 %v2225, 23
    %v2227 = vor.u32 4788187, %v2226
    %v2228 = vand.u32 2147483647, %v2227
    %v2230 = vcvt.s32.f32 %v2223
    %v2231 = vmul.f32 %v2230, %v2228
    %v2232 = vxor.u32 %v2231, 2147483648
    %v2233 = vsel %vm2150, %v2232, %v2231
    %v2234 = vsub.s32 4, %v2210
    %v2235 = vsel %vm2150, %v2234, %v2210
    %v2236 = vsel %vm2149, %v159, %v2233
    %v2237 = vsel %vm2149, 0, %v2235
    %v2238 = vcosq.f32.pop %v2236
    %v2239 = vsinq.f32.pop %v2236
    %vm2240 = vweird.f32 %v159
    %v2241 = vadd.s32 %v2237, 3
    %v2242 = vand.u32 %v2241, 3
    %vm2243 = vcmp.lt.s32.totalorder %v2242, 2
    %vm2244 = vcmp.eq.s32.totalorder %v2242, 0
    %v2245 = vxor.u32 %v2239, 2147483648
    %v2246 = vsel %vm2244, %v2238, %v2245
    %vm2247 = vcmp.eq.s32.totalorder %v2242, 2
    %v2248 = vxor.u32 %v2238, 2147483648
    %v2249 = vsel %vm2247, %v2248, %v2239
    %v2250 = vsel %vm2243, %v2246, %v2249
    %v2251 = vsel %vm2240, nan, %v2250
    %v2252 = vand.u32 2147483647, %v160
    %vm2253 = vcmp.le.f32.partialorder %v2252, 0.7853982
    %vm2254 = vcmp.lt.s32.totalorder %v160, 0
    %v2255 = vand.u32 %v160, 2139095040
    %v2256 = vshrl.u32 %v2255, 23
    %v2257 = vsub.s32 %v2256, 127
    %v2258 = vand.u32 2147483647, %v160
    %v2259 = vand.u32 %v2258, 8388607
    %v2260 = vor.u32 %v2259, 8388608
    %v2261 = vsub.s32 0, %v2260
    %v2262 = vadd.s32 %v2257, 1
    %vm2263 = vcmp.gt.s32.totalorder %v2262, 0
    %v2264 = vsel %vm2263, %v2262, 0
    %v2265 = vshrl.u32 %v2264, 5
    %v2266 = vand.u32 %v2264, 31
    %v2267 = vsub.s32 32, %v2266
    %v2268 = vshrl.u32 683565275, %v2267
    %v2269 = vshll.u32 683565275, %v2266
    %v2270 = vshrl.u32 2475754826, %v2267
    %v2271 = vor.u32 %v2269, %v2270
    %v2272 = vshll.u32 2475754826, %v2266
    %v2273 = vshrl.u32 2131351028, %v2267
    %v2274 = vor.u32 %v2272, %v2273
    %v2275 = vshll.u32 2131351028, %v2266
    %v2276 = vshrl.u32 2102212464, %v2267
    %v2277 = vor.u32 %v2275, %v2276
    %v2278 = vshll.u32 2102212464, %v2266
    %v2279 = vshrl.u32 920167782, %v2267
    %v2280 = vor.u32 %v2278, %v2279
    %v2281 = vshll.u32 920167782, %v2266
    %v2282 = vshrl.u32 1326507024, %v2267
    %v2283 = vor.u32 %v2281, %v2282
    %vm2284 = vcmp.lt.s32.totalorder %v2265, 1
    %vm2285 = vcmp.lt.s32.totalorder %v2265, 2
    %vm2286 = vcmp.lt.s32.totalorder %v2265, 3
    %vm2287 = vcmp.lt.s32.totalorder %v2265, 4
    %v2288 = vsel %vm2284, %v2268, %v2271
    %v2289 = vsel %vm2287, %v2277, 2102212464
    %v2290 = vsel %vm2286, %v2274, %v2289
    %v2291 = vsel %vm2285, %v2288, %v2290
    %v2292 = vsel %vm2284, %v2271, %v2274
    %v2293 = vsel %vm2287, %v2280, 920167782
    %v2294 = vsel %vm2286, %v2277, %v2293
    %v2295 = vsel %vm2285, %v2292, %v2294
    %v2296 = vsel %vm2284, %v2274, %v2277
    %v2297 = vsel %vm2287, %v2283, 1326507024
    %v2298 = vsel %vm2286, %v2280, %v2297
    %v2299 = vsel %vm2285, %v2296, %v2298
    %v2300 = vshll.u32 %v2260, 8
    %v2301 = vmul.u32.u64.compose %v2300, %v2299
    %v2302 = vextract.low.u32 %v2301
    %v2303 = vextract.high.u32 %v2301
    %v2304 = vmul.u32.u64.compose %v2300, %v2295
    %v2305 = vextract.low.u32 %v2304
    %v2306 = vextract.high.u32 %v2304
    %v2307 = vmul.u32 %v2300, %v2291
    %v2308 = vadd.s32 %v2303, %v2305
    %vm2309 = vc.u32 %v2303, %v2305
    %v2310 = vadd.s32 %v2306, 1
    %v2311 = vsel %vm2309, %v2310, %v2306
    %v2312 = vadd.s32 %v2307, %v2311
    %v2313 = vadd.s32 %v2312, 536870912
    %v2314 = vshrl.u32 %v2313, 30
    %v2315 = vshll.u32 %v2314, 30
    %v2316 = vsub.s32 %v2312, %v2315
    %vm2317 = vcmp.lt.s32.totalorder %v2316, 0
    %v2318 = vsub.s32 0, %v2316
    %v2319 = vsel %vm2317, %v2318, %v2316
    %v2320 = vclz %v2319
    %v2321 = vsub.s32 %v2320, 2
    %vm2322 = vcmp.gt.s32.totalorder 0, %v2321
    %v2323 = vsel %vm2322, 0, %v2321
    %v2324 = vsub.s32 32, %v2323
    %v2325 = vshll.u32 %v2316, %v2323
    %v2326 = vshrl.u32 %v2308, %v2324
    %v2327 = vor.u32 %v2325, %v2326
    %v2328 = vsub.s32 4294967266, %v2323
    %v2329 = vadd.s32 %v2328, 127
    %v2330 = vshll.u32 %v2329, 23
    %v2331 = vor.u32 4788187, %v2330
    %v2332 = vand.u32 2147483647, %v2331
    %v2334 = vcvt.s32.f32 %v2327
    %v2335 = vmul.f32 %v2334, %v2332
    %v2336 = vxor.u32 %v2335, 2147483648
    %v2337 = vsel %vm2254, %v2336, %v2335
    %v2338 = vsub.s32 4, %v2314
    %v2339 = vsel %vm2254, %v2338, %v2314
    %v2340 = vsel %vm2253, %v160, %v2337
    %v2341 = vsel %vm2253, 0, %v2339
    %v2342 = vcosq.f32.pop %v2340
    %v2343 = vsinq.f32.pop %v2340
    %vm2344 = vweird.f32 %v160
    %v2345 = vadd.s32 %v2341, 3
    %v2346 = vand.u32 %v2345, 3
    %vm2347 = vcmp.lt.s32.totalorder %v2346, 2
    %vm2348 = vcmp.eq.s32.totalorder %v2346, 0
    %v2349 = vxor.u32 %v2343, 2147483648
    %v2350 = vsel %vm2348, %v2342, %v2349
    %vm2351 = vcmp.eq.s32.totalorder %v2346, 2
    %v2352 = vxor.u32 %v2342, 2147483648
    %v2353 = vsel %vm2351, %v2352, %v2343
    %v2354 = vsel %vm2347, %v2350, %v2353
    %v2355 = vsel %vm2344, nan, %v2354
    %v2356 = vand.u32 2147483647, %v161
    %vm2357 = vcmp.le.f32.partialorder %v2356, 0.7853982
    %vm2358 = vcmp.lt.s32.totalorder %v161, 0
    %v2359 = vand.u32 %v161, 2139095040
    %v2360 = vshrl.u32 %v2359, 23
    %v2361 = vsub.s32 %v2360, 127
    %v2362 = vand.u32 2147483647, %v161
    %v2363 = vand.u32 %v2362, 8388607
    %v2364 = vor.u32 %v2363, 8388608
    %v2365 = vsub.s32 0, %v2364
    %v2366 = vadd.s32 %v2361, 1
    %vm2367 = vcmp.gt.s32.totalorder %v2366, 0
    %v2368 = vsel %vm2367, %v2366, 0
    %v2369 = vshrl.u32 %v2368, 5
    %v2370 = vand.u32 %v2368, 31
    %v2371 = vsub.s32 32, %v2370
    %v2372 = vshrl.u32 683565275, %v2371
    %v2373 = vshll.u32 683565275, %v2370
    %v2374 = vshrl.u32 2475754826, %v2371
    %v2375 = vor.u32 %v2373, %v2374
    %v2376 = vshll.u32 2475754826, %v2370
    %v2377 = vshrl.u32 2131351028, %v2371
    %v2378 = vor.u32 %v2376, %v2377
    %v2379 = vshll.u32 2131351028, %v2370
    %v2380 = vshrl.u32 2102212464, %v2371
    %v2381 = vor.u32 %v2379, %v2380
    %v2382 = vshll.u32 2102212464, %v2370
    %v2383 = vshrl.u32 920167782, %v2371
    %v2384 = vor.u32 %v2382, %v2383
    %v2385 = vshll.u32 920167782, %v2370
    %v2386 = vshrl.u32 1326507024, %v2371
    %v2387 = vor.u32 %v2385, %v2386
    %vm2388 = vcmp.lt.s32.totalorder %v2369, 1
    %vm2389 = vcmp.lt.s32.totalorder %v2369, 2
    %vm2390 = vcmp.lt.s32.totalorder %v2369, 3
    %vm2391 = vcmp.lt.s32.totalorder %v2369, 4
    %v2392 = vsel %vm2388, %v2372, %v2375
    %v2393 = vsel %vm2391, %v2381, 2102212464
    %v2394 = vsel %vm2390, %v2378, %v2393
    %v2395 = vsel %vm2389, %v2392, %v2394
    %v2396 = vsel %vm2388, %v2375, %v2378
    %v2397 = vsel %vm2391, %v2384, 920167782
    %v2398 = vsel %vm2390, %v2381, %v2397
    %v2399 = vsel %vm2389, %v2396, %v2398
    %v2400 = vsel %vm2388, %v2378, %v2381
    %v2401 = vsel %vm2391, %v2387, 1326507024
    %v2402 = vsel %vm2390, %v2384, %v2401
    %v2403 = vsel %vm2389, %v2400, %v2402
    %v2404 = vshll.u32 %v2364, 8
    %v2405 = vmul.u32.u64.compose %v2404, %v2403
    %v2406 = vextract.low.u32 %v2405
    %v2407 = vextract.high.u32 %v2405
    %v2408 = vmul.u32.u64.compose %v2404, %v2399
    %v2409 = vextract.low.u32 %v2408
    %v2410 = vextract.high.u32 %v2408
    %v2411 = vmul.u32 %v2404, %v2395
    %v2412 = vadd.s32 %v2407, %v2409
    %vm2413 = vc.u32 %v2407, %v2409
    %v2414 = vadd.s32 %v2410, 1
    %v2415 = vsel %vm2413, %v2414, %v2410
    %v2416 = vadd.s32 %v2411, %v2415
    %v2417 = vadd.s32 %v2416, 536870912
    %v2418 = vshrl.u32 %v2417, 30
    %v2419 = vshll.u32 %v2418, 30
    %v2420 = vsub.s32 %v2416, %v2419
    %vm2421 = vcmp.lt.s32.totalorder %v2420, 0
    %v2422 = vsub.s32 0, %v2420
    %v2423 = vsel %vm2421, %v2422, %v2420
    %v2424 = vclz %v2423
    %v2425 = vsub.s32 %v2424, 2
    %vm2426 = vcmp.gt.s32.totalorder 0, %v2425
    %v2427 = vsel %vm2426, 0, %v2425
    %v2428 = vsub.s32 32, %v2427
    %v2429 = vshll.u32 %v2420, %v2427
    %v2430 = vshrl.u32 %v2412, %v2428
    %v2431 = vor.u32 %v2429, %v2430
    %v2432 = vsub.s32 4294967266, %v2427
    %v2433 = vadd.s32 %v2432, 127
    %v2434 = vshll.u32 %v2433, 23
    %v2435 = vor.u32 4788187, %v2434
    %v2436 = vand.u32 2147483647, %v2435
    %v2438 = vcvt.s32.f32 %v2431
    %v2439 = vmul.f32 %v2438, %v2436
    %v2440 = vxor.u32 %v2439, 2147483648
    %v2441 = vsel %vm2358, %v2440, %v2439
    %v2442 = vsub.s32 4, %v2418
    %v2443 = vsel %vm2358, %v2442, %v2418
    %v2444 = vsel %vm2357, %v161, %v2441
    %v2445 = vsel %vm2357, 0, %v2443
    %v2446 = vcosq.f32.pop %v2444
    %v2447 = vsinq.f32.pop %v2444
    %vm2448 = vweird.f32 %v161
    %v2449 = vadd.s32 %v2445, 3
    %v2450 = vand.u32 %v2449, 3
    %vm2451 = vcmp.lt.s32.totalorder %v2450, 2
    %vm2452 = vcmp.eq.s32.totalorder %v2450, 0
    %v2453 = vxor.u32 %v2447, 2147483648
    %v2454 = vsel %vm2452, %v2446, %v2453
    %vm2455 = vcmp.eq.s32.totalorder %v2450, 2
    %v2456 = vxor.u32 %v2446, 2147483648
    %v2457 = vsel %vm2455, %v2456, %v2447
    %v2458 = vsel %vm2451, %v2454, %v2457
    %v2459 = vsel %vm2448, nan, %v2458
    %v2460 = vand.u32 2147483647, %v162
    %vm2461 = vcmp.le.f32.partialorder %v2460, 0.7853982
    %vm2462 = vcmp.lt.s32.totalorder %v162, 0
    %v2463 = vand.u32 %v162, 2139095040
    %v2464 = vshrl.u32 %v2463, 23
    %v2465 = vsub.s32 %v2464, 127
    %v2466 = vand.u32 2147483647, %v162
    %v2467 = vand.u32 %v2466, 8388607
    %v2468 = vor.u32 %v2467, 8388608
    %v2469 = vsub.s32 0, %v2468
    %v2470 = vadd.s32 %v2465, 1
    %vm2471 = vcmp.gt.s32.totalorder %v2470, 0
    %v2472 = vsel %vm2471, %v2470, 0
    %v2473 = vshrl.u32 %v2472, 5
    %v2474 = vand.u32 %v2472, 31
    %v2475 = vsub.s32 32, %v2474
    %v2476 = vshrl.u32 683565275, %v2475
    %v2477 = vshll.u32 683565275, %v2474
    %v2478 = vshrl.u32 2475754826, %v2475
    %v2479 = vor.u32 %v2477, %v2478
    %v2480 = vshll.u32 2475754826, %v2474
    %v2481 = vshrl.u32 2131351028, %v2475
    %v2482 = vor.u32 %v2480, %v2481
    %v2483 = vshll.u32 2131351028, %v2474
    %v2484 = vshrl.u32 2102212464, %v2475
    %v2485 = vor.u32 %v2483, %v2484
    %v2486 = vshll.u32 2102212464, %v2474
    %v2487 = vshrl.u32 920167782, %v2475
    %v2488 = vor.u32 %v2486, %v2487
    %v2489 = vshll.u32 920167782, %v2474
    %v2490 = vshrl.u32 1326507024, %v2475
    %v2491 = vor.u32 %v2489, %v2490
    %vm2492 = vcmp.lt.s32.totalorder %v2473, 1
    %vm2493 = vcmp.lt.s32.totalorder %v2473, 2
    %vm2494 = vcmp.lt.s32.totalorder %v2473, 3
    %vm2495 = vcmp.lt.s32.totalorder %v2473, 4
    %v2496 = vsel %vm2492, %v2476, %v2479
    %v2497 = vsel %vm2495, %v2485, 2102212464
    %v2498 = vsel %vm2494, %v2482, %v2497
    %v2499 = vsel %vm2493, %v2496, %v2498
    %v2500 = vsel %vm2492, %v2479, %v2482
    %v2501 = vsel %vm2495, %v2488, 920167782
    %v2502 = vsel %vm2494, %v2485, %v2501
    %v2503 = vsel %vm2493, %v2500, %v2502
    %v2504 = vsel %vm2492, %v2482, %v2485
    %v2505 = vsel %vm2495, %v2491, 1326507024
    %v2506 = vsel %vm2494, %v2488, %v2505
    %v2507 = vsel %vm2493, %v2504, %v2506
    %v2508 = vshll.u32 %v2468, 8
    %v2509 = vmul.u32.u64.compose %v2508, %v2507
    %v2510 = vextract.low.u32 %v2509
    %v2511 = vextract.high.u32 %v2509
    %v2512 = vmul.u32.u64.compose %v2508, %v2503
    %v2513 = vextract.low.u32 %v2512
    %v2514 = vextract.high.u32 %v2512
    %v2515 = vmul.u32 %v2508, %v2499
    %v2516 = vadd.s32 %v2511, %v2513
    %vm2517 = vc.u32 %v2511, %v2513
    %v2518 = vadd.s32 %v2514, 1
    %v2519 = vsel %vm2517, %v2518, %v2514
    %v2520 = vadd.s32 %v2515, %v2519
    %v2521 = vadd.s32 %v2520, 536870912
    %v2522 = vshrl.u32 %v2521, 30
    %v2523 = vshll.u32 %v2522, 30
    %v2524 = vsub.s32 %v2520, %v2523
    %vm2525 = vcmp.lt.s32.totalorder %v2524, 0
    %v2526 = vsub.s32 0, %v2524
    %v2527 = vsel %vm2525, %v2526, %v2524
    %v2528 = vclz %v2527
    %v2529 = vsub.s32 %v2528, 2
    %vm2530 = vcmp.gt.s32.totalorder 0, %v2529
    %v2531 = vsel %vm2530, 0, %v2529
    %v2532 = vsub.s32 32, %v2531
    %v2533 = vshll.u32 %v2524, %v2531
    %v2534 = vshrl.u32 %v2516, %v2532
    %v2535 = vor.u32 %v2533, %v2534
    %v2536 = vsub.s32 4294967266, %v2531
    %v2537 = vadd.s32 %v2536, 127
    %v2538 = vshll.u32 %v2537, 23
    %v2539 = vor.u32 4788187, %v2538
    %v2540 = vand.u32 2147483647, %v2539
    %v2542 = vcvt.s32.f32 %v2535
    %v2543 = vmul.f32 %v2542, %v2540
    %v2544 = vxor.u32 %v2543, 2147483648
    %v2545 = vsel %vm2462, %v2544, %v2543
    %v2546 = vsub.s32 4, %v2522
    %v2547 = vsel %vm2462, %v2546, %v2522
    %v2548 = vsel %vm2461, %v162, %v2545
    %v2549 = vsel %vm2461, 0, %v2547
    %v2550 = vcosq.f32.pop %v2548
    %v2551 = vsinq.f32.pop %v2548
    %vm2552 = vweird.f32 %v162
    %v2553 = vadd.s32 %v2549, 3
    %v2554 = vand.u32 %v2553, 3
    %vm2555 = vcmp.lt.s32.totalorder %v2554, 2
    %vm2556 = vcmp.eq.s32.totalorder %v2554, 0
    %v2557 = vxor.u32 %v2551, 2147483648
    %v2558 = vsel %vm2556, %v2550, %v2557
    %vm2559 = vcmp.eq.s32.totalorder %v2554, 2
    %v2560 = vxor.u32 %v2550, 2147483648
    %v2561 = vsel %vm2559, %v2560, %v2551
    %v2562 = vsel %vm2555, %v2558, %v2561
    %v2563 = vsel %vm2552, nan, %v2562
    %v2564 = vand.u32 2147483647, %v163
    %vm2565 = vcmp.le.f32.partialorder %v2564, 0.7853982
    %vm2566 = vcmp.lt.s32.totalorder %v163, 0
    %v2567 = vand.u32 %v163, 2139095040
    %v2568 = vshrl.u32 %v2567, 23
    %v2569 = vsub.s32 %v2568, 127
    %v2570 = vand.u32 2147483647, %v163
    %v2571 = vand.u32 %v2570, 8388607
    %v2572 = vor.u32 %v2571, 8388608
    %v2573 = vsub.s32 0, %v2572
    %v2574 = vadd.s32 %v2569, 1
    %vm2575 = vcmp.gt.s32.totalorder %v2574, 0
    %v2576 = vsel %vm2575, %v2574, 0
    %v2577 = vshrl.u32 %v2576, 5
    %v2578 = vand.u32 %v2576, 31
    %v2579 = vsub.s32 32, %v2578
    %v2580 = vshrl.u32 683565275, %v2579
    %v2581 = vshll.u32 683565275, %v2578
    %v2582 = vshrl.u32 2475754826, %v2579
    %v2583 = vor.u32 %v2581, %v2582
    %v2584 = vshll.u32 2475754826, %v2578
    %v2585 = vshrl.u32 2131351028, %v2579
    %v2586 = vor.u32 %v2584, %v2585
    %v2587 = vshll.u32 2131351028, %v2578
    %v2588 = vshrl.u32 2102212464, %v2579
    %v2589 = vor.u32 %v2587, %v2588
    %v2590 = vshll.u32 2102212464, %v2578
    %v2591 = vshrl.u32 920167782, %v2579
    %v2592 = vor.u32 %v2590, %v2591
    %v2593 = vshll.u32 920167782, %v2578
    %v2594 = vshrl.u32 1326507024, %v2579
    %v2595 = vor.u32 %v2593, %v2594
    %vm2596 = vcmp.lt.s32.totalorder %v2577, 1
    %vm2597 = vcmp.lt.s32.totalorder %v2577, 2
    %vm2598 = vcmp.lt.s32.totalorder %v2577, 3
    %vm2599 = vcmp.lt.s32.totalorder %v2577, 4
    %v2600 = vsel %vm2596, %v2580, %v2583
    %v2601 = vsel %vm2599, %v2589, 2102212464
    %v2602 = vsel %vm2598, %v2586, %v2601
    %v2603 = vsel %vm2597, %v2600, %v2602
    %v2604 = vsel %vm2596, %v2583, %v2586
    %v2605 = vsel %vm2599, %v2592, 920167782
    %v2606 = vsel %vm2598, %v2589, %v2605
    %v2607 = vsel %vm2597, %v2604, %v2606
    %v2608 = vsel %vm2596, %v2586, %v2589
    %v2609 = vsel %vm2599, %v2595, 1326507024
    %v2610 = vsel %vm2598, %v2592, %v2609
    %v2611 = vsel %vm2597, %v2608, %v2610
    %v2612 = vshll.u32 %v2572, 8
    %v2613 = vmul.u32.u64.compose %v2612, %v2611
    %v2614 = vextract.low.u32 %v2613
    %v2615 = vextract.high.u32 %v2613
    %v2616 = vmul.u32.u64.compose %v2612, %v2607
    %v2617 = vextract.low.u32 %v2616
    %v2618 = vextract.high.u32 %v2616
    %v2619 = vmul.u32 %v2612, %v2603
    %v2620 = vadd.s32 %v2615, %v2617
    %vm2621 = vc.u32 %v2615, %v2617
    %v2622 = vadd.s32 %v2618, 1
    %v2623 = vsel %vm2621, %v2622, %v2618
    %v2624 = vadd.s32 %v2619, %v2623
    %v2625 = vadd.s32 %v2624, 536870912
    %v2626 = vshrl.u32 %v2625, 30
    %v2627 = vshll.u32 %v2626, 30
    %v2628 = vsub.s32 %v2624, %v2627
    %vm2629 = vcmp.lt.s32.totalorder %v2628, 0
    %v2630 = vsub.s32 0, %v2628
    %v2631 = vsel %vm2629, %v2630, %v2628
    %v2632 = vclz %v2631
    %v2633 = vsub.s32 %v2632, 2
    %vm2634 = vcmp.gt.s32.totalorder 0, %v2633
    %v2635 = vsel %vm2634, 0, %v2633
    %v2636 = vsub.s32 32, %v2635
    %v2637 = vshll.u32 %v2628, %v2635
    %v2638 = vshrl.u32 %v2620, %v2636
    %v2639 = vor.u32 %v2637, %v2638
    %v2640 = vsub.s32 4294967266, %v2635
    %v2641 = vadd.s32 %v2640, 127
    %v2642 = vshll.u32 %v2641, 23
    %v2643 = vor.u32 4788187, %v2642
    %v2644 = vand.u32 2147483647, %v2643
    %v2646 = vcvt.s32.f32 %v2639
    %v2647 = vmul.f32 %v2646, %v2644
    %v2648 = vxor.u32 %v2647, 2147483648
    %v2649 = vsel %vm2566, %v2648, %v2647
    %v2650 = vsub.s32 4, %v2626
    %v2651 = vsel %vm2566, %v2650, %v2626
    %v2652 = vsel %vm2565, %v163, %v2649
    %v2653 = vsel %vm2565, 0, %v2651
    %v2654 = vcosq.f32.pop %v2652
    %v2655 = vsinq.f32.pop %v2652
    %vm2656 = vweird.f32 %v163
    %v2657 = vadd.s32 %v2653, 3
    %v2658 = vand.u32 %v2657, 3
    %vm2659 = vcmp.lt.s32.totalorder %v2658, 2
    %vm2660 = vcmp.eq.s32.totalorder %v2658, 0
    %v2661 = vxor.u32 %v2655, 2147483648
    %v2662 = vsel %vm2660, %v2654, %v2661
    %vm2663 = vcmp.eq.s32.totalorder %v2658, 2
    %v2664 = vxor.u32 %v2654, 2147483648
    %v2665 = vsel %vm2663, %v2664, %v2655
    %v2666 = vsel %vm2659, %v2662, %v2665
    %v2667 = vsel %vm2656, nan, %v2666
    %v2668 = vand.u32 2147483647, %v164
    %vm2669 = vcmp.le.f32.partialorder %v2668, 0.7853982
    %vm2670 = vcmp.lt.s32.totalorder %v164, 0
    %v2671 = vand.u32 %v164, 2139095040
    %v2672 = vshrl.u32 %v2671, 23
    %v2673 = vsub.s32 %v2672, 127
    %v2674 = vand.u32 2147483647, %v164
    %v2675 = vand.u32 %v2674, 8388607
    %v2676 = vor.u32 %v2675, 8388608
    %v2677 = vsub.s32 0, %v2676
    %v2678 = vadd.s32 %v2673, 1
    %vm2679 = vcmp.gt.s32.totalorder %v2678, 0
    %v2680 = vsel %vm2679, %v2678, 0
    %v2681 = vshrl.u32 %v2680, 5
    %v2682 = vand.u32 %v2680, 31
    %v2683 = vsub.s32 32, %v2682
    %v2684 = vshrl.u32 683565275, %v2683
    %v2685 = vshll.u32 683565275, %v2682
    %v2686 = vshrl.u32 2475754826, %v2683
    %v2687 = vor.u32 %v2685, %v2686
    %v2688 = vshll.u32 2475754826, %v2682
    %v2689 = vshrl.u32 2131351028, %v2683
    %v2690 = vor.u32 %v2688, %v2689
    %v2691 = vshll.u32 2131351028, %v2682
    %v2692 = vshrl.u32 2102212464, %v2683
    %v2693 = vor.u32 %v2691, %v2692
    %v2694 = vshll.u32 2102212464, %v2682
    %v2695 = vshrl.u32 920167782, %v2683
    %v2696 = vor.u32 %v2694, %v2695
    %v2697 = vshll.u32 920167782, %v2682
    %v2698 = vshrl.u32 1326507024, %v2683
    %v2699 = vor.u32 %v2697, %v2698
    %vm2700 = vcmp.lt.s32.totalorder %v2681, 1
    %vm2701 = vcmp.lt.s32.totalorder %v2681, 2
    %vm2702 = vcmp.lt.s32.totalorder %v2681, 3
    %vm2703 = vcmp.lt.s32.totalorder %v2681, 4
    %v2704 = vsel %vm2700, %v2684, %v2687
    %v2705 = vsel %vm2703, %v2693, 2102212464
    %v2706 = vsel %vm2702, %v2690, %v2705
    %v2707 = vsel %vm2701, %v2704, %v2706
    %v2708 = vsel %vm2700, %v2687, %v2690
    %v2709 = vsel %vm2703, %v2696, 920167782
    %v2710 = vsel %vm2702, %v2693, %v2709
    %v2711 = vsel %vm2701, %v2708, %v2710
    %v2712 = vsel %vm2700, %v2690, %v2693
    %v2713 = vsel %vm2703, %v2699, 1326507024
    %v2714 = vsel %vm2702, %v2696, %v2713
    %v2715 = vsel %vm2701, %v2712, %v2714
    %v2716 = vshll.u32 %v2676, 8
    %v2717 = vmul.u32.u64.compose %v2716, %v2715
    %v2718 = vextract.low.u32 %v2717
    %v2719 = vextract.high.u32 %v2717
    %v2720 = vmul.u32.u64.compose %v2716, %v2711
    %v2721 = vextract.low.u32 %v2720
    %v2722 = vextract.high.u32 %v2720
    %v2723 = vmul.u32 %v2716, %v2707
    %v2724 = vadd.s32 %v2719, %v2721
    %vm2725 = vc.u32 %v2719, %v2721
    %v2726 = vadd.s32 %v2722, 1
    %v2727 = vsel %vm2725, %v2726, %v2722
    %v2728 = vadd.s32 %v2723, %v2727
    %v2729 = vadd.s32 %v2728, 536870912
    %v2730 = vshrl.u32 %v2729, 30
    %v2731 = vshll.u32 %v2730, 30
    %v2732 = vsub.s32 %v2728, %v2731
    %vm2733 = vcmp.lt.s32.totalorder %v2732, 0
    %v2734 = vsub.s32 0, %v2732
    %v2735 = vsel %vm2733, %v2734, %v2732
    %v2736 = vclz %v2735
    %v2737 = vsub.s32 %v2736, 2
    %vm2738 = vcmp.gt.s32.totalorder 0, %v2737
    %v2739 = vsel %vm2738, 0, %v2737
    %v2740 = vsub.s32 32, %v2739
    %v2741 = vshll.u32 %v2732, %v2739
    %v2742 = vshrl.u32 %v2724, %v2740
    %v2743 = vor.u32 %v2741, %v2742
    %v2744 = vsub.s32 4294967266, %v2739
    %v2745 = vadd.s32 %v2744, 127
    %v2746 = vshll.u32 %v2745, 23
    %v2747 = vor.u32 4788187, %v2746
    %v2748 = vand.u32 2147483647, %v2747
    %v2750 = vcvt.s32.f32 %v2743
    %v2751 = vmul.f32 %v2750, %v2748
    %v2752 = vxor.u32 %v2751, 2147483648
    %v2753 = vsel %vm2670, %v2752, %v2751
    %v2754 = vsub.s32 4, %v2730
    %v2755 = vsel %vm2670, %v2754, %v2730
    %v2756 = vsel %vm2669, %v164, %v2753
    %v2757 = vsel %vm2669, 0, %v2755
    %v2758 = vcosq.f32.pop %v2756
    %v2759 = vsinq.f32.pop %v2756
    %vm2760 = vweird.f32 %v164
    %v2761 = vadd.s32 %v2757, 3
    %v2762 = vand.u32 %v2761, 3
    %vm2763 = vcmp.lt.s32.totalorder %v2762, 2
    %vm2764 = vcmp.eq.s32.totalorder %v2762, 0
    %v2765 = vxor.u32 %v2759, 2147483648
    %v2766 = vsel %vm2764, %v2758, %v2765
    %vm2767 = vcmp.eq.s32.totalorder %v2762, 2
    %v2768 = vxor.u32 %v2758, 2147483648
    %v2769 = vsel %vm2767, %v2768, %v2759
    %v2770 = vsel %vm2763, %v2766, %v2769
    %v2771 = vsel %vm2760, nan, %v2770
    %v2772 = vand.u32 2147483647, %v165
    %vm2773 = vcmp.le.f32.partialorder %v2772, 0.7853982
    %vm2774 = vcmp.lt.s32.totalorder %v165, 0
    %v2775 = vand.u32 %v165, 2139095040
    %v2776 = vshrl.u32 %v2775, 23
    %v2777 = vsub.s32 %v2776, 127
    %v2778 = vand.u32 2147483647, %v165
    %v2779 = vand.u32 %v2778, 8388607
    %v2780 = vor.u32 %v2779, 8388608
    %v2781 = vsub.s32 0, %v2780
    %v2782 = vadd.s32 %v2777, 1
    %vm2783 = vcmp.gt.s32.totalorder %v2782, 0
    %v2784 = vsel %vm2783, %v2782, 0
    %v2785 = vshrl.u32 %v2784, 5
    %v2786 = vand.u32 %v2784, 31
    %v2787 = vsub.s32 32, %v2786
    %v2788 = vshrl.u32 683565275, %v2787
    %v2789 = vshll.u32 683565275, %v2786
    %v2790 = vshrl.u32 2475754826, %v2787
    %v2791 = vor.u32 %v2789, %v2790
    %v2792 = vshll.u32 2475754826, %v2786
    %v2793 = vshrl.u32 2131351028, %v2787
    %v2794 = vor.u32 %v2792, %v2793
    %v2795 = vshll.u32 2131351028, %v2786
    %v2796 = vshrl.u32 2102212464, %v2787
    %v2797 = vor.u32 %v2795, %v2796
    %v2798 = vshll.u32 2102212464, %v2786
    %v2799 = vshrl.u32 920167782, %v2787
    %v2800 = vor.u32 %v2798, %v2799
    %v2801 = vshll.u32 920167782, %v2786
    %v2802 = vshrl.u32 1326507024, %v2787
    %v2803 = vor.u32 %v2801, %v2802
    %vm2804 = vcmp.lt.s32.totalorder %v2785, 1
    %vm2805 = vcmp.lt.s32.totalorder %v2785, 2
    %vm2806 = vcmp.lt.s32.totalorder %v2785, 3
    %vm2807 = vcmp.lt.s32.totalorder %v2785, 4
    %v2808 = vsel %vm2804, %v2788, %v2791
    %v2809 = vsel %vm2807, %v2797, 2102212464
    %v2810 = vsel %vm2806, %v2794, %v2809
    %v2811 = vsel %vm2805, %v2808, %v2810
    %v2812 = vsel %vm2804, %v2791, %v2794
    %v2813 = vsel %vm2807, %v2800, 920167782
    %v2814 = vsel %vm2806, %v2797, %v2813
    %v2815 = vsel %vm2805, %v2812, %v2814
    %v2816 = vsel %vm2804, %v2794, %v2797
    %v2817 = vsel %vm2807, %v2803, 1326507024
    %v2818 = vsel %vm2806, %v2800, %v2817
    %v2819 = vsel %vm2805, %v2816, %v2818
    %v2820 = vshll.u32 %v2780, 8
    %v2821 = vmul.u32.u64.compose %v2820, %v2819
    %v2822 = vextract.low.u32 %v2821
    %v2823 = vextract.high.u32 %v2821
    %v2824 = vmul.u32.u64.compose %v2820, %v2815
    %v2825 = vextract.low.u32 %v2824
    %v2826 = vextract.high.u32 %v2824
    %v2827 = vmul.u32 %v2820, %v2811
    %v2828 = vadd.s32 %v2823, %v2825
    %vm2829 = vc.u32 %v2823, %v2825
    %v2830 = vadd.s32 %v2826, 1
    %v2831 = vsel %vm2829, %v2830, %v2826
    %v2832 = vadd.s32 %v2827, %v2831
    %v2833 = vadd.s32 %v2832, 536870912
    %v2834 = vshrl.u32 %v2833, 30
    %v2835 = vshll.u32 %v2834, 30
    %v2836 = vsub.s32 %v2832, %v2835
    %vm2837 = vcmp.lt.s32.totalorder %v2836, 0
    %v2838 = vsub.s32 0, %v2836
    %v2839 = vsel %vm2837, %v2838, %v2836
    %v2840 = vclz %v2839
    %v2841 = vsub.s32 %v2840, 2
    %vm2842 = vcmp.gt.s32.totalorder 0, %v2841
    %v2843 = vsel %vm2842, 0, %v2841
    %v2844 = vsub.s32 32, %v2843
    %v2845 = vshll.u32 %v2836, %v2843
    %v2846 = vshrl.u32 %v2828, %v2844
    %v2847 = vor.u32 %v2845, %v2846
    %v2848 = vsub.s32 4294967266, %v2843
    %v2849 = vadd.s32 %v2848, 127
    %v2850 = vshll.u32 %v2849, 23
    %v2851 = vor.u32 4788187, %v2850
    %v2852 = vand.u32 2147483647, %v2851
    %v2854 = vcvt.s32.f32 %v2847
    %v2855 = vmul.f32 %v2854, %v2852
    %v2856 = vxor.u32 %v2855, 2147483648
    %v2857 = vsel %vm2774, %v2856, %v2855
    %v2858 = vsub.s32 4, %v2834
    %v2859 = vsel %vm2774, %v2858, %v2834
    %v2860 = vsel %vm2773, %v165, %v2857
    %v2861 = vsel %vm2773, 0, %v2859
    %v2862 = vcosq.f32.pop %v2860
    %v2863 = vsinq.f32.pop %v2860
    %vm2864 = vweird.f32 %v165
    %v2865 = vadd.s32 %v2861, 3
    %v2866 = vand.u32 %v2865, 3
    %vm2867 = vcmp.lt.s32.totalorder %v2866, 2
    %vm2868 = vcmp.eq.s32.totalorder %v2866, 0
    %v2869 = vxor.u32 %v2863, 2147483648
    %v2870 = vsel %vm2868, %v2862, %v2869
    %vm2871 = vcmp.eq.s32.totalorder %v2866, 2
    %v2872 = vxor.u32 %v2862, 2147483648
    %v2873 = vsel %vm2871, %v2872, %v2863
    %v2874 = vsel %vm2867, %v2870, %v2873
    %v2875 = vsel %vm2864, nan, %v2874
    %v2876 = vand.u32 2147483647, %v166
    %vm2877 = vcmp.le.f32.partialorder %v2876, 0.7853982
    %vm2878 = vcmp.lt.s32.totalorder %v166, 0
    %v2879 = vand.u32 %v166, 2139095040
    %v2880 = vshrl.u32 %v2879, 23
    %v2881 = vsub.s32 %v2880, 127
    %v2882 = vand.u32 2147483647, %v166
    %v2883 = vand.u32 %v2882, 8388607
    %v2884 = vor.u32 %v2883, 8388608
    %v2885 = vsub.s32 0, %v2884
    %v2886 = vadd.s32 %v2881, 1
    %vm2887 = vcmp.gt.s32.totalorder %v2886, 0
    %v2888 = vsel %vm2887, %v2886, 0
    %v2889 = vshrl.u32 %v2888, 5
    %v2890 = vand.u32 %v2888, 31
    %v2891 = vsub.s32 32, %v2890
    %v2892 = vshrl.u32 683565275, %v2891
    %v2893 = vshll.u32 683565275, %v2890
    %v2894 = vshrl.u32 2475754826, %v2891
    %v2895 = vor.u32 %v2893, %v2894
    %v2896 = vshll.u32 2475754826, %v2890
    %v2897 = vshrl.u32 2131351028, %v2891
    %v2898 = vor.u32 %v2896, %v2897
    %v2899 = vshll.u32 2131351028, %v2890
    %v2900 = vshrl.u32 2102212464, %v2891
    %v2901 = vor.u32 %v2899, %v2900
    %v2902 = vshll.u32 2102212464, %v2890
    %v2903 = vshrl.u32 920167782, %v2891
    %v2904 = vor.u32 %v2902, %v2903
    %v2905 = vshll.u32 920167782, %v2890
    %v2906 = vshrl.u32 1326507024, %v2891
    %v2907 = vor.u32 %v2905, %v2906
    %vm2908 = vcmp.lt.s32.totalorder %v2889, 1
    %vm2909 = vcmp.lt.s32.totalorder %v2889, 2
    %vm2910 = vcmp.lt.s32.totalorder %v2889, 3
    %vm2911 = vcmp.lt.s32.totalorder %v2889, 4
    %v2912 = vsel %vm2908, %v2892, %v2895
    %v2913 = vsel %vm2911, %v2901, 2102212464
    %v2914 = vsel %vm2910, %v2898, %v2913
    %v2915 = vsel %vm2909, %v2912, %v2914
    %v2916 = vsel %vm2908, %v2895, %v2898
    %v2917 = vsel %vm2911, %v2904, 920167782
    %v2918 = vsel %vm2910, %v2901, %v2917
    %v2919 = vsel %vm2909, %v2916, %v2918
    %v2920 = vsel %vm2908, %v2898, %v2901
    %v2921 = vsel %vm2911, %v2907, 1326507024
    %v2922 = vsel %vm2910, %v2904, %v2921
    %v2923 = vsel %vm2909, %v2920, %v2922
    %v2924 = vshll.u32 %v2884, 8
    %v2925 = vmul.u32.u64.compose %v2924, %v2923
    %v2926 = vextract.low.u32 %v2925
    %v2927 = vextract.high.u32 %v2925
    %v2928 = vmul.u32.u64.compose %v2924, %v2919
    %v2929 = vextract.low.u32 %v2928
    %v2930 = vextract.high.u32 %v2928
    %v2931 = vmul.u32 %v2924, %v2915
    %v2932 = vadd.s32 %v2927, %v2929
    %vm2933 = vc.u32 %v2927, %v2929
    %v2934 = vadd.s32 %v2930, 1
    %v2935 = vsel %vm2933, %v2934, %v2930
    %v2936 = vadd.s32 %v2931, %v2935
    %v2937 = vadd.s32 %v2936, 536870912
    %v2938 = vshrl.u32 %v2937, 30
    %v2939 = vshll.u32 %v2938, 30
    %v2940 = vsub.s32 %v2936, %v2939
    %vm2941 = vcmp.lt.s32.totalorder %v2940, 0
    %v2942 = vsub.s32 0, %v2940
    %v2943 = vsel %vm2941, %v2942, %v2940
    %v2944 = vclz %v2943
    %v2945 = vsub.s32 %v2944, 2
    %vm2946 = vcmp.gt.s32.totalorder 0, %v2945
    %v2947 = vsel %vm2946, 0, %v2945
    %v2948 = vsub.s32 32, %v2947
    %v2949 = vshll.u32 %v2940, %v2947
    %v2950 = vshrl.u32 %v2932, %v2948
    %v2951 = vor.u32 %v2949, %v2950
    %v2952 = vsub.s32 4294967266, %v2947
    %v2953 = vadd.s32 %v2952, 127
    %v2954 = vshll.u32 %v2953, 23
    %v2955 = vor.u32 4788187, %v2954
    %v2956 = vand.u32 2147483647, %v2955
    %v2958 = vcvt.s32.f32 %v2951
    %v2959 = vmul.f32 %v2958, %v2956
    %v2960 = vxor.u32 %v2959, 2147483648
    %v2961 = vsel %vm2878, %v2960, %v2959
    %v2962 = vsub.s32 4, %v2938
    %v2963 = vsel %vm2878, %v2962, %v2938
    %v2964 = vsel %vm2877, %v166, %v2961
    %v2965 = vsel %vm2877, 0, %v2963
    %v2966 = vcosq.f32.pop %v2964
    %v2967 = vsinq.f32.pop %v2964
    %vm2968 = vweird.f32 %v166
    %v2969 = vadd.s32 %v2965, 3
    %v2970 = vand.u32 %v2969, 3
    %vm2971 = vcmp.lt.s32.totalorder %v2970, 2
    %vm2972 = vcmp.eq.s32.totalorder %v2970, 0
    %v2973 = vxor.u32 %v2967, 2147483648
    %v2974 = vsel %vm2972, %v2966, %v2973
    %vm2975 = vcmp.eq.s32.totalorder %v2970, 2
    %v2976 = vxor.u32 %v2966, 2147483648
    %v2977 = vsel %vm2975, %v2976, %v2967
    %v2978 = vsel %vm2971, %v2974, %v2977
    %v2979 = vsel %vm2968, nan, %v2978
    %v2980 = vand.u32 2147483647, %v167
    %vm2981 = vcmp.le.f32.partialorder %v2980, 0.7853982
    %vm2982 = vcmp.lt.s32.totalorder %v167, 0
    %v2983 = vand.u32 %v167, 2139095040
    %v2984 = vshrl.u32 %v2983, 23
    %v2985 = vsub.s32 %v2984, 127
    %v2986 = vand.u32 2147483647, %v167
    %v2987 = vand.u32 %v2986, 8388607
    %v2988 = vor.u32 %v2987, 8388608
    %v2989 = vsub.s32 0, %v2988
    %v2990 = vadd.s32 %v2985, 1
    %vm2991 = vcmp.gt.s32.totalorder %v2990, 0
    %v2992 = vsel %vm2991, %v2990, 0
    %v2993 = vshrl.u32 %v2992, 5
    %v2994 = vand.u32 %v2992, 31
    %v2995 = vsub.s32 32, %v2994
    %v2996 = vshrl.u32 683565275, %v2995
    %v2997 = vshll.u32 683565275, %v2994
    %v2998 = vshrl.u32 2475754826, %v2995
    %v2999 = vor.u32 %v2997, %v2998
    %v3000 = vshll.u32 2475754826, %v2994
    %v3001 = vshrl.u32 2131351028, %v2995
    %v3002 = vor.u32 %v3000, %v3001
    %v3003 = vshll.u32 2131351028, %v2994
    %v3004 = vshrl.u32 2102212464, %v2995
    %v3005 = vor.u32 %v3003, %v3004
    %v3006 = vshll.u32 2102212464, %v2994
    %v3007 = vshrl.u32 920167782, %v2995
    %v3008 = vor.u32 %v3006, %v3007
    %v3009 = vshll.u32 920167782, %v2994
    %v3010 = vshrl.u32 1326507024, %v2995
    %v3011 = vor.u32 %v3009, %v3010
    %vm3012 = vcmp.lt.s32.totalorder %v2993, 1
    %vm3013 = vcmp.lt.s32.totalorder %v2993, 2
    %vm3014 = vcmp.lt.s32.totalorder %v2993, 3
    %vm3015 = vcmp.lt.s32.totalorder %v2993, 4
    %v3016 = vsel %vm3012, %v2996, %v2999
    %v3017 = vsel %vm3015, %v3005, 2102212464
    %v3018 = vsel %vm3014, %v3002, %v3017
    %v3019 = vsel %vm3013, %v3016, %v3018
    %v3020 = vsel %vm3012, %v2999, %v3002
    %v3021 = vsel %vm3015, %v3008, 920167782
    %v3022 = vsel %vm3014, %v3005, %v3021
    %v3023 = vsel %vm3013, %v3020, %v3022
    %v3024 = vsel %vm3012, %v3002, %v3005
    %v3025 = vsel %vm3015, %v3011, 1326507024
    %v3026 = vsel %vm3014, %v3008, %v3025
    %v3027 = vsel %vm3013, %v3024, %v3026
    %v3028 = vshll.u32 %v2988, 8
    %v3029 = vmul.u32.u64.compose %v3028, %v3027
    %v3030 = vextract.low.u32 %v3029
    %v3031 = vextract.high.u32 %v3029
    %v3032 = vmul.u32.u64.compose %v3028, %v3023
    %v3033 = vextract.low.u32 %v3032
    %v3034 = vextract.high.u32 %v3032
    %v3035 = vmul.u32 %v3028, %v3019
    %v3036 = vadd.s32 %v3031, %v3033
    %vm3037 = vc.u32 %v3031, %v3033
    %v3038 = vadd.s32 %v3034, 1
    %v3039 = vsel %vm3037, %v3038, %v3034
    %v3040 = vadd.s32 %v3035, %v3039
    %v3041 = vadd.s32 %v3040, 536870912
    %v3042 = vshrl.u32 %v3041, 30
    %v3043 = vshll.u32 %v3042, 30
    %v3044 = vsub.s32 %v3040, %v3043
    %vm3045 = vcmp.lt.s32.totalorder %v3044, 0
    %v3046 = vsub.s32 0, %v3044
    %v3047 = vsel %vm3045, %v3046, %v3044
    %v3048 = vclz %v3047
    %v3049 = vsub.s32 %v3048, 2
    %vm3050 = vcmp.gt.s32.totalorder 0, %v3049
    %v3051 = vsel %vm3050, 0, %v3049
    %v3052 = vsub.s32 32, %v3051
    %v3053 = vshll.u32 %v3044, %v3051
    %v3054 = vshrl.u32 %v3036, %v3052
    %v3055 = vor.u32 %v3053, %v3054
    %v3056 = vsub.s32 4294967266, %v3051
    %v3057 = vadd.s32 %v3056, 127
    %v3058 = vshll.u32 %v3057, 23
    %v3059 = vor.u32 4788187, %v3058
    %v3060 = vand.u32 2147483647, %v3059
    %v3062 = vcvt.s32.f32 %v3055
    %v3063 = vmul.f32 %v3062, %v3060
    %v3064 = vxor.u32 %v3063, 2147483648
    %v3065 = vsel %vm2982, %v3064, %v3063
    %v3066 = vsub.s32 4, %v3042
    %v3067 = vsel %vm2982, %v3066, %v3042
    %v3068 = vsel %vm2981, %v167, %v3065
    %v3069 = vsel %vm2981, 0, %v3067
    %v3070 = vcosq.f32.pop %v3068
    %v3071 = vsinq.f32.pop %v3068
    %vm3072 = vweird.f32 %v167
    %v3073 = vadd.s32 %v3069, 3
    %v3074 = vand.u32 %v3073, 3
    %vm3075 = vcmp.lt.s32.totalorder %v3074, 2
    %vm3076 = vcmp.eq.s32.totalorder %v3074, 0
    %v3077 = vxor.u32 %v3071, 2147483648
    %v3078 = vsel %vm3076, %v3070, %v3077
    %vm3079 = vcmp.eq.s32.totalorder %v3074, 2
    %v3080 = vxor.u32 %v3070, 2147483648
    %v3081 = vsel %vm3079, %v3080, %v3071
    %v3082 = vsel %vm3075, %v3078, %v3081
    %v3083 = vsel %vm3072, nan, %v3082
    %v3084 = vand.u32 2147483647, %v168
    %vm3085 = vcmp.le.f32.partialorder %v3084, 0.7853982
    %vm3086 = vcmp.lt.s32.totalorder %v168, 0
    %v3087 = vand.u32 %v168, 2139095040
    %v3088 = vshrl.u32 %v3087, 23
    %v3089 = vsub.s32 %v3088, 127
    %v3090 = vand.u32 2147483647, %v168
    %v3091 = vand.u32 %v3090, 8388607
    %v3092 = vor.u32 %v3091, 8388608
    %v3093 = vsub.s32 0, %v3092
    %v3094 = vadd.s32 %v3089, 1
    %vm3095 = vcmp.gt.s32.totalorder %v3094, 0
    %v3096 = vsel %vm3095, %v3094, 0
    %v3097 = vshrl.u32 %v3096, 5
    %v3098 = vand.u32 %v3096, 31
    %v3099 = vsub.s32 32, %v3098
    %v3100 = vshrl.u32 683565275, %v3099
    %v3101 = vshll.u32 683565275, %v3098
    %v3102 = vshrl.u32 2475754826, %v3099
    %v3103 = vor.u32 %v3101, %v3102
    %v3104 = vshll.u32 2475754826, %v3098
    %v3105 = vshrl.u32 2131351028, %v3099
    %v3106 = vor.u32 %v3104, %v3105
    %v3107 = vshll.u32 2131351028, %v3098
    %v3108 = vshrl.u32 2102212464, %v3099
    %v3109 = vor.u32 %v3107, %v3108
    %v3110 = vshll.u32 2102212464, %v3098
    %v3111 = vshrl.u32 920167782, %v3099
    %v3112 = vor.u32 %v3110, %v3111
    %v3113 = vshll.u32 920167782, %v3098
    %v3114 = vshrl.u32 1326507024, %v3099
    %v3115 = vor.u32 %v3113, %v3114
    %vm3116 = vcmp.lt.s32.totalorder %v3097, 1
    %vm3117 = vcmp.lt.s32.totalorder %v3097, 2
    %vm3118 = vcmp.lt.s32.totalorder %v3097, 3
    %vm3119 = vcmp.lt.s32.totalorder %v3097, 4
    %v3120 = vsel %vm3116, %v3100, %v3103
    %v3121 = vsel %vm3119, %v3109, 2102212464
    %v3122 = vsel %vm3118, %v3106, %v3121
    %v3123 = vsel %vm3117, %v3120, %v3122
    %v3124 = vsel %vm3116, %v3103, %v3106
    %v3125 = vsel %vm3119, %v3112, 920167782
    %v3126 = vsel %vm3118, %v3109, %v3125
    %v3127 = vsel %vm3117, %v3124, %v3126
    %v3128 = vsel %vm3116, %v3106, %v3109
    %v3129 = vsel %vm3119, %v3115, 1326507024
    %v3130 = vsel %vm3118, %v3112, %v3129
    %v3131 = vsel %vm3117, %v3128, %v3130
    %v3132 = vshll.u32 %v3092, 8
    %v3133 = vmul.u32.u64.compose %v3132, %v3131
    %v3134 = vextract.low.u32 %v3133
    %v3135 = vextract.high.u32 %v3133
    %v3136 = vmul.u32.u64.compose %v3132, %v3127
    %v3137 = vextract.low.u32 %v3136
    %v3138 = vextract.high.u32 %v3136
    %v3139 = vmul.u32 %v3132, %v3123
    %v3140 = vadd.s32 %v3135, %v3137
    %vm3141 = vc.u32 %v3135, %v3137
    %v3142 = vadd.s32 %v3138, 1
    %v3143 = vsel %vm3141, %v3142, %v3138
    %v3144 = vadd.s32 %v3139, %v3143
    %v3145 = vadd.s32 %v3144, 536870912
    %v3146 = vshrl.u32 %v3145, 30
    %v3147 = vshll.u32 %v3146, 30
    %v3148 = vsub.s32 %v3144, %v3147
    %vm3149 = vcmp.lt.s32.totalorder %v3148, 0
    %v3150 = vsub.s32 0, %v3148
    %v3151 = vsel %vm3149, %v3150, %v3148
    %v3152 = vclz %v3151
    %v3153 = vsub.s32 %v3152, 2
    %vm3154 = vcmp.gt.s32.totalorder 0, %v3153
    %v3155 = vsel %vm3154, 0, %v3153
    %v3156 = vsub.s32 32, %v3155
    %v3157 = vshll.u32 %v3148, %v3155
    %v3158 = vshrl.u32 %v3140, %v3156
    %v3159 = vor.u32 %v3157, %v3158
    %v3160 = vsub.s32 4294967266, %v3155
    %v3161 = vadd.s32 %v3160, 127
    %v3162 = vshll.u32 %v3161, 23
    %v3163 = vor.u32 4788187, %v3162
    %v3164 = vand.u32 2147483647, %v3163
    %v3166 = vcvt.s32.f32 %v3159
    %v3167 = vmul.f32 %v3166, %v3164
    %v3168 = vxor.u32 %v3167, 2147483648
    %v3169 = vsel %vm3086, %v3168, %v3167
    %v3170 = vsub.s32 4, %v3146
    %v3171 = vsel %vm3086, %v3170, %v3146
    %v3172 = vsel %vm3085, %v168, %v3169
    %v3173 = vsel %vm3085, 0, %v3171
    %v3174 = vcosq.f32.pop %v3172
    %v3175 = vsinq.f32.pop %v3172
    %vm3176 = vweird.f32 %v168
    %v3177 = vadd.s32 %v3173, 3
    %v3178 = vand.u32 %v3177, 3
    %vm3179 = vcmp.lt.s32.totalorder %v3178, 2
    %vm3180 = vcmp.eq.s32.totalorder %v3178, 0
    %v3181 = vxor.u32 %v3175, 2147483648
    %v3182 = vsel %vm3180, %v3174, %v3181
    %vm3183 = vcmp.eq.s32.totalorder %v3178, 2
    %v3184 = vxor.u32 %v3174, 2147483648
    %v3185 = vsel %vm3183, %v3184, %v3175
    %v3186 = vsel %vm3179, %v3182, %v3185
    %v3187 = vsel %vm3176, nan, %v3186
    %v3188 = vand.u32 2147483647, %v169
    %vm3189 = vcmp.le.f32.partialorder %v3188, 0.7853982
    %vm3190 = vcmp.lt.s32.totalorder %v169, 0
    %v3191 = vand.u32 %v169, 2139095040
    %v3192 = vshrl.u32 %v3191, 23
    %v3193 = vsub.s32 %v3192, 127
    %v3194 = vand.u32 2147483647, %v169
    %v3195 = vand.u32 %v3194, 8388607
    %v3196 = vor.u32 %v3195, 8388608
    %v3197 = vsub.s32 0, %v3196
    %v3198 = vadd.s32 %v3193, 1
    %vm3199 = vcmp.gt.s32.totalorder %v3198, 0
    %v3200 = vsel %vm3199, %v3198, 0
    %v3201 = vshrl.u32 %v3200, 5
    %v3202 = vand.u32 %v3200, 31
    %v3203 = vsub.s32 32, %v3202
    %v3204 = vshrl.u32 683565275, %v3203
    %v3205 = vshll.u32 683565275, %v3202
    %v3206 = vshrl.u32 2475754826, %v3203
    %v3207 = vor.u32 %v3205, %v3206
    %v3208 = vshll.u32 2475754826, %v3202
    %v3209 = vshrl.u32 2131351028, %v3203
    %v3210 = vor.u32 %v3208, %v3209
    %v3211 = vshll.u32 2131351028, %v3202
    %v3212 = vshrl.u32 2102212464, %v3203
    %v3213 = vor.u32 %v3211, %v3212
    %v3214 = vshll.u32 2102212464, %v3202
    %v3215 = vshrl.u32 920167782, %v3203
    %v3216 = vor.u32 %v3214, %v3215
    %v3217 = vshll.u32 920167782, %v3202
    %v3218 = vshrl.u32 1326507024, %v3203
    %v3219 = vor.u32 %v3217, %v3218
    %vm3220 = vcmp.lt.s32.totalorder %v3201, 1
    %vm3221 = vcmp.lt.s32.totalorder %v3201, 2
    %vm3222 = vcmp.lt.s32.totalorder %v3201, 3
    %vm3223 = vcmp.lt.s32.totalorder %v3201, 4
    %v3224 = vsel %vm3220, %v3204, %v3207
    %v3225 = vsel %vm3223, %v3213, 2102212464
    %v3226 = vsel %vm3222, %v3210, %v3225
    %v3227 = vsel %vm3221, %v3224, %v3226
    %v3228 = vsel %vm3220, %v3207, %v3210
    %v3229 = vsel %vm3223, %v3216, 920167782
    %v3230 = vsel %vm3222, %v3213, %v3229
    %v3231 = vsel %vm3221, %v3228, %v3230
    %v3232 = vsel %vm3220, %v3210, %v3213
    %v3233 = vsel %vm3223, %v3219, 1326507024
    %v3234 = vsel %vm3222, %v3216, %v3233
    %v3235 = vsel %vm3221, %v3232, %v3234
    %v3236 = vshll.u32 %v3196, 8
    %v3237 = vmul.u32.u64.compose %v3236, %v3235
    %v3238 = vextract.low.u32 %v3237
    %v3239 = vextract.high.u32 %v3237
    %v3240 = vmul.u32.u64.compose %v3236, %v3231
    %v3241 = vextract.low.u32 %v3240
    %v3242 = vextract.high.u32 %v3240
    %v3243 = vmul.u32 %v3236, %v3227
    %v3244 = vadd.s32 %v3239, %v3241
    %vm3245 = vc.u32 %v3239, %v3241
    %v3246 = vadd.s32 %v3242, 1
    %v3247 = vsel %vm3245, %v3246, %v3242
    %v3248 = vadd.s32 %v3243, %v3247
    %v3249 = vadd.s32 %v3248, 536870912
    %v3250 = vshrl.u32 %v3249, 30
    %v3251 = vshll.u32 %v3250, 30
    %v3252 = vsub.s32 %v3248, %v3251
    %vm3253 = vcmp.lt.s32.totalorder %v3252, 0
    %v3254 = vsub.s32 0, %v3252
    %v3255 = vsel %vm3253, %v3254, %v3252
    %v3256 = vclz %v3255
    %v3257 = vsub.s32 %v3256, 2
    %vm3258 = vcmp.gt.s32.totalorder 0, %v3257
    %v3259 = vsel %vm3258, 0, %v3257
    %v3260 = vsub.s32 32, %v3259
    %v3261 = vshll.u32 %v3252, %v3259
    %v3262 = vshrl.u32 %v3244, %v3260
    %v3263 = vor.u32 %v3261, %v3262
    %v3264 = vsub.s32 4294967266, %v3259
    %v3265 = vadd.s32 %v3264, 127
    %v3266 = vshll.u32 %v3265, 23
    %v3267 = vor.u32 4788187, %v3266
    %v3268 = vand.u32 2147483647, %v3267
    %v3270 = vcvt.s32.f32 %v3263
    %v3271 = vmul.f32 %v3270, %v3268
    %v3272 = vxor.u32 %v3271, 2147483648
    %v3273 = vsel %vm3190, %v3272, %v3271
    %v3274 = vsub.s32 4, %v3250
    %v3275 = vsel %vm3190, %v3274, %v3250
    %v3276 = vsel %vm3189, %v169, %v3273
    %v3277 = vsel %vm3189, 0, %v3275
    %v3278 = vcosq.f32.pop %v3276
    %v3279 = vsinq.f32.pop %v3276
    %vm3280 = vweird.f32 %v169
    %v3281 = vadd.s32 %v3277, 3
    %v3282 = vand.u32 %v3281, 3
    %vm3283 = vcmp.lt.s32.totalorder %v3282, 2
    %vm3284 = vcmp.eq.s32.totalorder %v3282, 0
    %v3285 = vxor.u32 %v3279, 2147483648
    %v3286 = vsel %vm3284, %v3278, %v3285
    %vm3287 = vcmp.eq.s32.totalorder %v3282, 2
    %v3288 = vxor.u32 %v3278, 2147483648
    %v3289 = vsel %vm3287, %v3288, %v3279
    %v3290 = vsel %vm3283, %v3286, %v3289
    %v3291 = vsel %vm3280, nan, %v3290
    %v3292 = vand.u32 2147483647, %v170
    %vm3293 = vcmp.le.f32.partialorder %v3292, 0.7853982
    %vm3294 = vcmp.lt.s32.totalorder %v170, 0
    %v3295 = vand.u32 %v170, 2139095040
    %v3296 = vshrl.u32 %v3295, 23
    %v3297 = vsub.s32 %v3296, 127
    %v3298 = vand.u32 2147483647, %v170
    %v3299 = vand.u32 %v3298, 8388607
    %v3300 = vor.u32 %v3299, 8388608
    %v3301 = vsub.s32 0, %v3300
    %v3302 = vadd.s32 %v3297, 1
    %vm3303 = vcmp.gt.s32.totalorder %v3302, 0
    %v3304 = vsel %vm3303, %v3302, 0
    %v3305 = vshrl.u32 %v3304, 5
    %v3306 = vand.u32 %v3304, 31
    %v3307 = vsub.s32 32, %v3306
    %v3308 = vshrl.u32 683565275, %v3307
    %v3309 = vshll.u32 683565275, %v3306
    %v3310 = vshrl.u32 2475754826, %v3307
    %v3311 = vor.u32 %v3309, %v3310
    %v3312 = vshll.u32 2475754826, %v3306
    %v3313 = vshrl.u32 2131351028, %v3307
    %v3314 = vor.u32 %v3312, %v3313
    %v3315 = vshll.u32 2131351028, %v3306
    %v3316 = vshrl.u32 2102212464, %v3307
    %v3317 = vor.u32 %v3315, %v3316
    %v3318 = vshll.u32 2102212464, %v3306
    %v3319 = vshrl.u32 920167782, %v3307
    %v3320 = vor.u32 %v3318, %v3319
    %v3321 = vshll.u32 920167782, %v3306
    %v3322 = vshrl.u32 1326507024, %v3307
    %v3323 = vor.u32 %v3321, %v3322
    %vm3324 = vcmp.lt.s32.totalorder %v3305, 1
    %vm3325 = vcmp.lt.s32.totalorder %v3305, 2
    %vm3326 = vcmp.lt.s32.totalorder %v3305, 3
    %vm3327 = vcmp.lt.s32.totalorder %v3305, 4
    %v3328 = vsel %vm3324, %v3308, %v3311
    %v3329 = vsel %vm3327, %v3317, 2102212464
    %v3330 = vsel %vm3326, %v3314, %v3329
    %v3331 = vsel %vm3325, %v3328, %v3330
    %v3332 = vsel %vm3324, %v3311, %v3314
    %v3333 = vsel %vm3327, %v3320, 920167782
    %v3334 = vsel %vm3326, %v3317, %v3333
    %v3335 = vsel %vm3325, %v3332, %v3334
    %v3336 = vsel %vm3324, %v3314, %v3317
    %v3337 = vsel %vm3327, %v3323, 1326507024
    %v3338 = vsel %vm3326, %v3320, %v3337
    %v3339 = vsel %vm3325, %v3336, %v3338
    %v3340 = vshll.u32 %v3300, 8
    %v3341 = vmul.u32.u64.compose %v3340, %v3339
    %v3342 = vextract.low.u32 %v3341
    %v3343 = vextract.high.u32 %v3341
    %v3344 = vmul.u32.u64.compose %v3340, %v3335
    %v3345 = vextract.low.u32 %v3344
    %v3346 = vextract.high.u32 %v3344
    %v3347 = vmul.u32 %v3340, %v3331
    %v3348 = vadd.s32 %v3343, %v3345
    %vm3349 = vc.u32 %v3343, %v3345
    %v3350 = vadd.s32 %v3346, 1
    %v3351 = vsel %vm3349, %v3350, %v3346
    %v3352 = vadd.s32 %v3347, %v3351
    %v3353 = vadd.s32 %v3352, 536870912
    %v3354 = vshrl.u32 %v3353, 30
    %v3355 = vshll.u32 %v3354, 30
    %v3356 = vsub.s32 %v3352, %v3355
    %vm3357 = vcmp.lt.s32.totalorder %v3356, 0
    %v3358 = vsub.s32 0, %v3356
    %v3359 = vsel %vm3357, %v3358, %v3356
    %v3360 = vclz %v3359
    %v3361 = vsub.s32 %v3360, 2
    %vm3362 = vcmp.gt.s32.totalorder 0, %v3361
    %v3363 = vsel %vm3362, 0, %v3361
    %v3364 = vsub.s32 32, %v3363
    %v3365 = vshll.u32 %v3356, %v3363
    %v3366 = vshrl.u32 %v3348, %v3364
    %v3367 = vor.u32 %v3365, %v3366
    %v3368 = vsub.s32 4294967266, %v3363
    %v3369 = vadd.s32 %v3368, 127
    %v3370 = vshll.u32 %v3369, 23
    %v3371 = vor.u32 4788187, %v3370
    %v3372 = vand.u32 2147483647, %v3371
    %v3374 = vcvt.s32.f32 %v3367
    %v3375 = vmul.f32 %v3374, %v3372
    %v3376 = vxor.u32 %v3375, 2147483648
    %v3377 = vsel %vm3294, %v3376, %v3375
    %v3378 = vsub.s32 4, %v3354
    %v3379 = vsel %vm3294, %v3378, %v3354
    %v3380 = vsel %vm3293, %v170, %v3377
    %v3381 = vsel %vm3293, 0, %v3379
    %v3382 = vcosq.f32.pop %v3380
    %v3383 = vsinq.f32.pop %v3380
    %vm3384 = vweird.f32 %v170
    %v3385 = vadd.s32 %v3381, 3
    %v3386 = vand.u32 %v3385, 3
    %vm3387 = vcmp.lt.s32.totalorder %v3386, 2
    %vm3388 = vcmp.eq.s32.totalorder %v3386, 0
    %v3389 = vxor.u32 %v3383, 2147483648
    %v3390 = vsel %vm3388, %v3382, %v3389
    %vm3391 = vcmp.eq.s32.totalorder %v3386, 2
    %v3392 = vxor.u32 %v3382, 2147483648
    %v3393 = vsel %vm3391, %v3392, %v3383
    %v3394 = vsel %vm3387, %v3390, %v3393
    %v3395 = vsel %vm3384, nan, %v3394
    %v3396 = vand.u32 2147483647, %v171
    %vm3397 = vcmp.le.f32.partialorder %v3396, 0.7853982
    %vm3398 = vcmp.lt.s32.totalorder %v171, 0
    %v3399 = vand.u32 %v171, 2139095040
    %v3400 = vshrl.u32 %v3399, 23
    %v3401 = vsub.s32 %v3400, 127
    %v3402 = vand.u32 2147483647, %v171
    %v3403 = vand.u32 %v3402, 8388607
    %v3404 = vor.u32 %v3403, 8388608
    %v3405 = vsub.s32 0, %v3404
    %v3406 = vadd.s32 %v3401, 1
    %vm3407 = vcmp.gt.s32.totalorder %v3406, 0
    %v3408 = vsel %vm3407, %v3406, 0
    %v3409 = vshrl.u32 %v3408, 5
    %v3410 = vand.u32 %v3408, 31
    %v3411 = vsub.s32 32, %v3410
    %v3412 = vshrl.u32 683565275, %v3411
    %v3413 = vshll.u32 683565275, %v3410
    %v3414 = vshrl.u32 2475754826, %v3411
    %v3415 = vor.u32 %v3413, %v3414
    %v3416 = vshll.u32 2475754826, %v3410
    %v3417 = vshrl.u32 2131351028, %v3411
    %v3418 = vor.u32 %v3416, %v3417
    %v3419 = vshll.u32 2131351028, %v3410
    %v3420 = vshrl.u32 2102212464, %v3411
    %v3421 = vor.u32 %v3419, %v3420
    %v3422 = vshll.u32 2102212464, %v3410
    %v3423 = vshrl.u32 920167782, %v3411
    %v3424 = vor.u32 %v3422, %v3423
    %v3425 = vshll.u32 920167782, %v3410
    %v3426 = vshrl.u32 1326507024, %v3411
    %v3427 = vor.u32 %v3425, %v3426
    %vm3428 = vcmp.lt.s32.totalorder %v3409, 1
    %vm3429 = vcmp.lt.s32.totalorder %v3409, 2
    %vm3430 = vcmp.lt.s32.totalorder %v3409, 3
    %vm3431 = vcmp.lt.s32.totalorder %v3409, 4
    %v3432 = vsel %vm3428, %v3412, %v3415
    %v3433 = vsel %vm3431, %v3421, 2102212464
    %v3434 = vsel %vm3430, %v3418, %v3433
    %v3435 = vsel %vm3429, %v3432, %v3434
    %v3436 = vsel %vm3428, %v3415, %v3418
    %v3437 = vsel %vm3431, %v3424, 920167782
    %v3438 = vsel %vm3430, %v3421, %v3437
    %v3439 = vsel %vm3429, %v3436, %v3438
    %v3440 = vsel %vm3428, %v3418, %v3421
    %v3441 = vsel %vm3431, %v3427, 1326507024
    %v3442 = vsel %vm3430, %v3424, %v3441
    %v3443 = vsel %vm3429, %v3440, %v3442
    %v3444 = vshll.u32 %v3404, 8
    %v3445 = vmul.u32.u64.compose %v3444, %v3443
    %v3446 = vextract.low.u32 %v3445
    %v3447 = vextract.high.u32 %v3445
    %v3448 = vmul.u32.u64.compose %v3444, %v3439
    %v3449 = vextract.low.u32 %v3448
    %v3450 = vextract.high.u32 %v3448
    %v3451 = vmul.u32 %v3444, %v3435
    %v3452 = vadd.s32 %v3447, %v3449
    %vm3453 = vc.u32 %v3447, %v3449
    %v3454 = vadd.s32 %v3450, 1
    %v3455 = vsel %vm3453, %v3454, %v3450
    %v3456 = vadd.s32 %v3451, %v3455
    %v3457 = vadd.s32 %v3456, 536870912
    %v3458 = vshrl.u32 %v3457, 30
    %v3459 = vshll.u32 %v3458, 30
    %v3460 = vsub.s32 %v3456, %v3459
    %vm3461 = vcmp.lt.s32.totalorder %v3460, 0
    %v3462 = vsub.s32 0, %v3460
    %v3463 = vsel %vm3461, %v3462, %v3460
    %v3464 = vclz %v3463
    %v3465 = vsub.s32 %v3464, 2
    %vm3466 = vcmp.gt.s32.totalorder 0, %v3465
    %v3467 = vsel %vm3466, 0, %v3465
    %v3468 = vsub.s32 32, %v3467
    %v3469 = vshll.u32 %v3460, %v3467
    %v3470 = vshrl.u32 %v3452, %v3468
    %v3471 = vor.u32 %v3469, %v3470
    %v3472 = vsub.s32 4294967266, %v3467
    %v3473 = vadd.s32 %v3472, 127
    %v3474 = vshll.u32 %v3473, 23
    %v3475 = vor.u32 4788187, %v3474
    %v3476 = vand.u32 2147483647, %v3475
    %v3478 = vcvt.s32.f32 %v3471
    %v3479 = vmul.f32 %v3478, %v3476
    %v3480 = vxor.u32 %v3479, 2147483648
    %v3481 = vsel %vm3398, %v3480, %v3479
    %v3482 = vsub.s32 4, %v3458
    %v3483 = vsel %vm3398, %v3482, %v3458
    %v3484 = vsel %vm3397, %v171, %v3481
    %v3485 = vsel %vm3397, 0, %v3483
    %v3486 = vcosq.f32.pop %v3484
    %v3487 = vsinq.f32.pop %v3484
    %vm3488 = vweird.f32 %v171
    %v3489 = vadd.s32 %v3485, 3
    %v3490 = vand.u32 %v3489, 3
    %vm3491 = vcmp.lt.s32.totalorder %v3490, 2
    %vm3492 = vcmp.eq.s32.totalorder %v3490, 0
    %v3493 = vxor.u32 %v3487, 2147483648
    %v3494 = vsel %vm3492, %v3486, %v3493
    %vm3495 = vcmp.eq.s32.totalorder %v3490, 2
    %v3496 = vxor.u32 %v3486, 2147483648
    %v3497 = vsel %vm3495, %v3496, %v3487
    %v3498 = vsel %vm3491, %v3494, %v3497
    %v3499 = vsel %vm3488, nan, %v3498
    %3500 = vst [vmem:[#allocation7] sm:$0xff] %v275
    %3501 = vst [vmem:[#allocation7 + $0x8] sm:$0xff] %v379
    %3502 = vst [vmem:[#allocation7 + $0x10] sm:$0xff] %v483
    %3503 = vst [vmem:[#allocation7 + $0x18] sm:$0xff] %v587
    %3504 = vst [vmem:[#allocation7 + $0x20] sm:$0xff] %v691
    %3505 = vst [vmem:[#allocation7 + $0x28] sm:$0xff] %v795
    %3506 = vst [vmem:[#allocation7 + $0x30] sm:$0xff] %v899
    %3507 = vst [vmem:[#allocation7 + $0x38] sm:$0xff] %v1003
    %3508 = vst [vmem:[#allocation7 + $0x40] sm:$0xff] %v1107
    %3509 = vst [vmem:[#allocation7 + $0x48] sm:$0xff] %v1211
    %3510 = vst [vmem:[#allocation7 + $0x50] sm:$0xff] %v1315
    %3511 = vst [vmem:[#allocation7 + $0x58] sm:$0xff] %v1419
    %3512 = vst [vmem:[#allocation7 + $0x60] sm:$0xff] %v1523
    %3513 = vst [vmem:[#allocation7 + $0x68] sm:$0xff] %v1627
    %3514 = vst [vmem:[#allocation7 + $0x70] sm:$0xff] %v1731
    %3515 = vst [vmem:[#allocation7 + $0x78] sm:$0xff] %v1835
    %3516 = vst [vmem:[#allocation7 + $0x80] sm:$0xff] %v1939
    %3517 = vst [vmem:[#allocation7 + $0x88] sm:$0xff] %v2043
    %3518 = vst [vmem:[#allocation7 + $0x90] sm:$0xff] %v2147
    %3519 = vst [vmem:[#allocation7 + $0x98] sm:$0xff] %v2251
    %3520 = vst [vmem:[#allocation7 + $0xa0] sm:$0xff] %v2355
    %3521 = vst [vmem:[#allocation7 + $0xa8] sm:$0xff] %v2459
    %3522 = vst [vmem:[#allocation7 + $0xb0] sm:$0xff] %v2563
    %3523 = vst [vmem:[#allocation7 + $0xb8] sm:$0xff] %v2667
    %3524 = vst [vmem:[#allocation7 + $0xc0] sm:$0xff] %v2771
    %3525 = vst [vmem:[#allocation7 + $0xc8] sm:$0xff] %v2875
    %3526 = vst [vmem:[#allocation7 + $0xd0] sm:$0xff] %v2979
    %3527 = vst [vmem:[#allocation7 + $0xd8] sm:$0xff] %v3083
    %3528 = vst [vmem:[#allocation7 + $0xe0] sm:$0xff] %v3187
    %3529 = vst [vmem:[#allocation7 + $0xe8] sm:$0xff] %v3291
    %3530 = vst [vmem:[#allocation7 + $0xf0] sm:$0xff] %v3395
    %3531 = vst [vmem:[#allocation7 + $0xf8] sm:$0xff] %v3499
    // Predicated region
    $region18: #{tpu_custom_call.1} parent=1 // pred_check
      _
    $region19: #{tpu_custom_call.1} parent=1 // pred_check_branch
      %3533 = sbr.rel (0) target = $region21
    $region20: #{tpu_custom_call.1} parent=1 // pred_region
      %s3535 = ssub.s32 4096, 4096
      %3536 = vsyncadd [#allocation4], %s3535
      %s3537 = sshll.u32 [#allocation7], 4
      %s3538 = int_to_ptr.vmem [resolvable:$true] %s3537
      %3543 = dma.vmem_to_hbm [thread:$0]  %s3538, 4096, %s2, [#allocation4], 512, 512, 32
    $region21: #{tpu_custom_call.1} parent=1 // pred_fallthru
      _
    // Predicated region
    $region22: #{tpu_custom_call.1} parent=1 // pred_check
      _
    $region23: #{tpu_custom_call.1} parent=1 // pred_check_branch
      %3545 = sbr.rel (0) target = $region25
    $region24: #{tpu_custom_call.1} parent=1 // pred_region
      %3546 = dma.done [#allocation4], 4096
    $region25: #{tpu_custom_call.1} parent=1 // pred_fallthru
      _
    %3547 = vsyncpa [#allocation3], 1
    %3548 = vsyncpa [#allocation6], 1
    %3549 = vsyncpa [#allocation4], 1

</llo_original>
